<compile_context>
chip_gen: v7x
topology: tpu7x:2x2x1
jax: 0.10.0
libtpu: 0.0.40
codegen_flags: <defaults>
</compile_context>

<pallas_src>
import numpy as np
import jax
import jax.numpy as jnp
from jax import lax
from jax.experimental import pallas as pl
from jax.experimental.pallas import tpu as pltpu


def _make_kernel(H, W, Cin, Coutp, fold):
    K = 6 * Cin
    N2 = 2 * Coutp
    HW = H * W
    # (row tap a, absolute col offset c); t = a*3 + c matches the weight K order.
    windows = tuple((a, c) for a in range(2) for c in range(3))

    def body(x_ref, w_ref, b_ref, o_ref, xp_ref, lhs_ref):
        # x_ref : (H, W, Cin)        original-resolution image (batch squeezed)
        # w_ref : (2, 6*Cin, 2*Coutp) folded weights, grid-invariant (resident)
        # b_ref : (1, 2*Coutp)        bias packed (col parity, cout), f32
        # o_ref : (H, 2, W, 2*Coutp)  output; dim 1 = row parity, lanes = (px, cout)
        # xp_ref: (H+2, W+2, Cin)     zero-padded input scratch (compute dtype)
        # lhs_ref:(H, W, 6*Cin)       im2col scratch (fold path only)
        dt = xp_ref.dtype

        # ---- fused 1-px zero pad: halo only, interior copied from x ---------
        xp_ref[0:1, :, :] = jnp.zeros((1, W + 2, Cin), dt)
        xp_ref[H + 1:H + 2, :, :] = jnp.zeros((1, W + 2, Cin), dt)
        xp_ref[:, 0:1, :] = jnp.zeros((H + 2, 1, Cin), dt)
        xp_ref[:, W + 1:W + 2, :] = jnp.zeros((H + 2, 1, Cin), dt)
        # TODO(synk): drop this VMEM->VMEM copy by taking x with
        # memory_space=pl.ANY and DMAing it straight into the interior slice.
        xp_ref[1:H + 1, 1:W + 1, :] = x_ref[...].astype(dt)

        bias = b_ref[...]                                   # (1, 2*Coutp) f32

        for py in range(2):                                  # output row parity
            if fold:
                # Pack the 6 unique shifted windows into the contraction dim.
                for t, (a, c) in enumerate(windows):
                    lhs_ref[:, :, t * Cin:(t + 1) * Cin] = \
                        xp_ref[py + a:py + a + H, c:c + W, :]
                lhs = lhs_ref[...].reshape(HW, K)   # layout-free when W % 8 == 0
                acc = jnp.dot(lhs, w_ref[py],
                              preferred_element_type=jnp.float32)
            else:
                # Large 6*Cin: six accumulating K=Cin matmuls bound VMEM/LHS size.
                acc = jnp.zeros((HW, N2), jnp.float32)
                for t, (a, c) in enumerate(windows):
                    patch = xp_ref[py + a:py + a + H, c:c + W, :].reshape(HW, Cin)
                    acc = acc + jnp.dot(
                        patch, w_ref[py, t * Cin:(t + 1) * Cin, :],
                        preferred_element_type=jnp.float32)
            # Lane-dense store straight into this row parity's output slice.
            o_ref[:, py:py + 1, :, :] = \
                (acc + bias).reshape(H, 1, W, N2).astype(o_ref.dtype)

    if fold:
        def kernel(x_ref, w_ref, b_ref, o_ref, xp_ref, lhs_ref):
            body(x_ref, w_ref, b_ref, o_ref, xp_ref, lhs_ref)
    else:
        def kernel(x_ref, w_ref, b_ref, o_ref, xp_ref):
            body(x_ref, w_ref, b_ref, o_ref, xp_ref, None)
    return kernel


def _fold_weight(weight, Cin, Cout, Coutp, cdt):
    """Fold the 3x3 conv on the x2-upsampled grid into per-parity window weights.

    Returns (2, 6*Cin, 2*Coutp): [row parity, K=(a,c,cin), N=(col parity, cout)].
    """
    # One-hot parity selection matrices (trace-time constants, exact 0/1).
    m_row = np.zeros((2, 3, 2), np.float32)          # (py, kh, a)   a in {0,1}
    m_col = np.zeros((2, 3, 3), np.float32)          # (px, kw, c)   c in {0,1,2}
    for p in range(2):
        for k in range(3):
            m_row[p, k, (p + k - 1) // 2 + 1 - p] = 1.0
            m_col[p, k, (p + k - 1) // 2 + 1] = 1.0
    w_hwio = jnp.transpose(weight, (2, 3, 1, 0)).astype(jnp.float32)  # (3,3,Cin,Cout)
    # Single vectorized fold (exact selection + add), no 36-op scatter chain.
    wu = jnp.einsum('pha,xwc,hwio->pacixo',
                    jnp.asarray(m_row), jnp.asarray(m_col), w_hwio,
                    precision=lax.Precision.HIGHEST)   # (py, a, c, cin, px, cout)
    wu = jnp.pad(wu, ((0, 0),) * 5 + ((0, Coutp - Cout),))
    return wu.reshape(2, 6 * Cin, 2 * Coutp).astype(cdt)


def res_upsample(x_nchw, weight=None, bias=None, *, use_conv=True, padding=1,
                 compute_dtype=None):
    """ResUpsample.forward (signal_dim=2): nearest x2 upsample [+ 3x3 conv].

    x_nchw : (N, Cin, H, W); weight : (Cout, Cin, 3, 3) OIHW; bias : (Cout,).
    compute_dtype : matmul input dtype (use jnp.bfloat16 in production for
                    native MXU rate); accumulation is always f32.
    """
    if not use_conv:
        # Pure nearest x2 upsample (no conv) — plain JAX, nothing to fuse.
        return jnp.repeat(jnp.repeat(x_nchw, 2, axis=2), 2, axis=3)
    if padding != 1:
        # TODO(synk): generalize the fused parity decomposition to padding != 1.
        raise NotImplementedError("fused kernel currently assumes padding=1")

    N, Cin, H, W = x_nchw.shape
    Cout = weight.shape[0]
    Coutp = ((Cout + 63) // 64) * 64       # lanes pack (px, cout): 2*Coutp % 128 == 0
    N2 = 2 * Coutp
    K = 6 * Cin
    cdt = compute_dtype if compute_dtype is not None else x_nchw.dtype
    itm_c = np.dtype(cdt).itemsize
    itm_x = np.dtype(x_nchw.dtype).itemsize

    # Fold taps into one K=6*Cin matmul while the im2col scratch stays modest;
    # otherwise six accumulating K=Cin matmuls.
    fold = (K <= 2048) and (H * W * K * itm_c <= (16 << 20))

    # TODO(synk): keep the surrounding model channels-last if possible so these
    # two full-HBM transpose passes disappear.
    x = jnp.transpose(x_nchw, (0, 2, 3, 1))            # NHWC, ORIGINAL resolution
    # TODO(synk): for small Cin (<<128) the channels-last layout pads lanes
    # heavily; pre-pack the K dim onto lanes in the wrapper if that matters.

    w_u = _fold_weight(weight, Cin, Cout, Coutp, cdt)                # (2, K, N2)
    b_u = jnp.tile(jnp.pad(bias, (0, Coutp - Cout)), 2)              # (N2,) = (px, cout)
    b_u = b_u.reshape(1, N2).astype(jnp.float32)

    kernel = _make_kernel(H, W, Cin, Coutp, fold)

    scratch = [pltpu.VMEM((H + 2, W + 2, Cin), cdt)]
    if fold:
        scratch.append(pltpu.VMEM((H, W, K), cdt))

    # VMEM budget estimate: double-buffered x/out blocks, resident w/b (2 bufs),
    # padded scratch, im2col scratch, f32 accumulator headroom.
    est = (2 * H * W * Cin * itm_x
           + 2 * 2 * K * N2 * itm_c
           + 2 * N2 * 4
           + 2 * H * 2 * W * N2 * itm_x
           + (H + 2) * (W + 2) * Cin * itm_c
           + (H * W * K * itm_c if fold else 0)
           + 2 * H * W * N2 * 4)
    cparams = dict(dimension_semantics=("parallel",))
    if est > (12 << 20):
        # TODO(synk): production sizes need a spatial row-tile (+1-row halo) and
        # a lane-tile grid axis so per-step blocks fit v7x's 64 MiB VMEM; the
        # whole-image block here is only meant for moderate H*W*C.
        cparams["vmem_limit_bytes"] = int(min(max(est * 5 // 4, 32 << 20), 100 << 20))

    out = pl.pallas_call(
        kernel,
        out_shape=jax.ShapeDtypeStruct((N, H, 2, W, N2), x.dtype),
        grid_spec=pltpu.PrefetchScalarGridSpec(
            num_scalar_prefetch=0,
            grid=(N,),                                       # one step per image
            in_specs=[
                pl.BlockSpec((None, H, W, Cin), lambda n: (n, 0, 0, 0)),
                # Constant index maps -> weight/bias DMA'd once, kept resident.
                pl.BlockSpec((2, K, N2), lambda n: (0, 0, 0)),
                pl.BlockSpec((1, N2), lambda n: (0, 0)),
            ],
            out_specs=pl.BlockSpec((None, H, 2, W, N2),
                                   lambda n: (n, 0, 0, 0, 0)),
            scratch_shapes=scratch,
        ),
        compiler_params=pltpu.CompilerParams(**cparams),
    )(x, w_u, b_u)

    # (N, H, 2, W, 2*Coutp) -> (N, 2H, 2W, Coutp) is a free row-major interleave;
    # drop the lane padding and return to NCHW.
    out = out.reshape(N, 2 * H, 2 * W, Coutp)[..., :Cout]
    return jnp.transpose(out, (0, 3, 1, 2))


if __name__ == "__main__":
    key = jax.random.PRNGKey(0)
    k1, k2, k3 = jax.random.split(key, 3)

    N, Cin, H, W = 2, 4, 16, 16
    Cout = 8

    x = jax.random.normal(k1, (N, Cin, H, W), jnp.float32)
    weight = jax.random.normal(k2, (Cout, Cin, 3, 3), jnp.float32) * 0.1
    bias = jax.random.normal(k3, (Cout,), jnp.float32) * 0.1

    out = res_upsample(x, weight, bias, use_conv=True, padding=1)
    out = jax.block_until_ready(out)

    # pure-JAX reference (matches PyTorch: nearest x2 + cross-correlation conv)
    x_up = jnp.repeat(jnp.repeat(x, 2, axis=2), 2, axis=3)
    ref = lax.conv_general_dilated(
        x_up, weight, window_strides=(1, 1),
        padding=((1, 1), (1, 1)),
        dimension_numbers=("NCHW", "OIHW", "NCHW"),
    ) + bias[None, :, None, None]

    assert out.shape == (N, Cout, 2 * H, 2 * W), out.shape
    assert jnp.allclose(out, ref, atol=1e-4, rtol=1e-4), "mismatch vs reference"
    print("KERNEL_OK")
</pallas_src>

<mosaic_0001>
module attributes {stable_mosaic.version = 11 : i64} {
  func.func @kernel(%arg0: i32, %arg1: memref<1x16x16x4xf32, #tpu.memory_space<vmem>>, %arg2: memref<2x24x128xf32, #tpu.memory_space<vmem>>, %arg3: memref<1x128xf32, #tpu.memory_space<vmem>>, %arg4: memref<1x16x2x16x128xf32, #tpu.memory_space<vmem>>, %arg5: memref<18x18x4xf32, #tpu.memory_space<vmem>>, %arg6: memref<16x16x24xf32, #tpu.memory_space<vmem>>) attributes {dimension_semantics = [#tpu.dimension_semantics<parallel>], iteration_bounds = array<i64: 2>, scalar_prefetch = 0 : i64, scratch_operands = 2 : i64, tpu.core_type = #tpu.core_type<tc>, window_params = [{transform_indices = @transform_0, window_bounds = array<i64: 1, 16, 16, 4>}, {pipeline_mode = #tpu.pipeline_mode<synchronous>, transform_indices = @transform_1, window_bounds = array<i64: 2, 24, 128>}, {pipeline_mode = #tpu.pipeline_mode<synchronous>, transform_indices = @transform_2, window_bounds = array<i64: 1, 128>}, {transform_indices = @transform_3, window_bounds = array<i64: 1, 16, 2, 16, 128>}]} {
    %cst = arith.constant 0.000000e+00 : f32
    %0 = vector.broadcast %cst : f32 to vector<1x18x4xf32>
    %c0 = arith.constant 0 : index
    %c0_0 = arith.constant 0 : index
    %c0_1 = arith.constant 0 : index
    %1 = vector.load %arg5[%c0, %c0_0, %c0_1] : memref<18x18x4xf32, #tpu.memory_space<vmem>>, vector<1x18x4xf32>
    tpu.vector_store %arg5[%c0, %c0_0, %c0_1], %0 {strides = array<i32>} : memref<18x18x4xf32, #tpu.memory_space<vmem>>, vector<1x18x4xf32>,
    %cst_2 = arith.constant 0.000000e+00 : f32
    %2 = vector.broadcast %cst_2 : f32 to vector<1x18x4xf32>
    %c17 = arith.constant 17 : index
    %c0_3 = arith.constant 0 : index
    %c0_4 = arith.constant 0 : index
    %3 = vector.load %arg5[%c17, %c0_3, %c0_4] : memref<18x18x4xf32, #tpu.memory_space<vmem>>, vector<1x18x4xf32>
    tpu.vector_store %arg5[%c17, %c0_3, %c0_4], %2 {strides = array<i32>} : memref<18x18x4xf32, #tpu.memory_space<vmem>>, vector<1x18x4xf32>,
    %cst_5 = arith.constant 0.000000e+00 : f32
    %4 = vector.broadcast %cst_5 : f32 to vector<18x1x4xf32>
    %c0_6 = arith.constant 0 : index
    %c0_7 = arith.constant 0 : index
    %c0_8 = arith.constant 0 : index
    %5 = vector.load %arg5[%c0_6, %c0_7, %c0_8] : memref<18x18x4xf32, #tpu.memory_space<vmem>>, vector<18x1x4xf32>
    tpu.vector_store %arg5[%c0_6, %c0_7, %c0_8], %4 {strides = array<i32>} : memref<18x18x4xf32, #tpu.memory_space<vmem>>, vector<18x1x4xf32>,
    %cst_9 = arith.constant 0.000000e+00 : f32
    %6 = vector.broadcast %cst_9 : f32 to vector<18x1x4xf32>
    %c0_10 = arith.constant 0 : index
    %c17_11 = arith.constant 17 : index
    %c0_12 = arith.constant 0 : index
    %7 = vector.load %arg5[%c0_10, %c17_11, %c0_12] : memref<18x18x4xf32, #tpu.memory_space<vmem>>, vector<18x1x4xf32>
    tpu.vector_store %arg5[%c0_10, %c17_11, %c0_12], %6 {strides = array<i32>} : memref<18x18x4xf32, #tpu.memory_space<vmem>>, vector<18x1x4xf32>,
    %c0_13 = arith.constant 0 : index
    %c0_14 = arith.constant 0 : index
    %c0_15 = arith.constant 0 : index
    %c0_16 = arith.constant 0 : index
    %8 = vector.load %arg1[%c0_13, %c0_14, %c0_15, %c0_16] : memref<1x16x16x4xf32, #tpu.memory_space<vmem>>, vector<1x16x16x4xf32>
    %9 = vector.shape_cast %8 : vector<1x16x16x4xf32> to vector<16x16x4xf32>
    %c1 = arith.constant 1 : index
    %c1_17 = arith.constant 1 : index
    %c0_18 = arith.constant 0 : index
    %10 = vector.load %arg5[%c1, %c1_17, %c0_18] : memref<18x18x4xf32, #tpu.memory_space<vmem>>, vector<16x16x4xf32>
    tpu.vector_store %arg5[%c1, %c1_17, %c0_18], %9 {strides = array<i32>} : memref<18x18x4xf32, #tpu.memory_space<vmem>>, vector<16x16x4xf32>,
    %c0_19 = arith.constant 0 : index
    %c0_20 = arith.constant 0 : index
    %11 = vector.load %arg3[%c0_19, %c0_20] : memref<1x128xf32, #tpu.memory_space<vmem>>, vector<1x128xf32>
    %c0_21 = arith.constant 0 : index
    %c0_22 = arith.constant 0 : index
    %c0_23 = arith.constant 0 : index
    %12 = vector.load %arg5[%c0_21, %c0_22, %c0_23] : memref<18x18x4xf32, #tpu.memory_space<vmem>>, vector<16x16x4xf32>
    %c0_24 = arith.constant 0 : index
    %c0_25 = arith.constant 0 : index
    %c0_26 = arith.constant 0 : index
    %13 = vector.load %arg6[%c0_24, %c0_25, %c0_26] : memref<16x16x24xf32, #tpu.memory_space<vmem>>, vector<16x16x4xf32>
    tpu.vector_store %arg6[%c0_24, %c0_25, %c0_26], %12 {strides = array<i32>} : memref<16x16x24xf32, #tpu.memory_space<vmem>>, vector<16x16x4xf32>,
    %c0_27 = arith.constant 0 : index
    %c1_28 = arith.constant 1 : index
    %c0_29 = arith.constant 0 : index
    %14 = vector.load %arg5[%c0_27, %c1_28, %c0_29] : memref<18x18x4xf32, #tpu.memory_space<vmem>>, vector<16x16x4xf32>
    %c0_30 = arith.constant 0 : index
    %c0_31 = arith.constant 0 : index
    %c4 = arith.constant 4 : index
    %15 = vector.load %arg6[%c0_30, %c0_31, %c4] : memref<16x16x24xf32, #tpu.memory_space<vmem>>, vector<16x16x4xf32>
    tpu.vector_store %arg6[%c0_30, %c0_31, %c4], %14 {strides = array<i32>} : memref<16x16x24xf32, #tpu.memory_space<vmem>>, vector<16x16x4xf32>,
    %c0_32 = arith.constant 0 : index
    %c2 = arith.constant 2 : index
    %c0_33 = arith.constant 0 : index
    %16 = vector.load %arg5[%c0_32, %c2, %c0_33] : memref<18x18x4xf32, #tpu.memory_space<vmem>>, vector<16x16x4xf32>
    %c0_34 = arith.constant 0 : index
    %c0_35 = arith.constant 0 : index
    %c8 = arith.constant 8 : index
    %17 = vector.load %arg6[%c0_34, %c0_35, %c8] : memref<16x16x24xf32, #tpu.memory_space<vmem>>, vector<16x16x4xf32>
    tpu.vector_store %arg6[%c0_34, %c0_35, %c8], %16 {strides = array<i32>} : memref<16x16x24xf32, #tpu.memory_space<vmem>>, vector<16x16x4xf32>,
    %c1_36 = arith.constant 1 : index
    %c0_37 = arith.constant 0 : index
    %c0_38 = arith.constant 0 : index
    %18 = vector.load %arg5[%c1_36, %c0_37, %c0_38] : memref<18x18x4xf32, #tpu.memory_space<vmem>>, vector<16x16x4xf32>
    %c0_39 = arith.constant 0 : index
    %c0_40 = arith.constant 0 : index
    %c12 = arith.constant 12 : index
    %19 = vector.load %arg6[%c0_39, %c0_40, %c12] : memref<16x16x24xf32, #tpu.memory_space<vmem>>, vector<16x16x4xf32>
    tpu.vector_store %arg6[%c0_39, %c0_40, %c12], %18 {strides = array<i32>} : memref<16x16x24xf32, #tpu.memory_space<vmem>>, vector<16x16x4xf32>,
    %c1_41 = arith.constant 1 : index
    %c1_42 = arith.constant 1 : index
    %c0_43 = arith.constant 0 : index
    %20 = vector.load %arg5[%c1_41, %c1_42, %c0_43] : memref<18x18x4xf32, #tpu.memory_space<vmem>>, vector<16x16x4xf32>
    %c0_44 = arith.constant 0 : index
    %c0_45 = arith.constant 0 : index
    %c16 = arith.constant 16 : index
    %21 = vector.load %arg6[%c0_44, %c0_45, %c16] : memref<16x16x24xf32, #tpu.memory_space<vmem>>, vector<16x16x4xf32>
    tpu.vector_store %arg6[%c0_44, %c0_45, %c16], %20 {strides = array<i32>} : memref<16x16x24xf32, #tpu.memory_space<vmem>>, vector<16x16x4xf32>,
    %c1_46 = arith.constant 1 : index
    %c2_47 = arith.constant 2 : index
    %c0_48 = arith.constant 0 : index
    %22 = vector.load %arg5[%c1_46, %c2_47, %c0_48] : memref<18x18x4xf32, #tpu.memory_space<vmem>>, vector<16x16x4xf32>
    %c0_49 = arith.constant 0 : index
    %c0_50 = arith.constant 0 : index
    %c20 = arith.constant 20 : index
    %23 = vector.load %arg6[%c0_49, %c0_50, %c20] : memref<16x16x24xf32, #tpu.memory_space<vmem>>, vector<16x16x4xf32>
    tpu.vector_store %arg6[%c0_49, %c0_50, %c20], %22 {strides = array<i32>} : memref<16x16x24xf32, #tpu.memory_space<vmem>>, vector<16x16x4xf32>,
    %c0_51 = arith.constant 0 : index
    %c0_52 = arith.constant 0 : index
    %c0_53 = arith.constant 0 : index
    %24 = vector.load %arg6[%c0_51, %c0_52, %c0_53] : memref<16x16x24xf32, #tpu.memory_space<vmem>>, vector<16x16x24xf32>
    %25 = vector.shape_cast %24 : vector<16x16x24xf32> to vector<256x24xf32>
    %c0_54 = arith.constant 0 : index
    %c0_55 = arith.constant 0 : index
    %c0_56 = arith.constant 0 : index
    %26 = vector.load %arg2[%c0_54, %c0_55, %c0_56] : memref<2x24x128xf32, #tpu.memory_space<vmem>>, vector<1x24x128xf32>
    %27 = vector.shape_cast %26 : vector<1x24x128xf32> to vector<24x128xf32>
    %cst_57 = arith.constant dense<0.000000e+00> : vector<256x128xf32>
    %28 = tpu.matmul %25, %27, %cst_57 {dimension_numbers = #tpu.dot_dimension_numbers<[1], [0], [0], [1], [0, 0, 1, 1], [], []>} : vector<256x24xf32>, vector<24x128xf32>, vector<256x128xf32> -> vector<256x128xf32>
    %29 = vector.broadcast %11 : vector<1x128xf32> to vector<256x128xf32>
    %30 = arith.addf %28, %29 : vector<256x128xf32>
    %31 = vector.shape_cast %30 : vector<256x128xf32> to vector<16x1x16x128xf32>
    %c0_58 = arith.constant 0 : index
    %c0_59 = arith.constant 0 : index
    %c0_60 = arith.constant 0 : index
    %c0_61 = arith.constant 0 : index
    %c0_62 = arith.constant 0 : index
    %32 = vector.load %arg4[%c0_58, %c0_59, %c0_60, %c0_61, %c0_62] : memref<1x16x2x16x128xf32, #tpu.memory_space<vmem>>, vector<1x16x1x16x128xf32>
    %33 = vector.shape_cast %32 : vector<1x16x1x16x128xf32> to vector<16x1x16x128xf32>
    %34 = vector.shape_cast %31 : vector<16x1x16x128xf32> to vector<1x16x1x16x128xf32>
    tpu.vector_store %arg4[%c0_58, %c0_59, %c0_60, %c0_61, %c0_62], %34 {strides = array<i32>} : memref<1x16x2x16x128xf32, #tpu.memory_space<vmem>>, vector<1x16x1x16x128xf32>,
    %c1_63 = arith.constant 1 : index
    %c0_64 = arith.constant 0 : index
    %c0_65 = arith.constant 0 : index
    %35 = vector.load %arg5[%c1_63, %c0_64, %c0_65] : memref<18x18x4xf32, #tpu.memory_space<vmem>>, vector<16x16x4xf32>
    %c0_66 = arith.constant 0 : index
    %c0_67 = arith.constant 0 : index
    %c0_68 = arith.constant 0 : index
    %36 = vector.load %arg6[%c0_66, %c0_67, %c0_68] : memref<16x16x24xf32, #tpu.memory_space<vmem>>, vector<16x16x4xf32>
    tpu.vector_store %arg6[%c0_66, %c0_67, %c0_68], %35 {strides = array<i32>} : memref<16x16x24xf32, #tpu.memory_space<vmem>>, vector<16x16x4xf32>,
    %c1_69 = arith.constant 1 : index
    %c1_70 = arith.constant 1 : index
    %c0_71 = arith.constant 0 : index
    %37 = vector.load %arg5[%c1_69, %c1_70, %c0_71] : memref<18x18x4xf32, #tpu.memory_space<vmem>>, vector<16x16x4xf32>
    %c0_72 = arith.constant 0 : index
    %c0_73 = arith.constant 0 : index
    %c4_74 = arith.constant 4 : index
    %38 = vector.load %arg6[%c0_72, %c0_73, %c4_74] : memref<16x16x24xf32, #tpu.memory_space<vmem>>, vector<16x16x4xf32>
    tpu.vector_store %arg6[%c0_72, %c0_73, %c4_74], %37 {strides = array<i32>} : memref<16x16x24xf32, #tpu.memory_space<vmem>>, vector<16x16x4xf32>,
    %c1_75 = arith.constant 1 : index
    %c2_76 = arith.constant 2 : index
    %c0_77 = arith.constant 0 : index
    %39 = vector.load %arg5[%c1_75, %c2_76, %c0_77] : memref<18x18x4xf32, #tpu.memory_space<vmem>>, vector<16x16x4xf32>
    %c0_78 = arith.constant 0 : index
    %c0_79 = arith.constant 0 : index
    %c8_80 = arith.constant 8 : index
    %40 = vector.load %arg6[%c0_78, %c0_79, %c8_80] : memref<16x16x24xf32, #tpu.memory_space<vmem>>, vector<16x16x4xf32>
    tpu.vector_store %arg6[%c0_78, %c0_79, %c8_80], %39 {strides = array<i32>} : memref<16x16x24xf32, #tpu.memory_space<vmem>>, vector<16x16x4xf32>,
    %c2_81 = arith.constant 2 : index
    %c0_82 = arith.constant 0 : index
    %c0_83 = arith.constant 0 : index
    %41 = vector.load %arg5[%c2_81, %c0_82, %c0_83] : memref<18x18x4xf32, #tpu.memory_space<vmem>>, vector<16x16x4xf32>
    %c0_84 = arith.constant 0 : index
    %c0_85 = arith.constant 0 : index
    %c12_86 = arith.constant 12 : index
    %42 = vector.load %arg6[%c0_84, %c0_85, %c12_86] : memref<16x16x24xf32, #tpu.memory_space<vmem>>, vector<16x16x4xf32>
    tpu.vector_store %arg6[%c0_84, %c0_85, %c12_86], %41 {strides = array<i32>} : memref<16x16x24xf32, #tpu.memory_space<vmem>>, vector<16x16x4xf32>,
    %c2_87 = arith.constant 2 : index
    %c1_88 = arith.constant 1 : index
    %c0_89 = arith.constant 0 : index
    %43 = vector.load %arg5[%c2_87, %c1_88, %c0_89] : memref<18x18x4xf32, #tpu.memory_space<vmem>>, vector<16x16x4xf32>
    %c0_90 = arith.constant 0 : index
    %c0_91 = arith.constant 0 : index
    %c16_92 = arith.constant 16 : index
    %44 = vector.load %arg6[%c0_90, %c0_91, %c16_92] : memref<16x16x24xf32, #tpu.memory_space<vmem>>, vector<16x16x4xf32>
    tpu.vector_store %arg6[%c0_90, %c0_91, %c16_92], %43 {strides = array<i32>} : memref<16x16x24xf32, #tpu.memory_space<vmem>>, vector<16x16x4xf32>,
    %c2_93 = arith.constant 2 : index
    %c2_94 = arith.constant 2 : index
    %c0_95 = arith.constant 0 : index
    %45 = vector.load %arg5[%c2_93, %c2_94, %c0_95] : memref<18x18x4xf32, #tpu.memory_space<vmem>>, vector<16x16x4xf32>
    %c0_96 = arith.constant 0 : index
    %c0_97 = arith.constant 0 : index
    %c20_98 = arith.constant 20 : index
    %46 = vector.load %arg6[%c0_96, %c0_97, %c20_98] : memref<16x16x24xf32, #tpu.memory_space<vmem>>, vector<16x16x4xf32>
    tpu.vector_store %arg6[%c0_96, %c0_97, %c20_98], %45 {strides = array<i32>} : memref<16x16x24xf32, #tpu.memory_space<vmem>>, vector<16x16x4xf32>,
    %c0_99 = arith.constant 0 : index
    %c0_100 = arith.constant 0 : index
    %c0_101 = arith.constant 0 : index
    %47 = vector.load %arg6[%c0_99, %c0_100, %c0_101] : memref<16x16x24xf32, #tpu.memory_space<vmem>>, vector<16x16x24xf32>
    %48 = vector.shape_cast %47 : vector<16x16x24xf32> to vector<256x24xf32>
    %c1_102 = arith.constant 1 : index
    %c0_103 = arith.constant 0 : index
    %c0_104 = arith.constant 0 : index
    %49 = vector.load %arg2[%c1_102, %c0_103, %c0_104] : memref<2x24x128xf32, #tpu.memory_space<vmem>>, vector<1x24x128xf32>
    %50 = vector.shape_cast %49 : vector<1x24x128xf32> to vector<24x128xf32>
    %cst_105 = arith.constant dense<0.000000e+00> : vector<256x128xf32>
    %51 = tpu.matmul %48, %50, %cst_105 {dimension_numbers = #tpu.dot_dimension_numbers<[1], [0], [0], [1], [0, 0, 1, 1], [], []>} : vector<256x24xf32>, vector<24x128xf32>, vector<256x128xf32> -> vector<256x128xf32>
    %52 = vector.broadcast %11 : vector<1x128xf32> to vector<256x128xf32>
    %53 = arith.addf %51, %52 : vector<256x128xf32>
    %54 = vector.shape_cast %53 : vector<256x128xf32> to vector<16x1x16x128xf32>
    %c0_106 = arith.constant 0 : index
    %c0_107 = arith.constant 0 : index
    %c1_108 = arith.constant 1 : index
    %c0_109 = arith.constant 0 : index
    %c0_110 = arith.constant 0 : index
    %55 = vector.load %arg4[%c0_106, %c0_107, %c1_108, %c0_109, %c0_110] : memref<1x16x2x16x128xf32, #tpu.memory_space<vmem>>, vector<1x16x1x16x128xf32>
    %56 = vector.shape_cast %55 : vector<1x16x1x16x128xf32> to vector<16x1x16x128xf32>
    %57 = vector.shape_cast %54 : vector<16x1x16x128xf32> to vector<1x16x1x16x128xf32>
    tpu.vector_store %arg4[%c0_106, %c0_107, %c1_108, %c0_109, %c0_110], %57 {strides = array<i32>} : memref<1x16x2x16x128xf32, #tpu.memory_space<vmem>>, vector<1x16x1x16x128xf32>,
    return
  }
  func.func @transform_0(%arg0: i32) -> (i32, i32, i32, i32) {
    %c0_i32 = arith.constant 0 : i32
    %c0_i32_0 = arith.constant 0 : i32
    %c0_i32_1 = arith.constant 0 : i32
    %c0_i32_2 = arith.constant 0 : i32
    return %arg0, %c0_i32, %c0_i32_0, %c0_i32_1 : i32, i32, i32, i32
  }
  func.func @transform_1(%arg0: i32) -> (i32, i32, i32) {
    %c0_i32 = arith.constant 0 : i32
    %c0_i32_0 = arith.constant 0 : i32
    %c0_i32_1 = arith.constant 0 : i32
    %c0_i32_2 = arith.constant 0 : i32
    return %c0_i32, %c0_i32_0, %c0_i32_1 : i32, i32, i32
  }
  func.func @transform_2(%arg0: i32) -> (i32, i32) {
    %c0_i32 = arith.constant 0 : i32
    %c0_i32_0 = arith.constant 0 : i32
    %c0_i32_1 = arith.constant 0 : i32
    return %c0_i32, %c0_i32_0 : i32, i32
  }
  func.func @transform_3(%arg0: i32) -> (i32, i32, i32, i32, i32) {
    %c0_i32 = arith.constant 0 : i32
    %c0_i32_0 = arith.constant 0 : i32
    %c0_i32_1 = arith.constant 0 : i32
    %c0_i32_2 = arith.constant 0 : i32
    %c0_i32_3 = arith.constant 0 : i32
    return %arg0, %c0_i32, %c0_i32_0, %c0_i32_1, %c0_i32_2 : i32, i32, i32, i32, i32
  }
}

</mosaic_0001>

<llo_original>
// kernel: tpu_custom_call.1
$region0: #{tpu_custom_call.1}
  #allocation0 [shape = 'u32[]', space=smem, size = 0x4, offset = 0x4, fixed_abs, tag = 'smem constant byte address 0x4 - core index']
  #allocation1 [shape = 'u32[144,128]{1,0:T(1,128)}', space=vmem, size = 0x12000, scoped, tag = 'internal scratch']
  #allocation2 [shape = 'f32[18,18,4]{2,1,0:T(8,128)}', space=vmem, size = 0x36000, scoped, tag = 'scratch operand']
  #allocation3 [shape = 'f32[16,16,24]{2,1,0:T(8,128)}', space=vmem, size = 0x20000, scoped, tag = 'scratch operand']
  %s0 = inlined_call_operand.vmem [shape: f32[2,16,16,4], index: 0, kind: input, shape index: {}]
  %s1 = inlined_call_operand.vmem [shape: f32[2,24,128], index: 1, kind: input, shape index: {}]
  %s2 = inlined_call_operand.vmem [shape: f32[1,128], index: 2, kind: input, shape index: {}]
  %s3 = inlined_call_operand.hbm [shape: f32[2,16,2,16,128], index: 3, kind: output, shape index: {}]
  %s4 = sld [smem:[#allocation0]]
  $region45: #{tpu_custom_call.1} parent=0
    _
  %s6 = ssub.s32 1, %s4
  %s7 = scalar_select 0, %s6, %s4
  $region1: #{tpu_custom_call.1} parent=0
    #allocation4 [shape = 'u8[524288]{0}', space=vmem, size = 0x80000, scoped, tag = 'output window, operand 0']
    #allocation5 [shape = 's32[2]{0}', space=sflag, size = 0x8, scoped, tag = 'scoped memory for tpu_custom_call.1']
    %8 = vsyncpa [#allocation5], 0
    %s9 = scalar_lea.sflag [#allocation5], 1
    %10 = vsyncpa %s9, 0
    loop: start=0, step=1, limit=4
    $region2: #{tpu_custom_call.1} parent=1 // loop_pre_header
      _
    $region3: #{tpu_custom_call.1} parent=1 // loop_header
      %s12 = sphi 0, %s16
      %p13 = scmp.ge.s32.totalorder %s12, 4
      %s22 = sphi 0, %s24
      %s25 = sphi 0, %s22
      %s26 = sphi 0, %s25
      %s42 = sphi 0, %s26
      %s46 = sphi 0, %s46
      %s48 = sphi 0, %s46
      %s49 = sphi 0, %s48
      %s63 = sphi 0, %s49
      %s67 = sphi 0, %s67
      %s69 = sphi 0, %s67
      %s70 = sphi 0, %s69
      %s84 = sphi 0, %s70
      %s90 = sphi 0, %s92
      %s93 = sphi 0, %s90
      %s94 = sphi 0, %s93
      %s110 = sphi 0, %s94
    $region4: #{tpu_custom_call.1} parent=1 // loop_header_branch
      %15 = sbr.rel (%p13) target = $region8
    $region5: #{tpu_custom_call.1} parent=1 // loop_body
      %s17 = ssub.s32 %s12, 1
      %s18 = ssub.s32 %s12, 2
      %s19 = sadd.s32 %s12, 1
      %s20 = ssub.s32 %s12, %s19
      %p21 = scmp.eq.s32.totalorder %s20, 0
      %s23 = sadd.s32 %s22, 1
      %s24 = scalar_select %p21, %s22, %s23
      %p27 = pneg %p21
      %p28 = scmp.eq.s32.totalorder %s12, 1
      %p29 = por %p27, %p28
      %p30 = scmp.ne.s32.totalorder %s22, %s25
      %p31 = scmp.eq.s32.totalorder %s12, 0
      %p32 = por %p30, %p31
      %p33 = scmp.ne.s32.totalorder %s22, %s25
      %p34 = scmp.eq.s32.totalorder %s17, 1
      %p35 = por %p33, %p34
      %p36 = scmp.ne.s32.totalorder %s25, %s26
      %p37 = scmp.eq.s32.totalorder %s17, 0
      %p38 = por %p36, %p37
      %p39 = scmp.ne.s32.totalorder %s25, %s26
      %p40 = scmp.eq.s32.totalorder %s18, 1
      %p41 = por %p39, %p40
      %p43 = scmp.ne.s32.totalorder %s26, %s42
      %p44 = scmp.eq.s32.totalorder %s18, 0
      %p45 = por %p43, %p44
      %s47 = sadd.s32 %s46, 1
      %p50 = scmp.eq.s32.totalorder %s12, 1
      %p51 = scmp.ne.s32.totalorder %s46, %s48
      %p52 = scmp.eq.s32.totalorder %s12, 0
      %p53 = por %p51, %p52
      %p54 = scmp.ne.s32.totalorder %s46, %s48
      %p55 = scmp.eq.s32.totalorder %s17, 1
      %p56 = por %p54, %p55
      %p57 = scmp.ne.s32.totalorder %s48, %s49
      %p58 = scmp.eq.s32.totalorder %s17, 0
      %p59 = por %p57, %p58
      %p60 = scmp.ne.s32.totalorder %s48, %s49
      %p61 = scmp.eq.s32.totalorder %s18, 1
      %p62 = por %p60, %p61
      %p64 = scmp.ne.s32.totalorder %s49, %s63
      %p65 = scmp.eq.s32.totalorder %s18, 0
      %p66 = por %p64, %p65
      %s68 = sadd.s32 %s67, 1
      %p71 = scmp.eq.s32.totalorder %s12, 1
      %p72 = scmp.ne.s32.totalorder %s67, %s69
      %p73 = scmp.eq.s32.totalorder %s12, 0
      %p74 = por %p72, %p73
      %p75 = scmp.ne.s32.totalorder %s67, %s69
      %p76 = scmp.eq.s32.totalorder %s17, 1
      %p77 = por %p75, %p76
      %p78 = scmp.ne.s32.totalorder %s69, %s70
      %p79 = scmp.eq.s32.totalorder %s17, 0
      %p80 = por %p78, %p79
      %p81 = scmp.ne.s32.totalorder %s69, %s70
      %p82 = scmp.eq.s32.totalorder %s18, 1
      %p83 = por %p81, %p82
      %p85 = scmp.ne.s32.totalorder %s70, %s84
      %p86 = scmp.eq.s32.totalorder %s18, 0
      %p87 = por %p85, %p86
      %s88 = ssub.s32 %s12, %s19
      %p89 = scmp.eq.s32.totalorder %s88, 0
      %s91 = sadd.s32 %s90, 1
      %s92 = scalar_select %p89, %s90, %s91
      %p95 = pneg %p89
      %p96 = scmp.eq.s32.totalorder %s12, 1
      %p97 = por %p95, %p96
      %p98 = scmp.ne.s32.totalorder %s90, %s93
      %p99 = scmp.eq.s32.totalorder %s12, 0
      %p100 = por %p98, %p99
      %p101 = scmp.ne.s32.totalorder %s90, %s93
      %p102 = scmp.eq.s32.totalorder %s17, 1
      %p103 = por %p101, %p102
      %p104 = scmp.ne.s32.totalorder %s93, %s94
      %p105 = scmp.eq.s32.totalorder %s17, 0
      %p106 = por %p104, %p105
      %p107 = scmp.ne.s32.totalorder %s93, %s94
      %p108 = scmp.eq.s32.totalorder %s18, 1
      %p109 = por %p107, %p108
      %p111 = scmp.ne.s32.totalorder %s94, %s110
      %p112 = scmp.eq.s32.totalorder %s18, 0
      %p113 = por %p111, %p112
      %p114 = scmp.le.s32.totalorder 1, %s12
      %p115 = scmp.lt.s32.totalorder %s12, 3
      %p116 = pnand %p114, %p115
      %p117 = pneg %p116
      // Predicated region
      $region9: #{tpu_custom_call.1} parent=5 // pred_check
        _
      $region10: #{tpu_custom_call.1} parent=5 // pred_check_branch
        %119 = sbr.rel (%p116) target = $region12
      $region11: #{tpu_custom_call.1} parent=5 // pred_region
        %s120 = ssub.s32 %s12, 1
        // Predicated region
        $region13: #{tpu_custom_call.1} parent=11 // pred_check
          %p121 = pneg %p59
        $region14: #{tpu_custom_call.1} parent=11 // pred_check_branch
          %123 = sbr.rel (%p121) target = $region16
        $region15: #{tpu_custom_call.1} parent=11 // pred_region
          _
        $region16: #{tpu_custom_call.1} parent=11 // pred_fallthru
          _
        // Predicated region
        $region17: #{tpu_custom_call.1} parent=11 // pred_check
          %p124 = pneg %p80
        $region18: #{tpu_custom_call.1} parent=11 // pred_check_branch
          %126 = sbr.rel (%p124) target = $region20
        $region19: #{tpu_custom_call.1} parent=11 // pred_region
          _
        $region20: #{tpu_custom_call.1} parent=11 // pred_fallthru
          _
      $region12: #{tpu_custom_call.1} parent=5 // pred_fallthru
        _
      %p127 = scmp.lt.s32.totalorder %s12, 2
      // Predicated region
      $region21: #{tpu_custom_call.1} parent=5 // pred_check
        %p128 = pneg %p127
      $region22: #{tpu_custom_call.1} parent=5 // pred_check_branch
        %130 = sbr.rel (%p128) target = $region24
      $region23: #{tpu_custom_call.1} parent=5 // pred_region
        // Predicated region
        $region25: #{tpu_custom_call.1} parent=23 // pred_check
          %p131 = pneg %p32
        $region26: #{tpu_custom_call.1} parent=23 // pred_check_branch
          %133 = sbr.rel (%p131) target = $region28
        $region27: #{tpu_custom_call.1} parent=23 // pred_region
          %p134 = scmp.lt.s32.totalorder %s12, 1
          %s135 = scalar_select %p134, %s12, 1
          %s136 = smul.addr %s135, 32
          %s137 = smul.addr %s136, 8
          %s138 = scalar_lea.vmem %s0, %s137
        $region28: #{tpu_custom_call.1} parent=23 // pred_fallthru
          _
      $region24: #{tpu_custom_call.1} parent=5 // pred_fallthru
        _
      %p139 = scmp.le.s32.totalorder 1, %s12
      %p140 = scmp.lt.s32.totalorder %s12, 3
      %p141 = pnand %p139, %p140
      %p142 = pneg %p141
      // Predicated region
      $region29: #{tpu_custom_call.1} parent=5 // pred_check
        _
      $region30: #{tpu_custom_call.1} parent=5 // pred_check_branch
        %144 = sbr.rel (%p141) target = $region32
      $region31: #{tpu_custom_call.1} parent=5 // pred_region
        %s145 = ssub.s32 %s12, 1
        %p146 = scmp.lt.s32.totalorder %s17, 1
        %s147 = scalar_select %p146, %s17, 1
        %s148 = smul.addr %s147, 32
        %s149 = smul.addr %s148, 8
        %s150 = scalar_lea.vmem %s0, %s149
        %p151 = pneg %p38
        %p152 = pneg %p35
        %p153 = pneg %p59
        %p154 = pneg %p56
        %p155 = pneg %p80
        %p156 = pneg %p77
        %p157 = pneg %p106
        %p158 = pneg %p103
        %s159 = sand.u32 %s93, 1
        %s160 = scalar_lea.sflag [#allocation5], %s159
        %s161 = sand.u32 %s93, 1
        %s162 = smul.addr %s161, 512
        %s163 = scalar_lea.vmem [#allocation4], %s162
        %p164 = scmp.lt.s32.totalorder %s17, 1
        %s165 = scalar_select %p164, %s17, 1
        %s166 = smul.addr %s165, 32
        %s167 = smul.addr %s166, 8
        %s168 = scalar_lea.vmem %s0, %s167
        %vm169 = vcmask 31744
        %170 = vst.msk [vmem:[#allocation2] sm:$0xff] %vm169, 0.0
        %171 = vst.msk [vmem:[#allocation2 + $0x8] sm:$0xff] %vm169, 0.0
        %vm172 = vcmask 25600
        %173 = vst.msk [vmem:[#allocation2 + $0x10] sm:$0x3] %vm172, 0.0
        %s174 = scalar_lea.vmem [#allocation2], 408
        %175 = vst.msk [vmem:[%s174] sm:$0xff] %vm169, 0.0
        %176 = vst.msk [vmem:[%s174 + $0x8] sm:$0xff] %vm169, 0.0
        %177 = vst.msk [vmem:[%s174 + $0x10] sm:$0x3] %vm172, 0.0
        %vm178 = vcmask 24576
        %179 = vst.msk [vmem:[#allocation2] sm:$0x1] %vm178, 0.0
        %180 = vst.msk [vmem:[#allocation2 + $0x18] sm:$0x1] %vm178, 0.0
        %181 = vst.msk [vmem:[#allocation2 + $0x30] sm:$0x1] %vm178, 0.0
        %182 = vst.msk [vmem:[#allocation2 + $0x48] sm:$0x1] %vm178, 0.0
        %183 = vst.msk [vmem:[#allocation2 + $0x60] sm:$0x1] %vm178, 0.0
        %184 = vst.msk [vmem:[#allocation2 + $0x78] sm:$0x1] %vm178, 0.0
        %185 = vst.msk [vmem:[#allocation2 + $0x90] sm:$0x1] %vm178, 0.0
        %186 = vst.msk [vmem:[#allocation2 + $0xa8] sm:$0x1] %vm178, 0.0
        %187 = vst.msk [vmem:[#allocation2 + $0xc0] sm:$0x1] %vm178, 0.0
        %188 = vst.msk [vmem:[#allocation2 + $0xd8] sm:$0x1] %vm178, 0.0
        %189 = vst.msk [vmem:[#allocation2 + $0xf0] sm:$0x1] %vm178, 0.0
        %190 = vst.msk [vmem:[#allocation2 + $0x108] sm:$0x1] %vm178, 0.0
        %191 = vst.msk [vmem:[#allocation2 + $0x120] sm:$0x1] %vm178, 0.0
        %192 = vst.msk [vmem:[#allocation2 + $0x138] sm:$0x1] %vm178, 0.0
        %193 = vst.msk [vmem:[#allocation2 + $0x150] sm:$0x1] %vm178, 0.0
        %194 = vst.msk [vmem:[#allocation2 + $0x168] sm:$0x1] %vm178, 0.0
        %195 = vst.msk [vmem:[#allocation2 + $0x180] sm:$0x1] %vm178, 0.0
        %196 = vst.msk [vmem:[#allocation2 + $0x198] sm:$0x1] %vm178, 0.0
        %197 = vst.msk [vmem:[#allocation2 + $0x11] sm:$0x1] %vm178, 0.0
        %198 = vst.msk [vmem:[#allocation2 + $0x29] sm:$0x1] %vm178, 0.0
        %199 = vst.msk [vmem:[#allocation2 + $0x41] sm:$0x1] %vm178, 0.0
        %200 = vst.msk [vmem:[#allocation2 + $0x59] sm:$0x1] %vm178, 0.0
        %201 = vst.msk [vmem:[#allocation2 + $0x71] sm:$0x1] %vm178, 0.0
        %202 = vst.msk [vmem:[#allocation2 + $0x89] sm:$0x1] %vm178, 0.0
        %203 = vst.msk [vmem:[#allocation2 + $0xa1] sm:$0x1] %vm178, 0.0
        %204 = vst.msk [vmem:[#allocation2 + $0xb9] sm:$0x1] %vm178, 0.0
        %205 = vst.msk [vmem:[#allocation2 + $0xd1] sm:$0x1] %vm178, 0.0
        %206 = vst.msk [vmem:[#allocation2 + $0xe9] sm:$0x1] %vm178, 0.0
        %207 = vst.msk [vmem:[#allocation2 + $0x101] sm:$0x1] %vm178, 0.0
        %208 = vst.msk [vmem:[#allocation2 + $0x119] sm:$0x1] %vm178, 0.0
        %209 = vst.msk [vmem:[#allocation2 + $0x131] sm:$0x1] %vm178, 0.0
        %210 = vst.msk [vmem:[#allocation2 + $0x149] sm:$0x1] %vm178, 0.0
        %211 = vst.msk [vmem:[#allocation2 + $0x161] sm:$0x1] %vm178, 0.0
        %212 = vst.msk [vmem:[#allocation2 + $0x179] sm:$0x1] %vm178, 0.0
        %213 = vst.msk [vmem:[#allocation2 + $0x191] sm:$0x1] %vm178, 0.0
        %214 = vst.msk [vmem:[#allocation2 + $0x1a9] sm:$0x1] %vm178, 0.0
        %v215 = vld [vmem:[%s168] sm:$0xff]
        %v216 = vld [vmem:[%s168 + $0x8] sm:$0xff]
        %v217 = vld [vmem:[%s168 + $0x10] sm:$0xff]
        %v218 = vld [vmem:[%s168 + $0x18] sm:$0xff]
        %v219 = vld [vmem:[%s168 + $0x20] sm:$0xff]
        %v220 = vld [vmem:[%s168 + $0x28] sm:$0xff]
        %v221 = vld [vmem:[%s168 + $0x30] sm:$0xff]
        %v222 = vld [vmem:[%s168 + $0x38] sm:$0xff]
        %v223 = vld [vmem:[%s168 + $0x40] sm:$0xff]
        %v224 = vld [vmem:[%s168 + $0x48] sm:$0xff]
        %v225 = vld [vmem:[%s168 + $0x50] sm:$0xff]
        %v226 = vld [vmem:[%s168 + $0x58] sm:$0xff]
        %v227 = vld [vmem:[%s168 + $0x60] sm:$0xff]
        %v228 = vld [vmem:[%s168 + $0x68] sm:$0xff]
        %v229 = vld [vmem:[%s168 + $0x70] sm:$0xff]
        %v230 = vld [vmem:[%s168 + $0x78] sm:$0xff]
        %v231 = vld [vmem:[%s168 + $0x80] sm:$0xff]
        %v232 = vld [vmem:[%s168 + $0x88] sm:$0xff]
        %v233 = vld [vmem:[%s168 + $0x90] sm:$0xff]
        %v234 = vld [vmem:[%s168 + $0x98] sm:$0xff]
        %v235 = vld [vmem:[%s168 + $0xa0] sm:$0xff]
        %v236 = vld [vmem:[%s168 + $0xa8] sm:$0xff]
        %v237 = vld [vmem:[%s168 + $0xb0] sm:$0xff]
        %v238 = vld [vmem:[%s168 + $0xb8] sm:$0xff]
        %v239 = vld [vmem:[%s168 + $0xc0] sm:$0xff]
        %v240 = vld [vmem:[%s168 + $0xc8] sm:$0xff]
        %v241 = vld [vmem:[%s168 + $0xd0] sm:$0xff]
        %v242 = vld [vmem:[%s168 + $0xd8] sm:$0xff]
        %v243 = vld [vmem:[%s168 + $0xe0] sm:$0xff]
        %v244 = vld [vmem:[%s168 + $0xe8] sm:$0xff]
        %v245 = vld [vmem:[%s168 + $0xf0] sm:$0xff]
        %v246 = vld [vmem:[%s168 + $0xf8] sm:$0xff]
        %s247 = scalar_lea.vmem [#allocation2], 24
        %248 = vst.msk [vmem:[%s247 + $0x1] sm:$0xff] %vm169, %v215
        %249 = vst.msk [vmem:[%s247 + $0x9] sm:$0xff] %vm169, %v216
        %250 = vst.msk [vmem:[%s247 + $0x19] sm:$0xff] %vm169, %v217
        %251 = vst.msk [vmem:[%s247 + $0x21] sm:$0xff] %vm169, %v218
        %252 = vst.msk [vmem:[%s247 + $0x31] sm:$0xff] %vm169, %v219
        %253 = vst.msk [vmem:[%s247 + $0x39] sm:$0xff] %vm169, %v220
        %254 = vst.msk [vmem:[%s247 + $0x49] sm:$0xff] %vm169, %v221
        %255 = vst.msk [vmem:[%s247 + $0x51] sm:$0xff] %vm169, %v222
        %256 = vst.msk [vmem:[%s247 + $0x61] sm:$0xff] %vm169, %v223
        %257 = vst.msk [vmem:[%s247 + $0x69] sm:$0xff] %vm169, %v224
        %258 = vst.msk [vmem:[%s247 + $0x79] sm:$0xff] %vm169, %v225
        %259 = vst.msk [vmem:[%s247 + $0x81] sm:$0xff] %vm169, %v226
        %260 = vst.msk [vmem:[%s247 + $0x91] sm:$0xff] %vm169, %v227
        %261 = vst.msk [vmem:[%s247 + $0x99] sm:$0xff] %vm169, %v228
        %262 = vst.msk [vmem:[%s247 + $0xa9] sm:$0xff] %vm169, %v229
        %263 = vst.msk [vmem:[%s247 + $0xb1] sm:$0xff] %vm169, %v230
        %264 = vst.msk [vmem:[%s247 + $0xc1] sm:$0xff] %vm169, %v231
        %265 = vst.msk [vmem:[%s247 + $0xc9] sm:$0xff] %vm169, %v232
        %266 = vst.msk [vmem:[%s247 + $0xd9] sm:$0xff] %vm169, %v233
        %267 = vst.msk [vmem:[%s247 + $0xe1] sm:$0xff] %vm169, %v234
        %268 = vst.msk [vmem:[%s247 + $0xf1] sm:$0xff] %vm169, %v235
        %269 = vst.msk [vmem:[%s247 + $0xf9] sm:$0xff] %vm169, %v236
        %270 = vst.msk [vmem:[%s247 + $0x109] sm:$0xff] %vm169, %v237
        %271 = vst.msk [vmem:[%s247 + $0x111] sm:$0xff] %vm169, %v238
        %272 = vst.msk [vmem:[%s247 + $0x121] sm:$0xff] %vm169, %v239
        %273 = vst.msk [vmem:[%s247 + $0x129] sm:$0xff] %vm169, %v240
        %274 = vst.msk [vmem:[%s247 + $0x139] sm:$0xff] %vm169, %v241
        %275 = vst.msk [vmem:[%s247 + $0x141] sm:$0xff] %vm169, %v242
        %276 = vst.msk [vmem:[%s247 + $0x151] sm:$0xff] %vm169, %v243
        %277 = vst.msk [vmem:[%s247 + $0x159] sm:$0xff] %vm169, %v244
        %278 = vst.msk [vmem:[%s247 + $0x169] sm:$0xff] %vm169, %v245
        %279 = vst.msk [vmem:[%s247 + $0x171] sm:$0xff] %vm169, %v246
        %v280 = vld [vmem:[%s2] sm:$0x1]
        %v281 = vld [vmem:[#allocation2] sm:$0xff]
        %v282 = vld [vmem:[#allocation2 + $0x8] sm:$0xff]
        %v283 = vld [vmem:[#allocation2 + $0x18] sm:$0xff]
        %v284 = vld [vmem:[#allocation2 + $0x20] sm:$0xff]
        %v285 = vld [vmem:[#allocation2 + $0x30] sm:$0xff]
        %v286 = vld [vmem:[#allocation2 + $0x38] sm:$0xff]
        %v287 = vld [vmem:[#allocation2 + $0x48] sm:$0xff]
        %v288 = vld [vmem:[#allocation2 + $0x50] sm:$0xff]
        %v289 = vld [vmem:[#allocation2 + $0x60] sm:$0xff]
        %v290 = vld [vmem:[#allocation2 + $0x68] sm:$0xff]
        %v291 = vld [vmem:[#allocation2 + $0x78] sm:$0xff]
        %v292 = vld [vmem:[#allocation2 + $0x80] sm:$0xff]
        %v293 = vld [vmem:[#allocation2 + $0x90] sm:$0xff]
        %v294 = vld [vmem:[#allocation2 + $0x98] sm:$0xff]
        %v295 = vld [vmem:[#allocation2 + $0xa8] sm:$0xff]
        %v296 = vld [vmem:[#allocation2 + $0xb0] sm:$0xff]
        %v297 = vld [vmem:[#allocation2 + $0xc0] sm:$0xff]
        %v298 = vld [vmem:[#allocation2 + $0xc8] sm:$0xff]
        %v299 = vld [vmem:[#allocation2 + $0xd8] sm:$0xff]
        %v300 = vld [vmem:[#allocation2 + $0xe0] sm:$0xff]
        %v301 = vld [vmem:[#allocation2 + $0xf0] sm:$0xff]
        %v302 = vld [vmem:[#allocation2 + $0xf8] sm:$0xff]
        %v303 = vld [vmem:[#allocation2 + $0x108] sm:$0xff]
        %v304 = vld [vmem:[#allocation2 + $0x110] sm:$0xff]
        %v305 = vld [vmem:[#allocation2 + $0x120] sm:$0xff]
        %v306 = vld [vmem:[#allocation2 + $0x128] sm:$0xff]
        %v307 = vld [vmem:[#allocation2 + $0x138] sm:$0xff]
        %v308 = vld [vmem:[#allocation2 + $0x140] sm:$0xff]
        %v309 = vld [vmem:[#allocation2 + $0x150] sm:$0xff]
        %v310 = vld [vmem:[#allocation2 + $0x158] sm:$0xff]
        %v311 = vld [vmem:[#allocation2 + $0x168] sm:$0xff]
        %v312 = vld [vmem:[#allocation2 + $0x170] sm:$0xff]
        %313 = vst.msk [vmem:[#allocation3] sm:$0xff] %vm169, %v281
        %314 = vst.msk [vmem:[#allocation3 + $0x8] sm:$0xff] %vm169, %v282
        %315 = vst.msk [vmem:[#allocation3 + $0x10] sm:$0xff] %vm169, %v283
        %316 = vst.msk [vmem:[#allocation3 + $0x18] sm:$0xff] %vm169, %v284
        %317 = vst.msk [vmem:[#allocation3 + $0x20] sm:$0xff] %vm169, %v285
        %318 = vst.msk [vmem:[#allocation3 + $0x28] sm:$0xff] %vm169, %v286
        %319 = vst.msk [vmem:[#allocation3 + $0x30] sm:$0xff] %vm169, %v287
        %320 = vst.msk [vmem:[#allocation3 + $0x38] sm:$0xff] %vm169, %v288
        %321 = vst.msk [vmem:[#allocation3 + $0x40] sm:$0xff] %vm169, %v289
        %322 = vst.msk [vmem:[#allocation3 + $0x48] sm:$0xff] %vm169, %v290
        %323 = vst.msk [vmem:[#allocation3 + $0x50] sm:$0xff] %vm169, %v291
        %324 = vst.msk [vmem:[#allocation3 + $0x58] sm:$0xff] %vm169, %v292
        %325 = vst.msk [vmem:[#allocation3 + $0x60] sm:$0xff] %vm169, %v293
        %326 = vst.msk [vmem:[#allocation3 + $0x68] sm:$0xff] %vm169, %v294
        %327 = vst.msk [vmem:[#allocation3 + $0x70] sm:$0xff] %vm169, %v295
        %328 = vst.msk [vmem:[#allocation3 + $0x78] sm:$0xff] %vm169, %v296
        %329 = vst.msk [vmem:[#allocation3 + $0x80] sm:$0xff] %vm169, %v297
        %330 = vst.msk [vmem:[#allocation3 + $0x88] sm:$0xff] %vm169, %v298
        %331 = vst.msk [vmem:[#allocation3 + $0x90] sm:$0xff] %vm169, %v299
        %332 = vst.msk [vmem:[#allocation3 + $0x98] sm:$0xff] %vm169, %v300
        %333 = vst.msk [vmem:[#allocation3 + $0xa0] sm:$0xff] %vm169, %v301
        %334 = vst.msk [vmem:[#allocation3 + $0xa8] sm:$0xff] %vm169, %v302
        %335 = vst.msk [vmem:[#allocation3 + $0xb0] sm:$0xff] %vm169, %v303
        %336 = vst.msk [vmem:[#allocation3 + $0xb8] sm:$0xff] %vm169, %v304
        %337 = vst.msk [vmem:[#allocation3 + $0xc0] sm:$0xff] %vm169, %v305
        %338 = vst.msk [vmem:[#allocation3 + $0xc8] sm:$0xff] %vm169, %v306
        %339 = vst.msk [vmem:[#allocation3 + $0xd0] sm:$0xff] %vm169, %v307
        %340 = vst.msk [vmem:[#allocation3 + $0xd8] sm:$0xff] %vm169, %v308
        %341 = vst.msk [vmem:[#allocation3 + $0xe0] sm:$0xff] %vm169, %v309
        %342 = vst.msk [vmem:[#allocation3 + $0xe8] sm:$0xff] %vm169, %v310
        %343 = vst.msk [vmem:[#allocation3 + $0xf0] sm:$0xff] %vm169, %v311
        %344 = vst.msk [vmem:[#allocation3 + $0xf8] sm:$0xff] %vm169, %v312
        %v345 = vld [vmem:[#allocation2 + $0x1] sm:$0xff]
        %v346 = vld [vmem:[#allocation2 + $0x9] sm:$0xff]
        %v347 = vld [vmem:[#allocation2 + $0x19] sm:$0xff]
        %v348 = vld [vmem:[#allocation2 + $0x21] sm:$0xff]
        %v349 = vld [vmem:[#allocation2 + $0x31] sm:$0xff]
        %v350 = vld [vmem:[#allocation2 + $0x39] sm:$0xff]
        %v351 = vld [vmem:[#allocation2 + $0x49] sm:$0xff]
        %v352 = vld [vmem:[#allocation2 + $0x51] sm:$0xff]
        %v353 = vld [vmem:[#allocation2 + $0x61] sm:$0xff]
        %v354 = vld [vmem:[#allocation2 + $0x69] sm:$0xff]
        %v355 = vld [vmem:[#allocation2 + $0x79] sm:$0xff]
        %v356 = vld [vmem:[#allocation2 + $0x81] sm:$0xff]
        %v357 = vld [vmem:[#allocation2 + $0x91] sm:$0xff]
        %v358 = vld [vmem:[#allocation2 + $0x99] sm:$0xff]
        %v359 = vld [vmem:[#allocation2 + $0xa9] sm:$0xff]
        %v360 = vld [vmem:[#allocation2 + $0xb1] sm:$0xff]
        %v361 = vld [vmem:[#allocation2 + $0xc1] sm:$0xff]
        %v362 = vld [vmem:[#allocation2 + $0xc9] sm:$0xff]
        %v363 = vld [vmem:[#allocation2 + $0xd9] sm:$0xff]
        %v364 = vld [vmem:[#allocation2 + $0xe1] sm:$0xff]
        %v365 = vld [vmem:[#allocation2 + $0xf1] sm:$0xff]
        %v366 = vld [vmem:[#allocation2 + $0xf9] sm:$0xff]
        %v367 = vld [vmem:[#allocation2 + $0x109] sm:$0xff]
        %v368 = vld [vmem:[#allocation2 + $0x111] sm:$0xff]
        %v369 = vld [vmem:[#allocation2 + $0x121] sm:$0xff]
        %v370 = vld [vmem:[#allocation2 + $0x129] sm:$0xff]
        %v371 = vld [vmem:[#allocation2 + $0x139] sm:$0xff]
        %v372 = vld [vmem:[#allocation2 + $0x141] sm:$0xff]
        %v373 = vld [vmem:[#allocation2 + $0x151] sm:$0xff]
        %v374 = vld [vmem:[#allocation2 + $0x159] sm:$0xff]
        %v375 = vld [vmem:[#allocation2 + $0x169] sm:$0xff]
        %v376 = vld [vmem:[#allocation2 + $0x171] sm:$0xff]
        %409 = vrot.lane.b32.xlu0 %v345, 4
        %v410 = vpop.permute.xlu0 %409
        %411 = vrot.lane.b32.xlu0 %v346, 4
        %v412 = vpop.permute.xlu0 %411
        %413 = vrot.lane.b32.xlu0 %v347, 4
        %v414 = vpop.permute.xlu0 %413
        %415 = vrot.lane.b32.xlu0 %v348, 4
        %v416 = vpop.permute.xlu0 %415
        %417 = vrot.lane.b32.xlu0 %v349, 4
        %v418 = vpop.permute.xlu0 %417
        %419 = vrot.lane.b32.xlu0 %v350, 4
        %v420 = vpop.permute.xlu0 %419
        %421 = vrot.lane.b32.xlu0 %v351, 4
        %v422 = vpop.permute.xlu0 %421
        %423 = vrot.lane.b32.xlu0 %v352, 4
        %v424 = vpop.permute.xlu0 %423
        %425 = vrot.lane.b32.xlu0 %v353, 4
        %v426 = vpop.permute.xlu0 %425
        %427 = vrot.lane.b32.xlu0 %v354, 4
        %v428 = vpop.permute.xlu0 %427
        %429 = vrot.lane.b32.xlu0 %v355, 4
        %v430 = vpop.permute.xlu0 %429
        %431 = vrot.lane.b32.xlu0 %v356, 4
        %v432 = vpop.permute.xlu0 %431
        %433 = vrot.lane.b32.xlu0 %v357, 4
        %v434 = vpop.permute.xlu0 %433
        %435 = vrot.lane.b32.xlu0 %v358, 4
        %v436 = vpop.permute.xlu0 %435
        %437 = vrot.lane.b32.xlu0 %v359, 4
        %v438 = vpop.permute.xlu0 %437
        %439 = vrot.lane.b32.xlu0 %v360, 4
        %v440 = vpop.permute.xlu0 %439
        %441 = vrot.lane.b32.xlu0 %v361, 4
        %v442 = vpop.permute.xlu0 %441
        %443 = vrot.lane.b32.xlu0 %v362, 4
        %v444 = vpop.permute.xlu0 %443
        %445 = vrot.lane.b32.xlu0 %v363, 4
        %v446 = vpop.permute.xlu0 %445
        %447 = vrot.lane.b32.xlu0 %v364, 4
        %v448 = vpop.permute.xlu0 %447
        %449 = vrot.lane.b32.xlu0 %v365, 4
        %v450 = vpop.permute.xlu0 %449
        %451 = vrot.lane.b32.xlu0 %v366, 4
        %v452 = vpop.permute.xlu0 %451
        %453 = vrot.lane.b32.xlu0 %v367, 4
        %v454 = vpop.permute.xlu0 %453
        %455 = vrot.lane.b32.xlu0 %v368, 4
        %v456 = vpop.permute.xlu0 %455
        %457 = vrot.lane.b32.xlu0 %v369, 4
        %v458 = vpop.permute.xlu0 %457
        %459 = vrot.lane.b32.xlu0 %v370, 4
        %v460 = vpop.permute.xlu0 %459
        %461 = vrot.lane.b32.xlu0 %v371, 4
        %v462 = vpop.permute.xlu0 %461
        %463 = vrot.lane.b32.xlu0 %v372, 4
        %v464 = vpop.permute.xlu0 %463
        %465 = vrot.lane.b32.xlu0 %v373, 4
        %v466 = vpop.permute.xlu0 %465
        %467 = vrot.lane.b32.xlu0 %v374, 4
        %v468 = vpop.permute.xlu0 %467
        %469 = vrot.lane.b32.xlu0 %v375, 4
        %v470 = vpop.permute.xlu0 %469
        %471 = vrot.lane.b32.xlu0 %v376, 4
        %v472 = vpop.permute.xlu0 %471
        %vm505 = vcmask 64544
        %506 = vst.msk [vmem:[#allocation3] sm:$0xff] %vm505, %v410
        %507 = vst.msk [vmem:[#allocation3 + $0x8] sm:$0xff] %vm505, %v412
        %508 = vst.msk [vmem:[#allocation3 + $0x10] sm:$0xff] %vm505, %v414
        %509 = vst.msk [vmem:[#allocation3 + $0x18] sm:$0xff] %vm505, %v416
        %510 = vst.msk [vmem:[#allocation3 + $0x20] sm:$0xff] %vm505, %v418
        %511 = vst.msk [vmem:[#allocation3 + $0x28] sm:$0xff] %vm505, %v420
        %512 = vst.msk [vmem:[#allocation3 + $0x30] sm:$0xff] %vm505, %v422
        %513 = vst.msk [vmem:[#allocation3 + $0x38] sm:$0xff] %vm505, %v424
        %514 = vst.msk [vmem:[#allocation3 + $0x40] sm:$0xff] %vm505, %v426
        %515 = vst.msk [vmem:[#allocation3 + $0x48] sm:$0xff] %vm505, %v428
        %516 = vst.msk [vmem:[#allocation3 + $0x50] sm:$0xff] %vm505, %v430
        %517 = vst.msk [vmem:[#allocation3 + $0x58] sm:$0xff] %vm505, %v432
        %518 = vst.msk [vmem:[#allocation3 + $0x60] sm:$0xff] %vm505, %v434
        %519 = vst.msk [vmem:[#allocation3 + $0x68] sm:$0xff] %vm505, %v436
        %520 = vst.msk [vmem:[#allocation3 + $0x70] sm:$0xff] %vm505, %v438
        %521 = vst.msk [vmem:[#allocation3 + $0x78] sm:$0xff] %vm505, %v440
        %522 = vst.msk [vmem:[#allocation3 + $0x80] sm:$0xff] %vm505, %v442
        %523 = vst.msk [vmem:[#allocation3 + $0x88] sm:$0xff] %vm505, %v444
        %524 = vst.msk [vmem:[#allocation3 + $0x90] sm:$0xff] %vm505, %v446
        %525 = vst.msk [vmem:[#allocation3 + $0x98] sm:$0xff] %vm505, %v448
        %526 = vst.msk [vmem:[#allocation3 + $0xa0] sm:$0xff] %vm505, %v450
        %527 = vst.msk [vmem:[#allocation3 + $0xa8] sm:$0xff] %vm505, %v452
        %528 = vst.msk [vmem:[#allocation3 + $0xb0] sm:$0xff] %vm505, %v454
        %529 = vst.msk [vmem:[#allocation3 + $0xb8] sm:$0xff] %vm505, %v456
        %530 = vst.msk [vmem:[#allocation3 + $0xc0] sm:$0xff] %vm505, %v458
        %531 = vst.msk [vmem:[#allocation3 + $0xc8] sm:$0xff] %vm505, %v460
        %532 = vst.msk [vmem:[#allocation3 + $0xd0] sm:$0xff] %vm505, %v462
        %533 = vst.msk [vmem:[#allocation3 + $0xd8] sm:$0xff] %vm505, %v464
        %534 = vst.msk [vmem:[#allocation3 + $0xe0] sm:$0xff] %vm505, %v466
        %535 = vst.msk [vmem:[#allocation3 + $0xe8] sm:$0xff] %vm505, %v468
        %536 = vst.msk [vmem:[#allocation3 + $0xf0] sm:$0xff] %vm505, %v470
        %537 = vst.msk [vmem:[#allocation3 + $0xf8] sm:$0xff] %vm505, %v472
        %v538 = vld [vmem:[#allocation2 + $0x2] sm:$0xff]
        %v539 = vld [vmem:[#allocation2 + $0xa] sm:$0xff]
        %v540 = vld [vmem:[#allocation2 + $0x1a] sm:$0xff]
        %v541 = vld [vmem:[#allocation2 + $0x22] sm:$0xff]
        %v542 = vld [vmem:[#allocation2 + $0x32] sm:$0xff]
        %v543 = vld [vmem:[#allocation2 + $0x3a] sm:$0xff]
        %v544 = vld [vmem:[#allocation2 + $0x4a] sm:$0xff]
        %v545 = vld [vmem:[#allocation2 + $0x52] sm:$0xff]
        %v546 = vld [vmem:[#allocation2 + $0x62] sm:$0xff]
        %v547 = vld [vmem:[#allocation2 + $0x6a] sm:$0xff]
        %v548 = vld [vmem:[#allocation2 + $0x7a] sm:$0xff]
        %v549 = vld [vmem:[#allocation2 + $0x82] sm:$0xff]
        %v550 = vld [vmem:[#allocation2 + $0x92] sm:$0xff]
        %v551 = vld [vmem:[#allocation2 + $0x9a] sm:$0xff]
        %v552 = vld [vmem:[#allocation2 + $0xaa] sm:$0xff]
        %v553 = vld [vmem:[#allocation2 + $0xb2] sm:$0xff]
        %v554 = vld [vmem:[#allocation2 + $0xc2] sm:$0xff]
        %v555 = vld [vmem:[#allocation2 + $0xca] sm:$0xff]
        %v556 = vld [vmem:[#allocation2 + $0xda] sm:$0xff]
        %v557 = vld [vmem:[#allocation2 + $0xe2] sm:$0xff]
        %v558 = vld [vmem:[#allocation2 + $0xf2] sm:$0xff]
        %v559 = vld [vmem:[#allocation2 + $0xfa] sm:$0xff]
        %v560 = vld [vmem:[#allocation2 + $0x10a] sm:$0xff]
        %v561 = vld [vmem:[#allocation2 + $0x112] sm:$0xff]
        %v562 = vld [vmem:[#allocation2 + $0x122] sm:$0xff]
        %v563 = vld [vmem:[#allocation2 + $0x12a] sm:$0xff]
        %v564 = vld [vmem:[#allocation2 + $0x13a] sm:$0xff]
        %v565 = vld [vmem:[#allocation2 + $0x142] sm:$0xff]
        %v566 = vld [vmem:[#allocation2 + $0x152] sm:$0xff]
        %v567 = vld [vmem:[#allocation2 + $0x15a] sm:$0xff]
        %v568 = vld [vmem:[#allocation2 + $0x16a] sm:$0xff]
        %v569 = vld [vmem:[#allocation2 + $0x172] sm:$0xff]
        %602 = vrot.lane.b32.xlu0 %v538, 8
        %v603 = vpop.permute.xlu0 %602
        %604 = vrot.lane.b32.xlu0 %v539, 8
        %v605 = vpop.permute.xlu0 %604
        %606 = vrot.lane.b32.xlu0 %v540, 8
        %v607 = vpop.permute.xlu0 %606
        %608 = vrot.lane.b32.xlu0 %v541, 8
        %v609 = vpop.permute.xlu0 %608
        %610 = vrot.lane.b32.xlu0 %v542, 8
        %v611 = vpop.permute.xlu0 %610
        %612 = vrot.lane.b32.xlu0 %v543, 8
        %v613 = vpop.permute.xlu0 %612
        %614 = vrot.lane.b32.xlu0 %v544, 8
        %v615 = vpop.permute.xlu0 %614
        %616 = vrot.lane.b32.xlu0 %v545, 8
        %v617 = vpop.permute.xlu0 %616
        %618 = vrot.lane.b32.xlu0 %v546, 8
        %v619 = vpop.permute.xlu0 %618
        %620 = vrot.lane.b32.xlu0 %v547, 8
        %v621 = vpop.permute.xlu0 %620
        %622 = vrot.lane.b32.xlu0 %v548, 8
        %v623 = vpop.permute.xlu0 %622
        %624 = vrot.lane.b32.xlu0 %v549, 8
        %v625 = vpop.permute.xlu0 %624
        %626 = vrot.lane.b32.xlu0 %v550, 8
        %v627 = vpop.permute.xlu0 %626
        %628 = vrot.lane.b32.xlu0 %v551, 8
        %v629 = vpop.permute.xlu0 %628
        %630 = vrot.lane.b32.xlu0 %v552, 8
        %v631 = vpop.permute.xlu0 %630
        %632 = vrot.lane.b32.xlu0 %v553, 8
        %v633 = vpop.permute.xlu0 %632
        %634 = vrot.lane.b32.xlu0 %v554, 8
        %v635 = vpop.permute.xlu0 %634
        %636 = vrot.lane.b32.xlu0 %v555, 8
        %v637 = vpop.permute.xlu0 %636
        %638 = vrot.lane.b32.xlu0 %v556, 8
        %v639 = vpop.permute.xlu0 %638
        %640 = vrot.lane.b32.xlu0 %v557, 8
        %v641 = vpop.permute.xlu0 %640
        %642 = vrot.lane.b32.xlu0 %v558, 8
        %v643 = vpop.permute.xlu0 %642
        %644 = vrot.lane.b32.xlu0 %v559, 8
        %v645 = vpop.permute.xlu0 %644
        %646 = vrot.lane.b32.xlu0 %v560, 8
        %v647 = vpop.permute.xlu0 %646
        %648 = vrot.lane.b32.xlu0 %v561, 8
        %v649 = vpop.permute.xlu0 %648
        %650 = vrot.lane.b32.xlu0 %v562, 8
        %v651 = vpop.permute.xlu0 %650
        %652 = vrot.lane.b32.xlu0 %v563, 8
        %v653 = vpop.permute.xlu0 %652
        %654 = vrot.lane.b32.xlu0 %v564, 8
        %v655 = vpop.permute.xlu0 %654
        %656 = vrot.lane.b32.xlu0 %v565, 8
        %v657 = vpop.permute.xlu0 %656
        %658 = vrot.lane.b32.xlu0 %v566, 8
        %v659 = vpop.permute.xlu0 %658
        %660 = vrot.lane.b32.xlu0 %v567, 8
        %v661 = vpop.permute.xlu0 %660
        %662 = vrot.lane.b32.xlu0 %v568, 8
        %v663 = vpop.permute.xlu0 %662
        %664 = vrot.lane.b32.xlu0 %v569, 8
        %v665 = vpop.permute.xlu0 %664
        %vm698 = vcmask 97344
        %699 = vst.msk [vmem:[#allocation3] sm:$0xff] %vm698, %v603
        %700 = vst.msk [vmem:[#allocation3 + $0x8] sm:$0xff] %vm698, %v605
        %701 = vst.msk [vmem:[#allocation3 + $0x10] sm:$0xff] %vm698, %v607
        %702 = vst.msk [vmem:[#allocation3 + $0x18] sm:$0xff] %vm698, %v609
        %703 = vst.msk [vmem:[#allocation3 + $0x20] sm:$0xff] %vm698, %v611
        %704 = vst.msk [vmem:[#allocation3 + $0x28] sm:$0xff] %vm698, %v613
        %705 = vst.msk [vmem:[#allocation3 + $0x30] sm:$0xff] %vm698, %v615
        %706 = vst.msk [vmem:[#allocation3 + $0x38] sm:$0xff] %vm698, %v617
        %707 = vst.msk [vmem:[#allocation3 + $0x40] sm:$0xff] %vm698, %v619
        %708 = vst.msk [vmem:[#allocation3 + $0x48] sm:$0xff] %vm698, %v621
        %709 = vst.msk [vmem:[#allocation3 + $0x50] sm:$0xff] %vm698, %v623
        %710 = vst.msk [vmem:[#allocation3 + $0x58] sm:$0xff] %vm698, %v625
        %711 = vst.msk [vmem:[#allocation3 + $0x60] sm:$0xff] %vm698, %v627
        %712 = vst.msk [vmem:[#allocation3 + $0x68] sm:$0xff] %vm698, %v629
        %713 = vst.msk [vmem:[#allocation3 + $0x70] sm:$0xff] %vm698, %v631
        %714 = vst.msk [vmem:[#allocation3 + $0x78] sm:$0xff] %vm698, %v633
        %715 = vst.msk [vmem:[#allocation3 + $0x80] sm:$0xff] %vm698, %v635
        %716 = vst.msk [vmem:[#allocation3 + $0x88] sm:$0xff] %vm698, %v637
        %717 = vst.msk [vmem:[#allocation3 + $0x90] sm:$0xff] %vm698, %v639
        %718 = vst.msk [vmem:[#allocation3 + $0x98] sm:$0xff] %vm698, %v641
        %719 = vst.msk [vmem:[#allocation3 + $0xa0] sm:$0xff] %vm698, %v643
        %720 = vst.msk [vmem:[#allocation3 + $0xa8] sm:$0xff] %vm698, %v645
        %721 = vst.msk [vmem:[#allocation3 + $0xb0] sm:$0xff] %vm698, %v647
        %722 = vst.msk [vmem:[#allocation3 + $0xb8] sm:$0xff] %vm698, %v649
        %723 = vst.msk [vmem:[#allocation3 + $0xc0] sm:$0xff] %vm698, %v651
        %724 = vst.msk [vmem:[#allocation3 + $0xc8] sm:$0xff] %vm698, %v653
        %725 = vst.msk [vmem:[#allocation3 + $0xd0] sm:$0xff] %vm698, %v655
        %726 = vst.msk [vmem:[#allocation3 + $0xd8] sm:$0xff] %vm698, %v657
        %727 = vst.msk [vmem:[#allocation3 + $0xe0] sm:$0xff] %vm698, %v659
        %728 = vst.msk [vmem:[#allocation3 + $0xe8] sm:$0xff] %vm698, %v661
        %729 = vst.msk [vmem:[#allocation3 + $0xf0] sm:$0xff] %vm698, %v663
        %730 = vst.msk [vmem:[#allocation3 + $0xf8] sm:$0xff] %vm698, %v665
        %v731 = vld [vmem:[%s247] sm:$0xff]
        %v732 = vld [vmem:[%s247 + $0x8] sm:$0xff]
        %v733 = vld [vmem:[%s247 + $0x18] sm:$0xff]
        %v734 = vld [vmem:[%s247 + $0x20] sm:$0xff]
        %v735 = vld [vmem:[%s247 + $0x30] sm:$0xff]
        %v736 = vld [vmem:[%s247 + $0x38] sm:$0xff]
        %v737 = vld [vmem:[%s247 + $0x48] sm:$0xff]
        %v738 = vld [vmem:[%s247 + $0x50] sm:$0xff]
        %v739 = vld [vmem:[%s247 + $0x60] sm:$0xff]
        %v740 = vld [vmem:[%s247 + $0x68] sm:$0xff]
        %v741 = vld [vmem:[%s247 + $0x78] sm:$0xff]
        %v742 = vld [vmem:[%s247 + $0x80] sm:$0xff]
        %v743 = vld [vmem:[%s247 + $0x90] sm:$0xff]
        %v744 = vld [vmem:[%s247 + $0x98] sm:$0xff]
        %v745 = vld [vmem:[%s247 + $0xa8] sm:$0xff]
        %v746 = vld [vmem:[%s247 + $0xb0] sm:$0xff]
        %v747 = vld [vmem:[%s247 + $0xc0] sm:$0xff]
        %v748 = vld [vmem:[%s247 + $0xc8] sm:$0xff]
        %v749 = vld [vmem:[%s247 + $0xd8] sm:$0xff]
        %v750 = vld [vmem:[%s247 + $0xe0] sm:$0xff]
        %v751 = vld [vmem:[%s247 + $0xf0] sm:$0xff]
        %v752 = vld [vmem:[%s247 + $0xf8] sm:$0xff]
        %v753 = vld [vmem:[%s247 + $0x108] sm:$0xff]
        %v754 = vld [vmem:[%s247 + $0x110] sm:$0xff]
        %v755 = vld [vmem:[%s247 + $0x120] sm:$0xff]
        %v756 = vld [vmem:[%s247 + $0x128] sm:$0xff]
        %v757 = vld [vmem:[%s247 + $0x138] sm:$0xff]
        %v758 = vld [vmem:[%s247 + $0x140] sm:$0xff]
        %v759 = vld [vmem:[%s247 + $0x150] sm:$0xff]
        %v760 = vld [vmem:[%s247 + $0x158] sm:$0xff]
        %v761 = vld [vmem:[%s247 + $0x168] sm:$0xff]
        %v762 = vld [vmem:[%s247 + $0x170] sm:$0xff]
        %795 = vrot.lane.b32.xlu0 %v731, 12
        %v796 = vpop.permute.xlu0 %795
        %797 = vrot.lane.b32.xlu0 %v732, 12
        %v798 = vpop.permute.xlu0 %797
        %799 = vrot.lane.b32.xlu0 %v733, 12
        %v800 = vpop.permute.xlu0 %799
        %801 = vrot.lane.b32.xlu0 %v734, 12
        %v802 = vpop.permute.xlu0 %801
        %803 = vrot.lane.b32.xlu0 %v735, 12
        %v804 = vpop.permute.xlu0 %803
        %805 = vrot.lane.b32.xlu0 %v736, 12
        %v806 = vpop.permute.xlu0 %805
        %807 = vrot.lane.b32.xlu0 %v737, 12
        %v808 = vpop.permute.xlu0 %807
        %809 = vrot.lane.b32.xlu0 %v738, 12
        %v810 = vpop.permute.xlu0 %809
        %811 = vrot.lane.b32.xlu0 %v739, 12
        %v812 = vpop.permute.xlu0 %811
        %813 = vrot.lane.b32.xlu0 %v740, 12
        %v814 = vpop.permute.xlu0 %813
        %815 = vrot.lane.b32.xlu0 %v741, 12
        %v816 = vpop.permute.xlu0 %815
        %817 = vrot.lane.b32.xlu0 %v742, 12
        %v818 = vpop.permute.xlu0 %817
        %819 = vrot.lane.b32.xlu0 %v743, 12
        %v820 = vpop.permute.xlu0 %819
        %821 = vrot.lane.b32.xlu0 %v744, 12
        %v822 = vpop.permute.xlu0 %821
        %823 = vrot.lane.b32.xlu0 %v745, 12
        %v824 = vpop.permute.xlu0 %823
        %825 = vrot.lane.b32.xlu0 %v746, 12
        %v826 = vpop.permute.xlu0 %825
        %827 = vrot.lane.b32.xlu0 %v747, 12
        %v828 = vpop.permute.xlu0 %827
        %829 = vrot.lane.b32.xlu0 %v748, 12
        %v830 = vpop.permute.xlu0 %829
        %831 = vrot.lane.b32.xlu0 %v749, 12
        %v832 = vpop.permute.xlu0 %831
        %833 = vrot.lane.b32.xlu0 %v750, 12
        %v834 = vpop.permute.xlu0 %833
        %835 = vrot.lane.b32.xlu0 %v751, 12
        %v836 = vpop.permute.xlu0 %835
        %837 = vrot.lane.b32.xlu0 %v752, 12
        %v838 = vpop.permute.xlu0 %837
        %839 = vrot.lane.b32.xlu0 %v753, 12
        %v840 = vpop.permute.xlu0 %839
        %841 = vrot.lane.b32.xlu0 %v754, 12
        %v842 = vpop.permute.xlu0 %841
        %843 = vrot.lane.b32.xlu0 %v755, 12
        %v844 = vpop.permute.xlu0 %843
        %845 = vrot.lane.b32.xlu0 %v756, 12
        %v846 = vpop.permute.xlu0 %845
        %847 = vrot.lane.b32.xlu0 %v757, 12
        %v848 = vpop.permute.xlu0 %847
        %849 = vrot.lane.b32.xlu0 %v758, 12
        %v850 = vpop.permute.xlu0 %849
        %851 = vrot.lane.b32.xlu0 %v759, 12
        %v852 = vpop.permute.xlu0 %851
        %853 = vrot.lane.b32.xlu0 %v760, 12
        %v854 = vpop.permute.xlu0 %853
        %855 = vrot.lane.b32.xlu0 %v761, 12
        %v856 = vpop.permute.xlu0 %855
        %857 = vrot.lane.b32.xlu0 %v762, 12
        %v858 = vpop.permute.xlu0 %857
        %vm891 = vcmask 130144
        %892 = vst.msk [vmem:[#allocation3] sm:$0xff] %vm891, %v796
        %893 = vst.msk [vmem:[#allocation3 + $0x8] sm:$0xff] %vm891, %v798
        %894 = vst.msk [vmem:[#allocation3 + $0x10] sm:$0xff] %vm891, %v800
        %895 = vst.msk [vmem:[#allocation3 + $0x18] sm:$0xff] %vm891, %v802
        %896 = vst.msk [vmem:[#allocation3 + $0x20] sm:$0xff] %vm891, %v804
        %897 = vst.msk [vmem:[#allocation3 + $0x28] sm:$0xff] %vm891, %v806
        %898 = vst.msk [vmem:[#allocation3 + $0x30] sm:$0xff] %vm891, %v808
        %899 = vst.msk [vmem:[#allocation3 + $0x38] sm:$0xff] %vm891, %v810
        %900 = vst.msk [vmem:[#allocation3 + $0x40] sm:$0xff] %vm891, %v812
        %901 = vst.msk [vmem:[#allocation3 + $0x48] sm:$0xff] %vm891, %v814
        %902 = vst.msk [vmem:[#allocation3 + $0x50] sm:$0xff] %vm891, %v816
        %903 = vst.msk [vmem:[#allocation3 + $0x58] sm:$0xff] %vm891, %v818
        %904 = vst.msk [vmem:[#allocation3 + $0x60] sm:$0xff] %vm891, %v820
        %905 = vst.msk [vmem:[#allocation3 + $0x68] sm:$0xff] %vm891, %v822
        %906 = vst.msk [vmem:[#allocation3 + $0x70] sm:$0xff] %vm891, %v824
        %907 = vst.msk [vmem:[#allocation3 + $0x78] sm:$0xff] %vm891, %v826
        %908 = vst.msk [vmem:[#allocation3 + $0x80] sm:$0xff] %vm891, %v828
        %909 = vst.msk [vmem:[#allocation3 + $0x88] sm:$0xff] %vm891, %v830
        %910 = vst.msk [vmem:[#allocation3 + $0x90] sm:$0xff] %vm891, %v832
        %911 = vst.msk [vmem:[#allocation3 + $0x98] sm:$0xff] %vm891, %v834
        %912 = vst.msk [vmem:[#allocation3 + $0xa0] sm:$0xff] %vm891, %v836
        %913 = vst.msk [vmem:[#allocation3 + $0xa8] sm:$0xff] %vm891, %v838
        %914 = vst.msk [vmem:[#allocation3 + $0xb0] sm:$0xff] %vm891, %v840
        %915 = vst.msk [vmem:[#allocation3 + $0xb8] sm:$0xff] %vm891, %v842
        %916 = vst.msk [vmem:[#allocation3 + $0xc0] sm:$0xff] %vm891, %v844
        %917 = vst.msk [vmem:[#allocation3 + $0xc8] sm:$0xff] %vm891, %v846
        %918 = vst.msk [vmem:[#allocation3 + $0xd0] sm:$0xff] %vm891, %v848
        %919 = vst.msk [vmem:[#allocation3 + $0xd8] sm:$0xff] %vm891, %v850
        %920 = vst.msk [vmem:[#allocation3 + $0xe0] sm:$0xff] %vm891, %v852
        %921 = vst.msk [vmem:[#allocation3 + $0xe8] sm:$0xff] %vm891, %v854
        %922 = vst.msk [vmem:[#allocation3 + $0xf0] sm:$0xff] %vm891, %v856
        %923 = vst.msk [vmem:[#allocation3 + $0xf8] sm:$0xff] %vm891, %v858
        %v924 = vld [vmem:[%s247 + $0x1] sm:$0xff]
        %v925 = vld [vmem:[%s247 + $0x9] sm:$0xff]
        %v926 = vld [vmem:[%s247 + $0x19] sm:$0xff]
        %v927 = vld [vmem:[%s247 + $0x21] sm:$0xff]
        %v928 = vld [vmem:[%s247 + $0x31] sm:$0xff]
        %v929 = vld [vmem:[%s247 + $0x39] sm:$0xff]
        %v930 = vld [vmem:[%s247 + $0x49] sm:$0xff]
        %v931 = vld [vmem:[%s247 + $0x51] sm:$0xff]
        %v932 = vld [vmem:[%s247 + $0x61] sm:$0xff]
        %v933 = vld [vmem:[%s247 + $0x69] sm:$0xff]
        %v934 = vld [vmem:[%s247 + $0x79] sm:$0xff]
        %v935 = vld [vmem:[%s247 + $0x81] sm:$0xff]
        %v936 = vld [vmem:[%s247 + $0x91] sm:$0xff]
        %v937 = vld [vmem:[%s247 + $0x99] sm:$0xff]
        %v938 = vld [vmem:[%s247 + $0xa9] sm:$0xff]
        %v939 = vld [vmem:[%s247 + $0xb1] sm:$0xff]
        %v940 = vld [vmem:[%s247 + $0xc1] sm:$0xff]
        %v941 = vld [vmem:[%s247 + $0xc9] sm:$0xff]
        %v942 = vld [vmem:[%s247 + $0xd9] sm:$0xff]
        %v943 = vld [vmem:[%s247 + $0xe1] sm:$0xff]
        %v944 = vld [vmem:[%s247 + $0xf1] sm:$0xff]
        %v945 = vld [vmem:[%s247 + $0xf9] sm:$0xff]
        %v946 = vld [vmem:[%s247 + $0x109] sm:$0xff]
        %v947 = vld [vmem:[%s247 + $0x111] sm:$0xff]
        %v948 = vld [vmem:[%s247 + $0x121] sm:$0xff]
        %v949 = vld [vmem:[%s247 + $0x129] sm:$0xff]
        %v950 = vld [vmem:[%s247 + $0x139] sm:$0xff]
        %v951 = vld [vmem:[%s247 + $0x141] sm:$0xff]
        %v952 = vld [vmem:[%s247 + $0x151] sm:$0xff]
        %v953 = vld [vmem:[%s247 + $0x159] sm:$0xff]
        %v954 = vld [vmem:[%s247 + $0x169] sm:$0xff]
        %v955 = vld [vmem:[%s247 + $0x171] sm:$0xff]
        %988 = vrot.lane.b32.xlu0 %v924, 16
        %v989 = vpop.permute.xlu0 %988
        %990 = vrot.lane.b32.xlu0 %v925, 16
        %v991 = vpop.permute.xlu0 %990
        %992 = vrot.lane.b32.xlu0 %v926, 16
        %v993 = vpop.permute.xlu0 %992
        %994 = vrot.lane.b32.xlu0 %v927, 16
        %v995 = vpop.permute.xlu0 %994
        %996 = vrot.lane.b32.xlu0 %v928, 16
        %v997 = vpop.permute.xlu0 %996
        %998 = vrot.lane.b32.xlu0 %v929, 16
        %v999 = vpop.permute.xlu0 %998
        %1000 = vrot.lane.b32.xlu0 %v930, 16
        %v1001 = vpop.permute.xlu0 %1000
        %1002 = vrot.lane.b32.xlu0 %v931, 16
        %v1003 = vpop.permute.xlu0 %1002
        %1004 = vrot.lane.b32.xlu0 %v932, 16
        %v1005 = vpop.permute.xlu0 %1004
        %1006 = vrot.lane.b32.xlu0 %v933, 16
        %v1007 = vpop.permute.xlu0 %1006
        %1008 = vrot.lane.b32.xlu0 %v934, 16
        %v1009 = vpop.permute.xlu0 %1008
        %1010 = vrot.lane.b32.xlu0 %v935, 16
        %v1011 = vpop.permute.xlu0 %1010
        %1012 = vrot.lane.b32.xlu0 %v936, 16
        %v1013 = vpop.permute.xlu0 %1012
        %1014 = vrot.lane.b32.xlu0 %v937, 16
        %v1015 = vpop.permute.xlu0 %1014
        %1016 = vrot.lane.b32.xlu0 %v938, 16
        %v1017 = vpop.permute.xlu0 %1016
        %1018 = vrot.lane.b32.xlu0 %v939, 16
        %v1019 = vpop.permute.xlu0 %1018
        %1020 = vrot.lane.b32.xlu0 %v940, 16
        %v1021 = vpop.permute.xlu0 %1020
        %1022 = vrot.lane.b32.xlu0 %v941, 16
        %v1023 = vpop.permute.xlu0 %1022
        %1024 = vrot.lane.b32.xlu0 %v942, 16
        %v1025 = vpop.permute.xlu0 %1024
        %1026 = vrot.lane.b32.xlu0 %v943, 16
        %v1027 = vpop.permute.xlu0 %1026
        %1028 = vrot.lane.b32.xlu0 %v944, 16
        %v1029 = vpop.permute.xlu0 %1028
        %1030 = vrot.lane.b32.xlu0 %v945, 16
        %v1031 = vpop.permute.xlu0 %1030
        %1032 = vrot.lane.b32.xlu0 %v946, 16
        %v1033 = vpop.permute.xlu0 %1032
        %1034 = vrot.lane.b32.xlu0 %v947, 16
        %v1035 = vpop.permute.xlu0 %1034
        %1036 = vrot.lane.b32.xlu0 %v948, 16
        %v1037 = vpop.permute.xlu0 %1036
        %1038 = vrot.lane.b32.xlu0 %v949, 16
        %v1039 = vpop.permute.xlu0 %1038
        %1040 = vrot.lane.b32.xlu0 %v950, 16
        %v1041 = vpop.permute.xlu0 %1040
        %1042 = vrot.lane.b32.xlu0 %v951, 16
        %v1043 = vpop.permute.xlu0 %1042
        %1044 = vrot.lane.b32.xlu0 %v952, 16
        %v1045 = vpop.permute.xlu0 %1044
        %1046 = vrot.lane.b32.xlu0 %v953, 16
        %v1047 = vpop.permute.xlu0 %1046
        %1048 = vrot.lane.b32.xlu0 %v954, 16
        %v1049 = vpop.permute.xlu0 %1048
        %1050 = vrot.lane.b32.xlu0 %v955, 16
        %v1051 = vpop.permute.xlu0 %1050
        %vm1084 = vcmask 162944
        %1085 = vst.msk [vmem:[#allocation3] sm:$0xff] %vm1084, %v989
        %1086 = vst.msk [vmem:[#allocation3 + $0x8] sm:$0xff] %vm1084, %v991
        %1087 = vst.msk [vmem:[#allocation3 + $0x10] sm:$0xff] %vm1084, %v993
        %1088 = vst.msk [vmem:[#allocation3 + $0x18] sm:$0xff] %vm1084, %v995
        %1089 = vst.msk [vmem:[#allocation3 + $0x20] sm:$0xff] %vm1084, %v997
        %1090 = vst.msk [vmem:[#allocation3 + $0x28] sm:$0xff] %vm1084, %v999
        %1091 = vst.msk [vmem:[#allocation3 + $0x30] sm:$0xff] %vm1084, %v1001
        %1092 = vst.msk [vmem:[#allocation3 + $0x38] sm:$0xff] %vm1084, %v1003
        %1093 = vst.msk [vmem:[#allocation3 + $0x40] sm:$0xff] %vm1084, %v1005
        %1094 = vst.msk [vmem:[#allocation3 + $0x48] sm:$0xff] %vm1084, %v1007
        %1095 = vst.msk [vmem:[#allocation3 + $0x50] sm:$0xff] %vm1084, %v1009
        %1096 = vst.msk [vmem:[#allocation3 + $0x58] sm:$0xff] %vm1084, %v1011
        %1097 = vst.msk [vmem:[#allocation3 + $0x60] sm:$0xff] %vm1084, %v1013
        %1098 = vst.msk [vmem:[#allocation3 + $0x68] sm:$0xff] %vm1084, %v1015
        %1099 = vst.msk [vmem:[#allocation3 + $0x70] sm:$0xff] %vm1084, %v1017
        %1100 = vst.msk [vmem:[#allocation3 + $0x78] sm:$0xff] %vm1084, %v1019
        %1101 = vst.msk [vmem:[#allocation3 + $0x80] sm:$0xff] %vm1084, %v1021
        %1102 = vst.msk [vmem:[#allocation3 + $0x88] sm:$0xff] %vm1084, %v1023
        %1103 = vst.msk [vmem:[#allocation3 + $0x90] sm:$0xff] %vm1084, %v1025
        %1104 = vst.msk [vmem:[#allocation3 + $0x98] sm:$0xff] %vm1084, %v1027
        %1105 = vst.msk [vmem:[#allocation3 + $0xa0] sm:$0xff] %vm1084, %v1029
        %1106 = vst.msk [vmem:[#allocation3 + $0xa8] sm:$0xff] %vm1084, %v1031
        %1107 = vst.msk [vmem:[#allocation3 + $0xb0] sm:$0xff] %vm1084, %v1033
        %1108 = vst.msk [vmem:[#allocation3 + $0xb8] sm:$0xff] %vm1084, %v1035
        %1109 = vst.msk [vmem:[#allocation3 + $0xc0] sm:$0xff] %vm1084, %v1037
        %1110 = vst.msk [vmem:[#allocation3 + $0xc8] sm:$0xff] %vm1084, %v1039
        %1111 = vst.msk [vmem:[#allocation3 + $0xd0] sm:$0xff] %vm1084, %v1041
        %1112 = vst.msk [vmem:[#allocation3 + $0xd8] sm:$0xff] %vm1084, %v1043
        %1113 = vst.msk [vmem:[#allocation3 + $0xe0] sm:$0xff] %vm1084, %v1045
        %1114 = vst.msk [vmem:[#allocation3 + $0xe8] sm:$0xff] %vm1084, %v1047
        %1115 = vst.msk [vmem:[#allocation3 + $0xf0] sm:$0xff] %vm1084, %v1049
        %1116 = vst.msk [vmem:[#allocation3 + $0xf8] sm:$0xff] %vm1084, %v1051
        %v1117 = vld [vmem:[%s247 + $0x2] sm:$0xff]
        %v1118 = vld [vmem:[%s247 + $0xa] sm:$0xff]
        %v1119 = vld [vmem:[%s247 + $0x1a] sm:$0xff]
        %v1120 = vld [vmem:[%s247 + $0x22] sm:$0xff]
        %v1121 = vld [vmem:[%s247 + $0x32] sm:$0xff]
        %v1122 = vld [vmem:[%s247 + $0x3a] sm:$0xff]
        %v1123 = vld [vmem:[%s247 + $0x4a] sm:$0xff]
        %v1124 = vld [vmem:[%s247 + $0x52] sm:$0xff]
        %v1125 = vld [vmem:[%s247 + $0x62] sm:$0xff]
        %v1126 = vld [vmem:[%s247 + $0x6a] sm:$0xff]
        %v1127 = vld [vmem:[%s247 + $0x7a] sm:$0xff]
        %v1128 = vld [vmem:[%s247 + $0x82] sm:$0xff]
        %v1129 = vld [vmem:[%s247 + $0x92] sm:$0xff]
        %v1130 = vld [vmem:[%s247 + $0x9a] sm:$0xff]
        %v1131 = vld [vmem:[%s247 + $0xaa] sm:$0xff]
        %v1132 = vld [vmem:[%s247 + $0xb2] sm:$0xff]
        %v1133 = vld [vmem:[%s247 + $0xc2] sm:$0xff]
        %v1134 = vld [vmem:[%s247 + $0xca] sm:$0xff]
        %v1135 = vld [vmem:[%s247 + $0xda] sm:$0xff]
        %v1136 = vld [vmem:[%s247 + $0xe2] sm:$0xff]
        %v1137 = vld [vmem:[%s247 + $0xf2] sm:$0xff]
        %v1138 = vld [vmem:[%s247 + $0xfa] sm:$0xff]
        %v1139 = vld [vmem:[%s247 + $0x10a] sm:$0xff]
        %v1140 = vld [vmem:[%s247 + $0x112] sm:$0xff]
        %v1141 = vld [vmem:[%s247 + $0x122] sm:$0xff]
        %v1142 = vld [vmem:[%s247 + $0x12a] sm:$0xff]
        %v1143 = vld [vmem:[%s247 + $0x13a] sm:$0xff]
        %v1144 = vld [vmem:[%s247 + $0x142] sm:$0xff]
        %v1145 = vld [vmem:[%s247 + $0x152] sm:$0xff]
        %v1146 = vld [vmem:[%s247 + $0x15a] sm:$0xff]
        %v1147 = vld [vmem:[%s247 + $0x16a] sm:$0xff]
        %v1148 = vld [vmem:[%s247 + $0x172] sm:$0xff]
        %1181 = vrot.lane.b32.xlu0 %v1117, 20
        %v1182 = vpop.permute.xlu0 %1181
        %1183 = vrot.lane.b32.xlu0 %v1118, 20
        %v1184 = vpop.permute.xlu0 %1183
        %1185 = vrot.lane.b32.xlu0 %v1119, 20
        %v1186 = vpop.permute.xlu0 %1185
        %1187 = vrot.lane.b32.xlu0 %v1120, 20
        %v1188 = vpop.permute.xlu0 %1187
        %1189 = vrot.lane.b32.xlu0 %v1121, 20
        %v1190 = vpop.permute.xlu0 %1189
        %1191 = vrot.lane.b32.xlu0 %v1122, 20
        %v1192 = vpop.permute.xlu0 %1191
        %1193 = vrot.lane.b32.xlu0 %v1123, 20
        %v1194 = vpop.permute.xlu0 %1193
        %1195 = vrot.lane.b32.xlu0 %v1124, 20
        %v1196 = vpop.permute.xlu0 %1195
        %1197 = vrot.lane.b32.xlu0 %v1125, 20
        %v1198 = vpop.permute.xlu0 %1197
        %1199 = vrot.lane.b32.xlu0 %v1126, 20
        %v1200 = vpop.permute.xlu0 %1199
        %1201 = vrot.lane.b32.xlu0 %v1127, 20
        %v1202 = vpop.permute.xlu0 %1201
        %1203 = vrot.lane.b32.xlu0 %v1128, 20
        %v1204 = vpop.permute.xlu0 %1203
        %1205 = vrot.lane.b32.xlu0 %v1129, 20
        %v1206 = vpop.permute.xlu0 %1205
        %1207 = vrot.lane.b32.xlu0 %v1130, 20
        %v1208 = vpop.permute.xlu0 %1207
        %1209 = vrot.lane.b32.xlu0 %v1131, 20
        %v1210 = vpop.permute.xlu0 %1209
        %1211 = vrot.lane.b32.xlu0 %v1132, 20
        %v1212 = vpop.permute.xlu0 %1211
        %1213 = vrot.lane.b32.xlu0 %v1133, 20
        %v1214 = vpop.permute.xlu0 %1213
        %1215 = vrot.lane.b32.xlu0 %v1134, 20
        %v1216 = vpop.permute.xlu0 %1215
        %1217 = vrot.lane.b32.xlu0 %v1135, 20
        %v1218 = vpop.permute.xlu0 %1217
        %1219 = vrot.lane.b32.xlu0 %v1136, 20
        %v1220 = vpop.permute.xlu0 %1219
        %1221 = vrot.lane.b32.xlu0 %v1137, 20
        %v1222 = vpop.permute.xlu0 %1221
        %1223 = vrot.lane.b32.xlu0 %v1138, 20
        %v1224 = vpop.permute.xlu0 %1223
        %1225 = vrot.lane.b32.xlu0 %v1139, 20
        %v1226 = vpop.permute.xlu0 %1225
        %1227 = vrot.lane.b32.xlu0 %v1140, 20
        %v1228 = vpop.permute.xlu0 %1227
        %1229 = vrot.lane.b32.xlu0 %v1141, 20
        %v1230 = vpop.permute.xlu0 %1229
        %1231 = vrot.lane.b32.xlu0 %v1142, 20
        %v1232 = vpop.permute.xlu0 %1231
        %1233 = vrot.lane.b32.xlu0 %v1143, 20
        %v1234 = vpop.permute.xlu0 %1233
        %1235 = vrot.lane.b32.xlu0 %v1144, 20
        %v1236 = vpop.permute.xlu0 %1235
        %1237 = vrot.lane.b32.xlu0 %v1145, 20
        %v1238 = vpop.permute.xlu0 %1237
        %1239 = vrot.lane.b32.xlu0 %v1146, 20
        %v1240 = vpop.permute.xlu0 %1239
        %1241 = vrot.lane.b32.xlu0 %v1147, 20
        %v1242 = vpop.permute.xlu0 %1241
        %1243 = vrot.lane.b32.xlu0 %v1148, 20
        %v1244 = vpop.permute.xlu0 %1243
        %vm1277 = vcmask 195744
        %1278 = vst.msk [vmem:[#allocation3] sm:$0xff] %vm1277, %v1182
        %1279 = vst.msk [vmem:[#allocation3 + $0x8] sm:$0xff] %vm1277, %v1184
        %1280 = vst.msk [vmem:[#allocation3 + $0x10] sm:$0xff] %vm1277, %v1186
        %1281 = vst.msk [vmem:[#allocation3 + $0x18] sm:$0xff] %vm1277, %v1188
        %1282 = vst.msk [vmem:[#allocation3 + $0x20] sm:$0xff] %vm1277, %v1190
        %1283 = vst.msk [vmem:[#allocation3 + $0x28] sm:$0xff] %vm1277, %v1192
        %1284 = vst.msk [vmem:[#allocation3 + $0x30] sm:$0xff] %vm1277, %v1194
        %1285 = vst.msk [vmem:[#allocation3 + $0x38] sm:$0xff] %vm1277, %v1196
        %1286 = vst.msk [vmem:[#allocation3 + $0x40] sm:$0xff] %vm1277, %v1198
        %1287 = vst.msk [vmem:[#allocation3 + $0x48] sm:$0xff] %vm1277, %v1200
        %1288 = vst.msk [vmem:[#allocation3 + $0x50] sm:$0xff] %vm1277, %v1202
        %1289 = vst.msk [vmem:[#allocation3 + $0x58] sm:$0xff] %vm1277, %v1204
        %1290 = vst.msk [vmem:[#allocation3 + $0x60] sm:$0xff] %vm1277, %v1206
        %1291 = vst.msk [vmem:[#allocation3 + $0x68] sm:$0xff] %vm1277, %v1208
        %1292 = vst.msk [vmem:[#allocation3 + $0x70] sm:$0xff] %vm1277, %v1210
        %1293 = vst.msk [vmem:[#allocation3 + $0x78] sm:$0xff] %vm1277, %v1212
        %1294 = vst.msk [vmem:[#allocation3 + $0x80] sm:$0xff] %vm1277, %v1214
        %1295 = vst.msk [vmem:[#allocation3 + $0x88] sm:$0xff] %vm1277, %v1216
        %1296 = vst.msk [vmem:[#allocation3 + $0x90] sm:$0xff] %vm1277, %v1218
        %1297 = vst.msk [vmem:[#allocation3 + $0x98] sm:$0xff] %vm1277, %v1220
        %1298 = vst.msk [vmem:[#allocation3 + $0xa0] sm:$0xff] %vm1277, %v1222
        %1299 = vst.msk [vmem:[#allocation3 + $0xa8] sm:$0xff] %vm1277, %v1224
        %1300 = vst.msk [vmem:[#allocation3 + $0xb0] sm:$0xff] %vm1277, %v1226
        %1301 = vst.msk [vmem:[#allocation3 + $0xb8] sm:$0xff] %vm1277, %v1228
        %1302 = vst.msk [vmem:[#allocation3 + $0xc0] sm:$0xff] %vm1277, %v1230
        %1303 = vst.msk [vmem:[#allocation3 + $0xc8] sm:$0xff] %vm1277, %v1232
        %1304 = vst.msk [vmem:[#allocation3 + $0xd0] sm:$0xff] %vm1277, %v1234
        %1305 = vst.msk [vmem:[#allocation3 + $0xd8] sm:$0xff] %vm1277, %v1236
        %1306 = vst.msk [vmem:[#allocation3 + $0xe0] sm:$0xff] %vm1277, %v1238
        %1307 = vst.msk [vmem:[#allocation3 + $0xe8] sm:$0xff] %vm1277, %v1240
        %1308 = vst.msk [vmem:[#allocation3 + $0xf0] sm:$0xff] %vm1277, %v1242
        %1309 = vst.msk [vmem:[#allocation3 + $0xf8] sm:$0xff] %vm1277, %v1244
        %v1310 = vld [vmem:[#allocation3] sm:$0xff]
        %v1311 = vld [vmem:[#allocation3 + $0x8] sm:$0xff]
        %v1312 = vld [vmem:[#allocation3 + $0x10] sm:$0xff]
        %v1313 = vld [vmem:[#allocation3 + $0x18] sm:$0xff]
        %v1314 = vld [vmem:[#allocation3 + $0x20] sm:$0xff]
        %v1315 = vld [vmem:[#allocation3 + $0x28] sm:$0xff]
        %v1316 = vld [vmem:[#allocation3 + $0x30] sm:$0xff]
        %v1317 = vld [vmem:[#allocation3 + $0x38] sm:$0xff]
        %v1318 = vld [vmem:[#allocation3 + $0x40] sm:$0xff]
        %v1319 = vld [vmem:[#allocation3 + $0x48] sm:$0xff]
        %v1320 = vld [vmem:[#allocation3 + $0x50] sm:$0xff]
        %v1321 = vld [vmem:[#allocation3 + $0x58] sm:$0xff]
        %v1322 = vld [vmem:[#allocation3 + $0x60] sm:$0xff]
        %v1323 = vld [vmem:[#allocation3 + $0x68] sm:$0xff]
        %v1324 = vld [vmem:[#allocation3 + $0x70] sm:$0xff]
        %v1325 = vld [vmem:[#allocation3 + $0x78] sm:$0xff]
        %v1326 = vld [vmem:[#allocation3 + $0x80] sm:$0xff]
        %v1327 = vld [vmem:[#allocation3 + $0x88] sm:$0xff]
        %v1328 = vld [vmem:[#allocation3 + $0x90] sm:$0xff]
        %v1329 = vld [vmem:[#allocation3 + $0x98] sm:$0xff]
        %v1330 = vld [vmem:[#allocation3 + $0xa0] sm:$0xff]
        %v1331 = vld [vmem:[#allocation3 + $0xa8] sm:$0xff]
        %v1332 = vld [vmem:[#allocation3 + $0xb0] sm:$0xff]
        %v1333 = vld [vmem:[#allocation3 + $0xb8] sm:$0xff]
        %v1334 = vld [vmem:[#allocation3 + $0xc0] sm:$0xff]
        %v1335 = vld [vmem:[#allocation3 + $0xc8] sm:$0xff]
        %v1336 = vld [vmem:[#allocation3 + $0xd0] sm:$0xff]
        %v1337 = vld [vmem:[#allocation3 + $0xd8] sm:$0xff]
        %v1338 = vld [vmem:[#allocation3 + $0xe0] sm:$0xff]
        %v1339 = vld [vmem:[#allocation3 + $0xe8] sm:$0xff]
        %v1340 = vld [vmem:[#allocation3 + $0xf0] sm:$0xff]
        %v1341 = vld [vmem:[#allocation3 + $0xf8] sm:$0xff]
        %v1342 = vld [vmem:[%s1] sm:$0xff]
        %v1343 = vld [vmem:[%s1 + $0x8] sm:$0xff]
        %v1344 = vld [vmem:[%s1 + $0x10] sm:$0xff]
        %v1346 = vlaneseq
        %v1347 = vshrl.u32 %v1346, 7
        %v1348 = vsub.s32 0, %v1347
        %v1349 = vrot.slane %v280, %v1348
        %vm1351 = vcmask 195584
        %v1353 = vsel %vm1351, %v1310, 0
        %v1356 = vsel %vm1351, %v1311, 0
        %v1359 = vsel %vm1351, %v1312, 0
        %v1362 = vsel %vm1351, %v1313, 0
        %v1365 = vsel %vm1351, %v1314, 0
        %v1368 = vsel %vm1351, %v1315, 0
        %v1371 = vsel %vm1351, %v1316, 0
        %v1374 = vsel %vm1351, %v1317, 0
        %v1377 = vsel %vm1351, %v1318, 0
        %v1380 = vsel %vm1351, %v1319, 0
        %v1383 = vsel %vm1351, %v1320, 0
        %v1386 = vsel %vm1351, %v1321, 0
        %v1389 = vsel %vm1351, %v1322, 0
        %v1392 = vsel %vm1351, %v1323, 0
        %v1395 = vsel %vm1351, %v1324, 0
        %v1398 = vsel %vm1351, %v1325, 0
        %v1401 = vsel %vm1351, %v1326, 0
        %v1404 = vsel %vm1351, %v1327, 0
        %v1407 = vsel %vm1351, %v1328, 0
        %v1410 = vsel %vm1351, %v1329, 0
        %v1413 = vsel %vm1351, %v1330, 0
        %v1416 = vsel %vm1351, %v1331, 0
        %v1419 = vsel %vm1351, %v1332, 0
        %v1422 = vsel %vm1351, %v1333, 0
        %v1425 = vsel %vm1351, %v1334, 0
        %v1428 = vsel %vm1351, %v1335, 0
        %v1431 = vsel %vm1351, %v1336, 0
        %v1434 = vsel %vm1351, %v1337, 0
        %v1437 = vsel %vm1351, %v1338, 0
        %v1440 = vsel %vm1351, %v1339, 0
        %v1443 = vsel %vm1351, %v1340, 0
        %v1446 = vsel %vm1351, %v1341, 0
        %1448 = vmatprep.subr.mxu0 0.0
        %1449 = vmatpush1.msra.mxu0 %v1342
        %1450 = vmatprep.subr.mxu0 0.0
        %1451 = vmatpush1.msra.mxu0 %v1343
        %1452 = vmatprep.subr.mxu0 0.0
        %1453 = vmatpush1.msra.mxu0 %v1344
        %1454 = vmatprep.subr.mxu0 0.0
        %1455 = vmatpush1.msra.mxu0 0.0
        %1456 = vmatprep.subr.mxu0 0.0
        %1457 = vmatpush1.msra.mxu0 0.0
        %1458 = vmatprep.subr.mxu0 0.0
        %1459 = vmatpush1.msra.mxu0 0.0
        %1460 = vmatprep.subr.mxu0 0.0
        %1461 = vmatpush1.msra.mxu0 0.0
        %1462 = vmatprep.subr.mxu0 0.0
        %1463 = vmatpush1.msra.mxu0 0.0
        %1464 = vmatprep.subr.mxu0 0.0
        %1465 = vmatpush1.msra.mxu0 0.0
        %1466 = vmatprep.subr.mxu0 0.0
        %1467 = vmatpush1.msra.mxu0 0.0
        %1468 = vmatprep.subr.mxu0 0.0
        %1469 = vmatpush1.msra.mxu0 0.0
        %1470 = vmatprep.subr.mxu0 0.0
        %1471 = vmatpush1.msra.mxu0 0.0
        %1472 = vmatprep.subr.mxu0 0.0
        %1473 = vmatpush1.msra.mxu0 0.0
        %1474 = vmatprep.subr.mxu0 0.0
        %1475 = vmatpush1.msra.mxu0 0.0
        %1476 = vmatprep.subr.mxu0 0.0
        %1477 = vmatpush1.msra.mxu0 0.0
        %1478 = vmatprep.subr.mxu0 0.0
        %1479 = vmatpush1.msra.mxu0 0.0
        %1480 = vmatprep.subr.mxu0 0.0
        %1481 = vmatpush1.msra.mxu0 0.0
        %1482 = vmatprep.subr.mxu0 0.0
        %1483 = vmatpush1.msra.mxu0 0.0
        %1484 = vmatprep.subr.mxu0 0.0
        %1485 = vmatpush1.msra.mxu0 0.0
        %1486 = vmatprep.subr.mxu0 0.0
        %1487 = vmatpush1.msra.mxu0 0.0
        %1488 = vmatprep.subr.mxu0 0.0
        %1489 = vmatpush1.msra.mxu0 0.0
        %1490 = vmatprep.subr.mxu0 0.0
        %1491 = vmatpush1.msra.mxu0 0.0
        %1492 = vmatprep.subr.mxu0 0.0
        %1493 = vmatpush1.msra.mxu0 0.0
        %1494 = vmatprep.subr.mxu0 0.0
        %1495 = vmatpush1.msra.mxu0 0.0
        %1496 = vmatprep.subr.mxu0 0.0
        %1497 = vmatpush1.msra.mxu0 0.0
        %1498 = vmatprep.subr.mxu0 0.0
        %1499 = vmatpush1.msra.mxu0 0.0
        %1500 = vmatprep.subr.mxu0 0.0
        %1501 = vmatpush1.msra.mxu0 0.0
        %1502 = vmatprep.subr.mxu0 0.0
        %1503 = vmatpush1.msra.mxu0 0.0
        %1504 = vmatprep.subr.mxu0 0.0
        %1505 = vmatpush1.msra.mxu0 0.0
        %1506 = vmatprep.subr.mxu0 0.0
        %1507 = vmatpush1.msra.mxu0 0.0
        %1508 = vmatprep.subr.mxu0 0.0
        %1509 = vmatpush1.msra.mxu0 0.0
        %1510 = vmatprep.subr.mxu0 0.0
        %1511 = vmatpush1.msra.mxu0 0.0
        %1512 = vmatprep.mubr.f32.mxu0 0.0
        %1513 = vmatmul.mubr.f32.gmra.mrb[0].mxu0 %v1353
        %v1514 = vpop.f32.mrb[0].mxu0
        %v1515 = vadd.f32 %v1349, %v1514
        %v1516 = vpop.f32.mrb[0].mxu0
        %1517 = vmatprep.mubr.f32.mxu0 0.0
        %1518 = vmatmul.mubr.f32.gmra.mrb[0].mxu0 %v1356
        %v1519 = vpop.f32.mrb[0].mxu0
        %v1520 = vadd.f32 %v1349, %v1519
        %v1521 = vpop.f32.mrb[0].mxu0
        %1522 = vmatprep.mubr.f32.mxu0 0.0
        %1523 = vmatmul.mubr.f32.gmra.mrb[0].mxu0 %v1359
        %v1524 = vpop.f32.mrb[0].mxu0
        %v1525 = vadd.f32 %v1349, %v1524
        %v1526 = vpop.f32.mrb[0].mxu0
        %1527 = vmatprep.mubr.f32.mxu0 0.0
        %1528 = vmatmul.mubr.f32.gmra.mrb[0].mxu0 %v1362
        %v1529 = vpop.f32.mrb[0].mxu0
        %v1530 = vadd.f32 %v1349, %v1529
        %v1531 = vpop.f32.mrb[0].mxu0
        %1532 = vmatprep.mubr.f32.mxu0 0.0
        %1533 = vmatmul.mubr.f32.gmra.mrb[0].mxu0 %v1365
        %v1534 = vpop.f32.mrb[0].mxu0
        %v1535 = vadd.f32 %v1349, %v1534
        %v1536 = vpop.f32.mrb[0].mxu0
        %1537 = vmatprep.mubr.f32.mxu0 0.0
        %1538 = vmatmul.mubr.f32.gmra.mrb[0].mxu0 %v1368
        %v1539 = vpop.f32.mrb[0].mxu0
        %v1540 = vadd.f32 %v1349, %v1539
        %v1541 = vpop.f32.mrb[0].mxu0
        %1542 = vmatprep.mubr.f32.mxu0 0.0
        %1543 = vmatmul.mubr.f32.gmra.mrb[0].mxu0 %v1371
        %v1544 = vpop.f32.mrb[0].mxu0
        %v1545 = vadd.f32 %v1349, %v1544
        %v1546 = vpop.f32.mrb[0].mxu0
        %1547 = vmatprep.mubr.f32.mxu0 0.0
        %1548 = vmatmul.mubr.f32.gmra.mrb[0].mxu0 %v1374
        %v1549 = vpop.f32.mrb[0].mxu0
        %v1550 = vadd.f32 %v1349, %v1549
        %v1551 = vpop.f32.mrb[0].mxu0
        %1552 = vmatprep.mubr.f32.mxu0 0.0
        %1553 = vmatmul.mubr.f32.gmra.mrb[0].mxu0 %v1377
        %v1554 = vpop.f32.mrb[0].mxu0
        %v1555 = vadd.f32 %v1349, %v1554
        %v1556 = vpop.f32.mrb[0].mxu0
        %1557 = vmatprep.mubr.f32.mxu0 0.0
        %1558 = vmatmul.mubr.f32.gmra.mrb[0].mxu0 %v1380
        %v1559 = vpop.f32.mrb[0].mxu0
        %v1560 = vadd.f32 %v1349, %v1559
        %v1561 = vpop.f32.mrb[0].mxu0
        %1562 = vmatprep.mubr.f32.mxu0 0.0
        %1563 = vmatmul.mubr.f32.gmra.mrb[0].mxu0 %v1383
        %v1564 = vpop.f32.mrb[0].mxu0
        %v1565 = vadd.f32 %v1349, %v1564
        %v1566 = vpop.f32.mrb[0].mxu0
        %1567 = vmatprep.mubr.f32.mxu0 0.0
        %1568 = vmatmul.mubr.f32.gmra.mrb[0].mxu0 %v1386
        %v1569 = vpop.f32.mrb[0].mxu0
        %v1570 = vadd.f32 %v1349, %v1569
        %v1571 = vpop.f32.mrb[0].mxu0
        %1572 = vmatprep.mubr.f32.mxu0 0.0
        %1573 = vmatmul.mubr.f32.gmra.mrb[0].mxu0 %v1389
        %v1574 = vpop.f32.mrb[0].mxu0
        %v1575 = vadd.f32 %v1349, %v1574
        %v1576 = vpop.f32.mrb[0].mxu0
        %1577 = vmatprep.mubr.f32.mxu0 0.0
        %1578 = vmatmul.mubr.f32.gmra.mrb[0].mxu0 %v1392
        %v1579 = vpop.f32.mrb[0].mxu0
        %v1580 = vadd.f32 %v1349, %v1579
        %v1581 = vpop.f32.mrb[0].mxu0
        %1582 = vmatprep.mubr.f32.mxu0 0.0
        %1583 = vmatmul.mubr.f32.gmra.mrb[0].mxu0 %v1395
        %v1584 = vpop.f32.mrb[0].mxu0
        %v1585 = vadd.f32 %v1349, %v1584
        %v1586 = vpop.f32.mrb[0].mxu0
        %1587 = vmatprep.mubr.f32.mxu0 0.0
        %1588 = vmatmul.mubr.f32.gmra.mrb[0].mxu0 %v1398
        %v1589 = vpop.f32.mrb[0].mxu0
        %v1590 = vadd.f32 %v1349, %v1589
        %v1591 = vpop.f32.mrb[0].mxu0
        %1592 = vmatprep.mubr.f32.mxu0 0.0
        %1593 = vmatmul.mubr.f32.gmra.mrb[0].mxu0 %v1401
        %v1594 = vpop.f32.mrb[0].mxu0
        %v1595 = vadd.f32 %v1349, %v1594
        %v1596 = vpop.f32.mrb[0].mxu0
        %1597 = vmatprep.mubr.f32.mxu0 0.0
        %1598 = vmatmul.mubr.f32.gmra.mrb[0].mxu0 %v1404
        %v1599 = vpop.f32.mrb[0].mxu0
        %v1600 = vadd.f32 %v1349, %v1599
        %v1601 = vpop.f32.mrb[0].mxu0
        %1602 = vmatprep.mubr.f32.mxu0 0.0
        %1603 = vmatmul.mubr.f32.gmra.mrb[0].mxu0 %v1407
        %v1604 = vpop.f32.mrb[0].mxu0
        %v1605 = vadd.f32 %v1349, %v1604
        %v1606 = vpop.f32.mrb[0].mxu0
        %1607 = vmatprep.mubr.f32.mxu0 0.0
        %1608 = vmatmul.mubr.f32.gmra.mrb[0].mxu0 %v1410
        %v1609 = vpop.f32.mrb[0].mxu0
        %v1610 = vadd.f32 %v1349, %v1609
        %v1611 = vpop.f32.mrb[0].mxu0
        %1612 = vmatprep.mubr.f32.mxu0 0.0
        %1613 = vmatmul.mubr.f32.gmra.mrb[0].mxu0 %v1413
        %v1614 = vpop.f32.mrb[0].mxu0
        %v1615 = vadd.f32 %v1349, %v1614
        %v1616 = vpop.f32.mrb[0].mxu0
        %1617 = vmatprep.mubr.f32.mxu0 0.0
        %1618 = vmatmul.mubr.f32.gmra.mrb[0].mxu0 %v1416
        %v1619 = vpop.f32.mrb[0].mxu0
        %v1620 = vadd.f32 %v1349, %v1619
        %v1621 = vpop.f32.mrb[0].mxu0
        %1622 = vmatprep.mubr.f32.mxu0 0.0
        %1623 = vmatmul.mubr.f32.gmra.mrb[0].mxu0 %v1419
        %v1624 = vpop.f32.mrb[0].mxu0
        %v1625 = vadd.f32 %v1349, %v1624
        %v1626 = vpop.f32.mrb[0].mxu0
        %1627 = vmatprep.mubr.f32.mxu0 0.0
        %1628 = vmatmul.mubr.f32.gmra.mrb[0].mxu0 %v1422
        %v1629 = vpop.f32.mrb[0].mxu0
        %v1630 = vadd.f32 %v1349, %v1629
        %v1631 = vpop.f32.mrb[0].mxu0
        %1632 = vmatprep.mubr.f32.mxu0 0.0
        %1633 = vmatmul.mubr.f32.gmra.mrb[0].mxu0 %v1425
        %v1634 = vpop.f32.mrb[0].mxu0
        %v1635 = vadd.f32 %v1349, %v1634
        %v1636 = vpop.f32.mrb[0].mxu0
        %1637 = vmatprep.mubr.f32.mxu0 0.0
        %1638 = vmatmul.mubr.f32.gmra.mrb[0].mxu0 %v1428
        %v1639 = vpop.f32.mrb[0].mxu0
        %v1640 = vadd.f32 %v1349, %v1639
        %v1641 = vpop.f32.mrb[0].mxu0
        %1642 = vmatprep.mubr.f32.mxu0 0.0
        %1643 = vmatmul.mubr.f32.gmra.mrb[0].mxu0 %v1431
        %v1644 = vpop.f32.mrb[0].mxu0
        %v1645 = vadd.f32 %v1349, %v1644
        %v1646 = vpop.f32.mrb[0].mxu0
        %1647 = vmatprep.mubr.f32.mxu0 0.0
        %1648 = vmatmul.mubr.f32.gmra.mrb[0].mxu0 %v1434
        %v1649 = vpop.f32.mrb[0].mxu0
        %v1650 = vadd.f32 %v1349, %v1649
        %v1651 = vpop.f32.mrb[0].mxu0
        %1652 = vmatprep.mubr.f32.mxu0 0.0
        %1653 = vmatmul.mubr.f32.gmra.mrb[0].mxu0 %v1437
        %v1654 = vpop.f32.mrb[0].mxu0
        %v1655 = vadd.f32 %v1349, %v1654
        %v1656 = vpop.f32.mrb[0].mxu0
        %1657 = vmatprep.mubr.f32.mxu0 0.0
        %1658 = vmatmul.mubr.f32.gmra.mrb[0].mxu0 %v1440
        %v1659 = vpop.f32.mrb[0].mxu0
        %v1660 = vadd.f32 %v1349, %v1659
        %v1661 = vpop.f32.mrb[0].mxu0
        %1662 = vmatprep.mubr.f32.mxu0 0.0
        %1663 = vmatmul.mubr.f32.gmra.mrb[0].mxu0 %v1443
        %v1664 = vpop.f32.mrb[0].mxu0
        %v1665 = vadd.f32 %v1349, %v1664
        %v1666 = vpop.f32.mrb[0].mxu0
        %1667 = vmatprep.mubr.f32.mxu0 0.0
        %1668 = vmatmul.mubr.f32.gmra.mrb[0].mxu0 %v1446
        %v1669 = vpop.f32.mrb[0].mxu0
        %v1670 = vadd.f32 %v1349, %v1669
        %v1671 = vpop.f32.mrb[0].mxu0
        %1672 = vdwg.mxu0
        %1673 = vst [vmem:[%s163] sm:$0xff] %v1515
        %1674 = vst [vmem:[%s163 + $0x8] sm:$0xff] %v1520
        %1675 = vst [vmem:[%s163 + $0x20] sm:$0xff] %v1525
        %1676 = vst [vmem:[%s163 + $0x28] sm:$0xff] %v1530
        %1677 = vst [vmem:[%s163 + $0x40] sm:$0xff] %v1535
        %1678 = vst [vmem:[%s163 + $0x48] sm:$0xff] %v1540
        %1679 = vst [vmem:[%s163 + $0x60] sm:$0xff] %v1545
        %1680 = vst [vmem:[%s163 + $0x68] sm:$0xff] %v1550
        %1681 = vst [vmem:[%s163 + $0x80] sm:$0xff] %v1555
        %1682 = vst [vmem:[%s163 + $0x88] sm:$0xff] %v1560
        %1683 = vst [vmem:[%s163 + $0xa0] sm:$0xff] %v1565
        %1684 = vst [vmem:[%s163 + $0xa8] sm:$0xff] %v1570
        %1685 = vst [vmem:[%s163 + $0xc0] sm:$0xff] %v1575
        %1686 = vst [vmem:[%s163 + $0xc8] sm:$0xff] %v1580
        %1687 = vst [vmem:[%s163 + $0xe0] sm:$0xff] %v1585
        %1688 = vst [vmem:[%s163 + $0xe8] sm:$0xff] %v1590
        %1689 = vst [vmem:[%s163 + $0x100] sm:$0xff] %v1595
        %1690 = vst [vmem:[%s163 + $0x108] sm:$0xff] %v1600
        %1691 = vst [vmem:[%s163 + $0x120] sm:$0xff] %v1605
        %1692 = vst [vmem:[%s163 + $0x128] sm:$0xff] %v1610
        %1693 = vst [vmem:[%s163 + $0x140] sm:$0xff] %v1615
        %1694 = vst [vmem:[%s163 + $0x148] sm:$0xff] %v1620
        %1695 = vst [vmem:[%s163 + $0x160] sm:$0xff] %v1625
        %1696 = vst [vmem:[%s163 + $0x168] sm:$0xff] %v1630
        %1697 = vst [vmem:[%s163 + $0x180] sm:$0xff] %v1635
        %1698 = vst [vmem:[%s163 + $0x188] sm:$0xff] %v1640
        %1699 = vst [vmem:[%s163 + $0x1a0] sm:$0xff] %v1645
        %1700 = vst [vmem:[%s163 + $0x1a8] sm:$0xff] %v1650
        %1701 = vst [vmem:[%s163 + $0x1c0] sm:$0xff] %v1655
        %1702 = vst [vmem:[%s163 + $0x1c8] sm:$0xff] %v1660
        %1703 = vst [vmem:[%s163 + $0x1e0] sm:$0xff] %v1665
        %1704 = vst [vmem:[%s163 + $0x1e8] sm:$0xff] %v1670
        %v1705 = vld [vmem:[%s247] sm:$0xff]
        %v1706 = vld [vmem:[%s247 + $0x8] sm:$0xff]
        %v1707 = vld [vmem:[%s247 + $0x18] sm:$0xff]
        %v1708 = vld [vmem:[%s247 + $0x20] sm:$0xff]
        %v1709 = vld [vmem:[%s247 + $0x30] sm:$0xff]
        %v1710 = vld [vmem:[%s247 + $0x38] sm:$0xff]
        %v1711 = vld [vmem:[%s247 + $0x48] sm:$0xff]
        %v1712 = vld [vmem:[%s247 + $0x50] sm:$0xff]
        %v1713 = vld [vmem:[%s247 + $0x60] sm:$0xff]
        %v1714 = vld [vmem:[%s247 + $0x68] sm:$0xff]
        %v1715 = vld [vmem:[%s247 + $0x78] sm:$0xff]
        %v1716 = vld [vmem:[%s247 + $0x80] sm:$0xff]
        %v1717 = vld [vmem:[%s247 + $0x90] sm:$0xff]
        %v1718 = vld [vmem:[%s247 + $0x98] sm:$0xff]
        %v1719 = vld [vmem:[%s247 + $0xa8] sm:$0xff]
        %v1720 = vld [vmem:[%s247 + $0xb0] sm:$0xff]
        %v1721 = vld [vmem:[%s247 + $0xc0] sm:$0xff]
        %v1722 = vld [vmem:[%s247 + $0xc8] sm:$0xff]
        %v1723 = vld [vmem:[%s247 + $0xd8] sm:$0xff]
        %v1724 = vld [vmem:[%s247 + $0xe0] sm:$0xff]
        %v1725 = vld [vmem:[%s247 + $0xf0] sm:$0xff]
        %v1726 = vld [vmem:[%s247 + $0xf8] sm:$0xff]
        %v1727 = vld [vmem:[%s247 + $0x108] sm:$0xff]
        %v1728 = vld [vmem:[%s247 + $0x110] sm:$0xff]
        %v1729 = vld [vmem:[%s247 + $0x120] sm:$0xff]
        %v1730 = vld [vmem:[%s247 + $0x128] sm:$0xff]
        %v1731 = vld [vmem:[%s247 + $0x138] sm:$0xff]
        %v1732 = vld [vmem:[%s247 + $0x140] sm:$0xff]
        %v1733 = vld [vmem:[%s247 + $0x150] sm:$0xff]
        %v1734 = vld [vmem:[%s247 + $0x158] sm:$0xff]
        %v1735 = vld [vmem:[%s247 + $0x168] sm:$0xff]
        %v1736 = vld [vmem:[%s247 + $0x170] sm:$0xff]
        %1737 = vst.msk [vmem:[#allocation3] sm:$0xff] %vm169, %v1705
        %1738 = vst.msk [vmem:[#allocation3 + $0x8] sm:$0xff] %vm169, %v1706
        %1739 = vst.msk [vmem:[#allocation3 + $0x10] sm:$0xff] %vm169, %v1707
        %1740 = vst.msk [vmem:[#allocation3 + $0x18] sm:$0xff] %vm169, %v1708
        %1741 = vst.msk [vmem:[#allocation3 + $0x20] sm:$0xff] %vm169, %v1709
        %1742 = vst.msk [vmem:[#allocation3 + $0x28] sm:$0xff] %vm169, %v1710
        %1743 = vst.msk [vmem:[#allocation3 + $0x30] sm:$0xff] %vm169, %v1711
        %1744 = vst.msk [vmem:[#allocation3 + $0x38] sm:$0xff] %vm169, %v1712
        %1745 = vst.msk [vmem:[#allocation3 + $0x40] sm:$0xff] %vm169, %v1713
        %1746 = vst.msk [vmem:[#allocation3 + $0x48] sm:$0xff] %vm169, %v1714
        %1747 = vst.msk [vmem:[#allocation3 + $0x50] sm:$0xff] %vm169, %v1715
        %1748 = vst.msk [vmem:[#allocation3 + $0x58] sm:$0xff] %vm169, %v1716
        %1749 = vst.msk [vmem:[#allocation3 + $0x60] sm:$0xff] %vm169, %v1717
        %1750 = vst.msk [vmem:[#allocation3 + $0x68] sm:$0xff] %vm169, %v1718
        %1751 = vst.msk [vmem:[#allocation3 + $0x70] sm:$0xff] %vm169, %v1719
        %1752 = vst.msk [vmem:[#allocation3 + $0x78] sm:$0xff] %vm169, %v1720
        %1753 = vst.msk [vmem:[#allocation3 + $0x80] sm:$0xff] %vm169, %v1721
        %1754 = vst.msk [vmem:[#allocation3 + $0x88] sm:$0xff] %vm169, %v1722
        %1755 = vst.msk [vmem:[#allocation3 + $0x90] sm:$0xff] %vm169, %v1723
        %1756 = vst.msk [vmem:[#allocation3 + $0x98] sm:$0xff] %vm169, %v1724
        %1757 = vst.msk [vmem:[#allocation3 + $0xa0] sm:$0xff] %vm169, %v1725
        %1758 = vst.msk [vmem:[#allocation3 + $0xa8] sm:$0xff] %vm169, %v1726
        %1759 = vst.msk [vmem:[#allocation3 + $0xb0] sm:$0xff] %vm169, %v1727
        %1760 = vst.msk [vmem:[#allocation3 + $0xb8] sm:$0xff] %vm169, %v1728
        %1761 = vst.msk [vmem:[#allocation3 + $0xc0] sm:$0xff] %vm169, %v1729
        %1762 = vst.msk [vmem:[#allocation3 + $0xc8] sm:$0xff] %vm169, %v1730
        %1763 = vst.msk [vmem:[#allocation3 + $0xd0] sm:$0xff] %vm169, %v1731
        %1764 = vst.msk [vmem:[#allocation3 + $0xd8] sm:$0xff] %vm169, %v1732
        %1765 = vst.msk [vmem:[#allocation3 + $0xe0] sm:$0xff] %vm169, %v1733
        %1766 = vst.msk [vmem:[#allocation3 + $0xe8] sm:$0xff] %vm169, %v1734
        %1767 = vst.msk [vmem:[#allocation3 + $0xf0] sm:$0xff] %vm169, %v1735
        %1768 = vst.msk [vmem:[#allocation3 + $0xf8] sm:$0xff] %vm169, %v1736
        %v1769 = vld [vmem:[%s247 + $0x1] sm:$0xff]
        %v1770 = vld [vmem:[%s247 + $0x9] sm:$0xff]
        %v1771 = vld [vmem:[%s247 + $0x19] sm:$0xff]
        %v1772 = vld [vmem:[%s247 + $0x21] sm:$0xff]
        %v1773 = vld [vmem:[%s247 + $0x31] sm:$0xff]
        %v1774 = vld [vmem:[%s247 + $0x39] sm:$0xff]
        %v1775 = vld [vmem:[%s247 + $0x49] sm:$0xff]
        %v1776 = vld [vmem:[%s247 + $0x51] sm:$0xff]
        %v1777 = vld [vmem:[%s247 + $0x61] sm:$0xff]
        %v1778 = vld [vmem:[%s247 + $0x69] sm:$0xff]
        %v1779 = vld [vmem:[%s247 + $0x79] sm:$0xff]
        %v1780 = vld [vmem:[%s247 + $0x81] sm:$0xff]
        %v1781 = vld [vmem:[%s247 + $0x91] sm:$0xff]
        %v1782 = vld [vmem:[%s247 + $0x99] sm:$0xff]
        %v1783 = vld [vmem:[%s247 + $0xa9] sm:$0xff]
        %v1784 = vld [vmem:[%s247 + $0xb1] sm:$0xff]
        %v1785 = vld [vmem:[%s247 + $0xc1] sm:$0xff]
        %v1786 = vld [vmem:[%s247 + $0xc9] sm:$0xff]
        %v1787 = vld [vmem:[%s247 + $0xd9] sm:$0xff]
        %v1788 = vld [vmem:[%s247 + $0xe1] sm:$0xff]
        %v1789 = vld [vmem:[%s247 + $0xf1] sm:$0xff]
        %v1790 = vld [vmem:[%s247 + $0xf9] sm:$0xff]
        %v1791 = vld [vmem:[%s247 + $0x109] sm:$0xff]
        %v1792 = vld [vmem:[%s247 + $0x111] sm:$0xff]
        %v1793 = vld [vmem:[%s247 + $0x121] sm:$0xff]
        %v1794 = vld [vmem:[%s247 + $0x129] sm:$0xff]
        %v1795 = vld [vmem:[%s247 + $0x139] sm:$0xff]
        %v1796 = vld [vmem:[%s247 + $0x141] sm:$0xff]
        %v1797 = vld [vmem:[%s247 + $0x151] sm:$0xff]
        %v1798 = vld [vmem:[%s247 + $0x159] sm:$0xff]
        %v1799 = vld [vmem:[%s247 + $0x169] sm:$0xff]
        %v1800 = vld [vmem:[%s247 + $0x171] sm:$0xff]
        %1833 = vrot.lane.b32.xlu0 %v1769, 4
        %v1834 = vpop.permute.xlu0 %1833
        %1835 = vrot.lane.b32.xlu0 %v1770, 4
        %v1836 = vpop.permute.xlu0 %1835
        %1837 = vrot.lane.b32.xlu0 %v1771, 4
        %v1838 = vpop.permute.xlu0 %1837
        %1839 = vrot.lane.b32.xlu0 %v1772, 4
        %v1840 = vpop.permute.xlu0 %1839
        %1841 = vrot.lane.b32.xlu0 %v1773, 4
        %v1842 = vpop.permute.xlu0 %1841
        %1843 = vrot.lane.b32.xlu0 %v1774, 4
        %v1844 = vpop.permute.xlu0 %1843
        %1845 = vrot.lane.b32.xlu0 %v1775, 4
        %v1846 = vpop.permute.xlu0 %1845
        %1847 = vrot.lane.b32.xlu0 %v1776, 4
        %v1848 = vpop.permute.xlu0 %1847
        %1849 = vrot.lane.b32.xlu0 %v1777, 4
        %v1850 = vpop.permute.xlu0 %1849
        %1851 = vrot.lane.b32.xlu0 %v1778, 4
        %v1852 = vpop.permute.xlu0 %1851
        %1853 = vrot.lane.b32.xlu0 %v1779, 4
        %v1854 = vpop.permute.xlu0 %1853
        %1855 = vrot.lane.b32.xlu0 %v1780, 4
        %v1856 = vpop.permute.xlu0 %1855
        %1857 = vrot.lane.b32.xlu0 %v1781, 4
        %v1858 = vpop.permute.xlu0 %1857
        %1859 = vrot.lane.b32.xlu0 %v1782, 4
        %v1860 = vpop.permute.xlu0 %1859
        %1861 = vrot.lane.b32.xlu0 %v1783, 4
        %v1862 = vpop.permute.xlu0 %1861
        %1863 = vrot.lane.b32.xlu0 %v1784, 4
        %v1864 = vpop.permute.xlu0 %1863
        %1865 = vrot.lane.b32.xlu0 %v1785, 4
        %v1866 = vpop.permute.xlu0 %1865
        %1867 = vrot.lane.b32.xlu0 %v1786, 4
        %v1868 = vpop.permute.xlu0 %1867
        %1869 = vrot.lane.b32.xlu0 %v1787, 4
        %v1870 = vpop.permute.xlu0 %1869
        %1871 = vrot.lane.b32.xlu0 %v1788, 4
        %v1872 = vpop.permute.xlu0 %1871
        %1873 = vrot.lane.b32.xlu0 %v1789, 4
        %v1874 = vpop.permute.xlu0 %1873
        %1875 = vrot.lane.b32.xlu0 %v1790, 4
        %v1876 = vpop.permute.xlu0 %1875
        %1877 = vrot.lane.b32.xlu0 %v1791, 4
        %v1878 = vpop.permute.xlu0 %1877
        %1879 = vrot.lane.b32.xlu0 %v1792, 4
        %v1880 = vpop.permute.xlu0 %1879
        %1881 = vrot.lane.b32.xlu0 %v1793, 4
        %v1882 = vpop.permute.xlu0 %1881
        %1883 = vrot.lane.b32.xlu0 %v1794, 4
        %v1884 = vpop.permute.xlu0 %1883
        %1885 = vrot.lane.b32.xlu0 %v1795, 4
        %v1886 = vpop.permute.xlu0 %1885
        %1887 = vrot.lane.b32.xlu0 %v1796, 4
        %v1888 = vpop.permute.xlu0 %1887
        %1889 = vrot.lane.b32.xlu0 %v1797, 4
        %v1890 = vpop.permute.xlu0 %1889
        %1891 = vrot.lane.b32.xlu0 %v1798, 4
        %v1892 = vpop.permute.xlu0 %1891
        %1893 = vrot.lane.b32.xlu0 %v1799, 4
        %v1894 = vpop.permute.xlu0 %1893
        %1895 = vrot.lane.b32.xlu0 %v1800, 4
        %v1896 = vpop.permute.xlu0 %1895
        %1929 = vst.msk [vmem:[#allocation3] sm:$0xff] %vm505, %v1834
        %1930 = vst.msk [vmem:[#allocation3 + $0x8] sm:$0xff] %vm505, %v1836
        %1931 = vst.msk [vmem:[#allocation3 + $0x10] sm:$0xff] %vm505, %v1838
        %1932 = vst.msk [vmem:[#allocation3 + $0x18] sm:$0xff] %vm505, %v1840
        %1933 = vst.msk [vmem:[#allocation3 + $0x20] sm:$0xff] %vm505, %v1842
        %1934 = vst.msk [vmem:[#allocation3 + $0x28] sm:$0xff] %vm505, %v1844
        %1935 = vst.msk [vmem:[#allocation3 + $0x30] sm:$0xff] %vm505, %v1846
        %1936 = vst.msk [vmem:[#allocation3 + $0x38] sm:$0xff] %vm505, %v1848
        %1937 = vst.msk [vmem:[#allocation3 + $0x40] sm:$0xff] %vm505, %v1850
        %1938 = vst.msk [vmem:[#allocation3 + $0x48] sm:$0xff] %vm505, %v1852
        %1939 = vst.msk [vmem:[#allocation3 + $0x50] sm:$0xff] %vm505, %v1854
        %1940 = vst.msk [vmem:[#allocation3 + $0x58] sm:$0xff] %vm505, %v1856
        %1941 = vst.msk [vmem:[#allocation3 + $0x60] sm:$0xff] %vm505, %v1858
        %1942 = vst.msk [vmem:[#allocation3 + $0x68] sm:$0xff] %vm505, %v1860
        %1943 = vst.msk [vmem:[#allocation3 + $0x70] sm:$0xff] %vm505, %v1862
        %1944 = vst.msk [vmem:[#allocation3 + $0x78] sm:$0xff] %vm505, %v1864
        %1945 = vst.msk [vmem:[#allocation3 + $0x80] sm:$0xff] %vm505, %v1866
        %1946 = vst.msk [vmem:[#allocation3 + $0x88] sm:$0xff] %vm505, %v1868
        %1947 = vst.msk [vmem:[#allocation3 + $0x90] sm:$0xff] %vm505, %v1870
        %1948 = vst.msk [vmem:[#allocation3 + $0x98] sm:$0xff] %vm505, %v1872
        %1949 = vst.msk [vmem:[#allocation3 + $0xa0] sm:$0xff] %vm505, %v1874
        %1950 = vst.msk [vmem:[#allocation3 + $0xa8] sm:$0xff] %vm505, %v1876
        %1951 = vst.msk [vmem:[#allocation3 + $0xb0] sm:$0xff] %vm505, %v1878
        %1952 = vst.msk [vmem:[#allocation3 + $0xb8] sm:$0xff] %vm505, %v1880
        %1953 = vst.msk [vmem:[#allocation3 + $0xc0] sm:$0xff] %vm505, %v1882
        %1954 = vst.msk [vmem:[#allocation3 + $0xc8] sm:$0xff] %vm505, %v1884
        %1955 = vst.msk [vmem:[#allocation3 + $0xd0] sm:$0xff] %vm505, %v1886
        %1956 = vst.msk [vmem:[#allocation3 + $0xd8] sm:$0xff] %vm505, %v1888
        %1957 = vst.msk [vmem:[#allocation3 + $0xe0] sm:$0xff] %vm505, %v1890
        %1958 = vst.msk [vmem:[#allocation3 + $0xe8] sm:$0xff] %vm505, %v1892
        %1959 = vst.msk [vmem:[#allocation3 + $0xf0] sm:$0xff] %vm505, %v1894
        %1960 = vst.msk [vmem:[#allocation3 + $0xf8] sm:$0xff] %vm505, %v1896
        %v1961 = vld [vmem:[%s247 + $0x2] sm:$0xff]
        %v1962 = vld [vmem:[%s247 + $0xa] sm:$0xff]
        %v1963 = vld [vmem:[%s247 + $0x1a] sm:$0xff]
        %v1964 = vld [vmem:[%s247 + $0x22] sm:$0xff]
        %v1965 = vld [vmem:[%s247 + $0x32] sm:$0xff]
        %v1966 = vld [vmem:[%s247 + $0x3a] sm:$0xff]
        %v1967 = vld [vmem:[%s247 + $0x4a] sm:$0xff]
        %v1968 = vld [vmem:[%s247 + $0x52] sm:$0xff]
        %v1969 = vld [vmem:[%s247 + $0x62] sm:$0xff]
        %v1970 = vld [vmem:[%s247 + $0x6a] sm:$0xff]
        %v1971 = vld [vmem:[%s247 + $0x7a] sm:$0xff]
        %v1972 = vld [vmem:[%s247 + $0x82] sm:$0xff]
        %v1973 = vld [vmem:[%s247 + $0x92] sm:$0xff]
        %v1974 = vld [vmem:[%s247 + $0x9a] sm:$0xff]
        %v1975 = vld [vmem:[%s247 + $0xaa] sm:$0xff]
        %v1976 = vld [vmem:[%s247 + $0xb2] sm:$0xff]
        %v1977 = vld [vmem:[%s247 + $0xc2] sm:$0xff]
        %v1978 = vld [vmem:[%s247 + $0xca] sm:$0xff]
        %v1979 = vld [vmem:[%s247 + $0xda] sm:$0xff]
        %v1980 = vld [vmem:[%s247 + $0xe2] sm:$0xff]
        %v1981 = vld [vmem:[%s247 + $0xf2] sm:$0xff]
        %v1982 = vld [vmem:[%s247 + $0xfa] sm:$0xff]
        %v1983 = vld [vmem:[%s247 + $0x10a] sm:$0xff]
        %v1984 = vld [vmem:[%s247 + $0x112] sm:$0xff]
        %v1985 = vld [vmem:[%s247 + $0x122] sm:$0xff]
        %v1986 = vld [vmem:[%s247 + $0x12a] sm:$0xff]
        %v1987 = vld [vmem:[%s247 + $0x13a] sm:$0xff]
        %v1988 = vld [vmem:[%s247 + $0x142] sm:$0xff]
        %v1989 = vld [vmem:[%s247 + $0x152] sm:$0xff]
        %v1990 = vld [vmem:[%s247 + $0x15a] sm:$0xff]
        %v1991 = vld [vmem:[%s247 + $0x16a] sm:$0xff]
        %v1992 = vld [vmem:[%s247 + $0x172] sm:$0xff]
        %2025 = vrot.lane.b32.xlu0 %v1961, 8
        %v2026 = vpop.permute.xlu0 %2025
        %2027 = vrot.lane.b32.xlu0 %v1962, 8
        %v2028 = vpop.permute.xlu0 %2027
        %2029 = vrot.lane.b32.xlu0 %v1963, 8
        %v2030 = vpop.permute.xlu0 %2029
        %2031 = vrot.lane.b32.xlu0 %v1964, 8
        %v2032 = vpop.permute.xlu0 %2031
        %2033 = vrot.lane.b32.xlu0 %v1965, 8
        %v2034 = vpop.permute.xlu0 %2033
        %2035 = vrot.lane.b32.xlu0 %v1966, 8
        %v2036 = vpop.permute.xlu0 %2035
        %2037 = vrot.lane.b32.xlu0 %v1967, 8
        %v2038 = vpop.permute.xlu0 %2037
        %2039 = vrot.lane.b32.xlu0 %v1968, 8
        %v2040 = vpop.permute.xlu0 %2039
        %2041 = vrot.lane.b32.xlu0 %v1969, 8
        %v2042 = vpop.permute.xlu0 %2041
        %2043 = vrot.lane.b32.xlu0 %v1970, 8
        %v2044 = vpop.permute.xlu0 %2043
        %2045 = vrot.lane.b32.xlu0 %v1971, 8
        %v2046 = vpop.permute.xlu0 %2045
        %2047 = vrot.lane.b32.xlu0 %v1972, 8
        %v2048 = vpop.permute.xlu0 %2047
        %2049 = vrot.lane.b32.xlu0 %v1973, 8
        %v2050 = vpop.permute.xlu0 %2049
        %2051 = vrot.lane.b32.xlu0 %v1974, 8
        %v2052 = vpop.permute.xlu0 %2051
        %2053 = vrot.lane.b32.xlu0 %v1975, 8
        %v2054 = vpop.permute.xlu0 %2053
        %2055 = vrot.lane.b32.xlu0 %v1976, 8
        %v2056 = vpop.permute.xlu0 %2055
        %2057 = vrot.lane.b32.xlu0 %v1977, 8
        %v2058 = vpop.permute.xlu0 %2057
        %2059 = vrot.lane.b32.xlu0 %v1978, 8
        %v2060 = vpop.permute.xlu0 %2059
        %2061 = vrot.lane.b32.xlu0 %v1979, 8
        %v2062 = vpop.permute.xlu0 %2061
        %2063 = vrot.lane.b32.xlu0 %v1980, 8
        %v2064 = vpop.permute.xlu0 %2063
        %2065 = vrot.lane.b32.xlu0 %v1981, 8
        %v2066 = vpop.permute.xlu0 %2065
        %2067 = vrot.lane.b32.xlu0 %v1982, 8
        %v2068 = vpop.permute.xlu0 %2067
        %2069 = vrot.lane.b32.xlu0 %v1983, 8
        %v2070 = vpop.permute.xlu0 %2069
        %2071 = vrot.lane.b32.xlu0 %v1984, 8
        %v2072 = vpop.permute.xlu0 %2071
        %2073 = vrot.lane.b32.xlu0 %v1985, 8
        %v2074 = vpop.permute.xlu0 %2073
        %2075 = vrot.lane.b32.xlu0 %v1986, 8
        %v2076 = vpop.permute.xlu0 %2075
        %2077 = vrot.lane.b32.xlu0 %v1987, 8
        %v2078 = vpop.permute.xlu0 %2077
        %2079 = vrot.lane.b32.xlu0 %v1988, 8
        %v2080 = vpop.permute.xlu0 %2079
        %2081 = vrot.lane.b32.xlu0 %v1989, 8
        %v2082 = vpop.permute.xlu0 %2081
        %2083 = vrot.lane.b32.xlu0 %v1990, 8
        %v2084 = vpop.permute.xlu0 %2083
        %2085 = vrot.lane.b32.xlu0 %v1991, 8
        %v2086 = vpop.permute.xlu0 %2085
        %2087 = vrot.lane.b32.xlu0 %v1992, 8
        %v2088 = vpop.permute.xlu0 %2087
        %2121 = vst.msk [vmem:[#allocation3] sm:$0xff] %vm698, %v2026
        %2122 = vst.msk [vmem:[#allocation3 + $0x8] sm:$0xff] %vm698, %v2028
        %2123 = vst.msk [vmem:[#allocation3 + $0x10] sm:$0xff] %vm698, %v2030
        %2124 = vst.msk [vmem:[#allocation3 + $0x18] sm:$0xff] %vm698, %v2032
        %2125 = vst.msk [vmem:[#allocation3 + $0x20] sm:$0xff] %vm698, %v2034
        %2126 = vst.msk [vmem:[#allocation3 + $0x28] sm:$0xff] %vm698, %v2036
        %2127 = vst.msk [vmem:[#allocation3 + $0x30] sm:$0xff] %vm698, %v2038
        %2128 = vst.msk [vmem:[#allocation3 + $0x38] sm:$0xff] %vm698, %v2040
        %2129 = vst.msk [vmem:[#allocation3 + $0x40] sm:$0xff] %vm698, %v2042
        %2130 = vst.msk [vmem:[#allocation3 + $0x48] sm:$0xff] %vm698, %v2044
        %2131 = vst.msk [vmem:[#allocation3 + $0x50] sm:$0xff] %vm698, %v2046
        %2132 = vst.msk [vmem:[#allocation3 + $0x58] sm:$0xff] %vm698, %v2048
        %2133 = vst.msk [vmem:[#allocation3 + $0x60] sm:$0xff] %vm698, %v2050
        %2134 = vst.msk [vmem:[#allocation3 + $0x68] sm:$0xff] %vm698, %v2052
        %2135 = vst.msk [vmem:[#allocation3 + $0x70] sm:$0xff] %vm698, %v2054
        %2136 = vst.msk [vmem:[#allocation3 + $0x78] sm:$0xff] %vm698, %v2056
        %2137 = vst.msk [vmem:[#allocation3 + $0x80] sm:$0xff] %vm698, %v2058
        %2138 = vst.msk [vmem:[#allocation3 + $0x88] sm:$0xff] %vm698, %v2060
        %2139 = vst.msk [vmem:[#allocation3 + $0x90] sm:$0xff] %vm698, %v2062
        %2140 = vst.msk [vmem:[#allocation3 + $0x98] sm:$0xff] %vm698, %v2064
        %2141 = vst.msk [vmem:[#allocation3 + $0xa0] sm:$0xff] %vm698, %v2066
        %2142 = vst.msk [vmem:[#allocation3 + $0xa8] sm:$0xff] %vm698, %v2068
        %2143 = vst.msk [vmem:[#allocation3 + $0xb0] sm:$0xff] %vm698, %v2070
        %2144 = vst.msk [vmem:[#allocation3 + $0xb8] sm:$0xff] %vm698, %v2072
        %2145 = vst.msk [vmem:[#allocation3 + $0xc0] sm:$0xff] %vm698, %v2074
        %2146 = vst.msk [vmem:[#allocation3 + $0xc8] sm:$0xff] %vm698, %v2076
        %2147 = vst.msk [vmem:[#allocation3 + $0xd0] sm:$0xff] %vm698, %v2078
        %2148 = vst.msk [vmem:[#allocation3 + $0xd8] sm:$0xff] %vm698, %v2080
        %2149 = vst.msk [vmem:[#allocation3 + $0xe0] sm:$0xff] %vm698, %v2082
        %2150 = vst.msk [vmem:[#allocation3 + $0xe8] sm:$0xff] %vm698, %v2084
        %2151 = vst.msk [vmem:[#allocation3 + $0xf0] sm:$0xff] %vm698, %v2086
        %2152 = vst.msk [vmem:[#allocation3 + $0xf8] sm:$0xff] %vm698, %v2088
        %s2153 = scalar_lea.vmem [#allocation2], 48
        %v2154 = vld [vmem:[%s2153] sm:$0xff]
        %v2155 = vld [vmem:[%s2153 + $0x8] sm:$0xff]
        %v2156 = vld [vmem:[%s2153 + $0x18] sm:$0xff]
        %v2157 = vld [vmem:[%s2153 + $0x20] sm:$0xff]
        %v2158 = vld [vmem:[%s2153 + $0x30] sm:$0xff]
        %v2159 = vld [vmem:[%s2153 + $0x38] sm:$0xff]
        %v2160 = vld [vmem:[%s2153 + $0x48] sm:$0xff]
        %v2161 = vld [vmem:[%s2153 + $0x50] sm:$0xff]
        %v2162 = vld [vmem:[%s2153 + $0x60] sm:$0xff]
        %v2163 = vld [vmem:[%s2153 + $0x68] sm:$0xff]
        %v2164 = vld [vmem:[%s2153 + $0x78] sm:$0xff]
        %v2165 = vld [vmem:[%s2153 + $0x80] sm:$0xff]
        %v2166 = vld [vmem:[%s2153 + $0x90] sm:$0xff]
        %v2167 = vld [vmem:[%s2153 + $0x98] sm:$0xff]
        %v2168 = vld [vmem:[%s2153 + $0xa8] sm:$0xff]
        %v2169 = vld [vmem:[%s2153 + $0xb0] sm:$0xff]
        %v2170 = vld [vmem:[%s2153 + $0xc0] sm:$0xff]
        %v2171 = vld [vmem:[%s2153 + $0xc8] sm:$0xff]
        %v2172 = vld [vmem:[%s2153 + $0xd8] sm:$0xff]
        %v2173 = vld [vmem:[%s2153 + $0xe0] sm:$0xff]
        %v2174 = vld [vmem:[%s2153 + $0xf0] sm:$0xff]
        %v2175 = vld [vmem:[%s2153 + $0xf8] sm:$0xff]
        %v2176 = vld [vmem:[%s2153 + $0x108] sm:$0xff]
        %v2177 = vld [vmem:[%s2153 + $0x110] sm:$0xff]
        %v2178 = vld [vmem:[%s2153 + $0x120] sm:$0xff]
        %v2179 = vld [vmem:[%s2153 + $0x128] sm:$0xff]
        %v2180 = vld [vmem:[%s2153 + $0x138] sm:$0xff]
        %v2181 = vld [vmem:[%s2153 + $0x140] sm:$0xff]
        %v2182 = vld [vmem:[%s2153 + $0x150] sm:$0xff]
        %v2183 = vld [vmem:[%s2153 + $0x158] sm:$0xff]
        %v2184 = vld [vmem:[%s2153 + $0x168] sm:$0xff]
        %v2185 = vld [vmem:[%s2153 + $0x170] sm:$0xff]
        %2218 = vrot.lane.b32.xlu0 %v2154, 12
        %v2219 = vpop.permute.xlu0 %2218
        %2220 = vrot.lane.b32.xlu0 %v2155, 12
        %v2221 = vpop.permute.xlu0 %2220
        %2222 = vrot.lane.b32.xlu0 %v2156, 12
        %v2223 = vpop.permute.xlu0 %2222
        %2224 = vrot.lane.b32.xlu0 %v2157, 12
        %v2225 = vpop.permute.xlu0 %2224
        %2226 = vrot.lane.b32.xlu0 %v2158, 12
        %v2227 = vpop.permute.xlu0 %2226
        %2228 = vrot.lane.b32.xlu0 %v2159, 12
        %v2229 = vpop.permute.xlu0 %2228
        %2230 = vrot.lane.b32.xlu0 %v2160, 12
        %v2231 = vpop.permute.xlu0 %2230
        %2232 = vrot.lane.b32.xlu0 %v2161, 12
        %v2233 = vpop.permute.xlu0 %2232
        %2234 = vrot.lane.b32.xlu0 %v2162, 12
        %v2235 = vpop.permute.xlu0 %2234
        %2236 = vrot.lane.b32.xlu0 %v2163, 12
        %v2237 = vpop.permute.xlu0 %2236
        %2238 = vrot.lane.b32.xlu0 %v2164, 12
        %v2239 = vpop.permute.xlu0 %2238
        %2240 = vrot.lane.b32.xlu0 %v2165, 12
        %v2241 = vpop.permute.xlu0 %2240
        %2242 = vrot.lane.b32.xlu0 %v2166, 12
        %v2243 = vpop.permute.xlu0 %2242
        %2244 = vrot.lane.b32.xlu0 %v2167, 12
        %v2245 = vpop.permute.xlu0 %2244
        %2246 = vrot.lane.b32.xlu0 %v2168, 12
        %v2247 = vpop.permute.xlu0 %2246
        %2248 = vrot.lane.b32.xlu0 %v2169, 12
        %v2249 = vpop.permute.xlu0 %2248
        %2250 = vrot.lane.b32.xlu0 %v2170, 12
        %v2251 = vpop.permute.xlu0 %2250
        %2252 = vrot.lane.b32.xlu0 %v2171, 12
        %v2253 = vpop.permute.xlu0 %2252
        %2254 = vrot.lane.b32.xlu0 %v2172, 12
        %v2255 = vpop.permute.xlu0 %2254
        %2256 = vrot.lane.b32.xlu0 %v2173, 12
        %v2257 = vpop.permute.xlu0 %2256
        %2258 = vrot.lane.b32.xlu0 %v2174, 12
        %v2259 = vpop.permute.xlu0 %2258
        %2260 = vrot.lane.b32.xlu0 %v2175, 12
        %v2261 = vpop.permute.xlu0 %2260
        %2262 = vrot.lane.b32.xlu0 %v2176, 12
        %v2263 = vpop.permute.xlu0 %2262
        %2264 = vrot.lane.b32.xlu0 %v2177, 12
        %v2265 = vpop.permute.xlu0 %2264
        %2266 = vrot.lane.b32.xlu0 %v2178, 12
        %v2267 = vpop.permute.xlu0 %2266
        %2268 = vrot.lane.b32.xlu0 %v2179, 12
        %v2269 = vpop.permute.xlu0 %2268
        %2270 = vrot.lane.b32.xlu0 %v2180, 12
        %v2271 = vpop.permute.xlu0 %2270
        %2272 = vrot.lane.b32.xlu0 %v2181, 12
        %v2273 = vpop.permute.xlu0 %2272
        %2274 = vrot.lane.b32.xlu0 %v2182, 12
        %v2275 = vpop.permute.xlu0 %2274
        %2276 = vrot.lane.b32.xlu0 %v2183, 12
        %v2277 = vpop.permute.xlu0 %2276
        %2278 = vrot.lane.b32.xlu0 %v2184, 12
        %v2279 = vpop.permute.xlu0 %2278
        %2280 = vrot.lane.b32.xlu0 %v2185, 12
        %v2281 = vpop.permute.xlu0 %2280
        %2314 = vst.msk [vmem:[#allocation3] sm:$0xff] %vm891, %v2219
        %2315 = vst.msk [vmem:[#allocation3 + $0x8] sm:$0xff] %vm891, %v2221
        %2316 = vst.msk [vmem:[#allocation3 + $0x10] sm:$0xff] %vm891, %v2223
        %2317 = vst.msk [vmem:[#allocation3 + $0x18] sm:$0xff] %vm891, %v2225
        %2318 = vst.msk [vmem:[#allocation3 + $0x20] sm:$0xff] %vm891, %v2227
        %2319 = vst.msk [vmem:[#allocation3 + $0x28] sm:$0xff] %vm891, %v2229
        %2320 = vst.msk [vmem:[#allocation3 + $0x30] sm:$0xff] %vm891, %v2231
        %2321 = vst.msk [vmem:[#allocation3 + $0x38] sm:$0xff] %vm891, %v2233
        %2322 = vst.msk [vmem:[#allocation3 + $0x40] sm:$0xff] %vm891, %v2235
        %2323 = vst.msk [vmem:[#allocation3 + $0x48] sm:$0xff] %vm891, %v2237
        %2324 = vst.msk [vmem:[#allocation3 + $0x50] sm:$0xff] %vm891, %v2239
        %2325 = vst.msk [vmem:[#allocation3 + $0x58] sm:$0xff] %vm891, %v2241
        %2326 = vst.msk [vmem:[#allocation3 + $0x60] sm:$0xff] %vm891, %v2243
        %2327 = vst.msk [vmem:[#allocation3 + $0x68] sm:$0xff] %vm891, %v2245
        %2328 = vst.msk [vmem:[#allocation3 + $0x70] sm:$0xff] %vm891, %v2247
        %2329 = vst.msk [vmem:[#allocation3 + $0x78] sm:$0xff] %vm891, %v2249
        %2330 = vst.msk [vmem:[#allocation3 + $0x80] sm:$0xff] %vm891, %v2251
        %2331 = vst.msk [vmem:[#allocation3 + $0x88] sm:$0xff] %vm891, %v2253
        %2332 = vst.msk [vmem:[#allocation3 + $0x90] sm:$0xff] %vm891, %v2255
        %2333 = vst.msk [vmem:[#allocation3 + $0x98] sm:$0xff] %vm891, %v2257
        %2334 = vst.msk [vmem:[#allocation3 + $0xa0] sm:$0xff] %vm891, %v2259
        %2335 = vst.msk [vmem:[#allocation3 + $0xa8] sm:$0xff] %vm891, %v2261
        %2336 = vst.msk [vmem:[#allocation3 + $0xb0] sm:$0xff] %vm891, %v2263
        %2337 = vst.msk [vmem:[#allocation3 + $0xb8] sm:$0xff] %vm891, %v2265
        %2338 = vst.msk [vmem:[#allocation3 + $0xc0] sm:$0xff] %vm891, %v2267
        %2339 = vst.msk [vmem:[#allocation3 + $0xc8] sm:$0xff] %vm891, %v2269
        %2340 = vst.msk [vmem:[#allocation3 + $0xd0] sm:$0xff] %vm891, %v2271
        %2341 = vst.msk [vmem:[#allocation3 + $0xd8] sm:$0xff] %vm891, %v2273
        %2342 = vst.msk [vmem:[#allocation3 + $0xe0] sm:$0xff] %vm891, %v2275
        %2343 = vst.msk [vmem:[#allocation3 + $0xe8] sm:$0xff] %vm891, %v2277
        %2344 = vst.msk [vmem:[#allocation3 + $0xf0] sm:$0xff] %vm891, %v2279
        %2345 = vst.msk [vmem:[#allocation3 + $0xf8] sm:$0xff] %vm891, %v2281
        %v2346 = vld [vmem:[%s2153 + $0x1] sm:$0xff]
        %v2347 = vld [vmem:[%s2153 + $0x9] sm:$0xff]
        %v2348 = vld [vmem:[%s2153 + $0x19] sm:$0xff]
        %v2349 = vld [vmem:[%s2153 + $0x21] sm:$0xff]
        %v2350 = vld [vmem:[%s2153 + $0x31] sm:$0xff]
        %v2351 = vld [vmem:[%s2153 + $0x39] sm:$0xff]
        %v2352 = vld [vmem:[%s2153 + $0x49] sm:$0xff]
        %v2353 = vld [vmem:[%s2153 + $0x51] sm:$0xff]
        %v2354 = vld [vmem:[%s2153 + $0x61] sm:$0xff]
        %v2355 = vld [vmem:[%s2153 + $0x69] sm:$0xff]
        %v2356 = vld [vmem:[%s2153 + $0x79] sm:$0xff]
        %v2357 = vld [vmem:[%s2153 + $0x81] sm:$0xff]
        %v2358 = vld [vmem:[%s2153 + $0x91] sm:$0xff]
        %v2359 = vld [vmem:[%s2153 + $0x99] sm:$0xff]
        %v2360 = vld [vmem:[%s2153 + $0xa9] sm:$0xff]
        %v2361 = vld [vmem:[%s2153 + $0xb1] sm:$0xff]
        %v2362 = vld [vmem:[%s2153 + $0xc1] sm:$0xff]
        %v2363 = vld [vmem:[%s2153 + $0xc9] sm:$0xff]
        %v2364 = vld [vmem:[%s2153 + $0xd9] sm:$0xff]
        %v2365 = vld [vmem:[%s2153 + $0xe1] sm:$0xff]
        %v2366 = vld [vmem:[%s2153 + $0xf1] sm:$0xff]
        %v2367 = vld [vmem:[%s2153 + $0xf9] sm:$0xff]
        %v2368 = vld [vmem:[%s2153 + $0x109] sm:$0xff]
        %v2369 = vld [vmem:[%s2153 + $0x111] sm:$0xff]
        %v2370 = vld [vmem:[%s2153 + $0x121] sm:$0xff]
        %v2371 = vld [vmem:[%s2153 + $0x129] sm:$0xff]
        %v2372 = vld [vmem:[%s2153 + $0x139] sm:$0xff]
        %v2373 = vld [vmem:[%s2153 + $0x141] sm:$0xff]
        %v2374 = vld [vmem:[%s2153 + $0x151] sm:$0xff]
        %v2375 = vld [vmem:[%s2153 + $0x159] sm:$0xff]
        %v2376 = vld [vmem:[%s2153 + $0x169] sm:$0xff]
        %v2377 = vld [vmem:[%s2153 + $0x171] sm:$0xff]
        %2410 = vrot.lane.b32.xlu0 %v2346, 16
        %v2411 = vpop.permute.xlu0 %2410
        %2412 = vrot.lane.b32.xlu0 %v2347, 16
        %v2413 = vpop.permute.xlu0 %2412
        %2414 = vrot.lane.b32.xlu0 %v2348, 16
        %v2415 = vpop.permute.xlu0 %2414
        %2416 = vrot.lane.b32.xlu0 %v2349, 16
        %v2417 = vpop.permute.xlu0 %2416
        %2418 = vrot.lane.b32.xlu0 %v2350, 16
        %v2419 = vpop.permute.xlu0 %2418
        %2420 = vrot.lane.b32.xlu0 %v2351, 16
        %v2421 = vpop.permute.xlu0 %2420
        %2422 = vrot.lane.b32.xlu0 %v2352, 16
        %v2423 = vpop.permute.xlu0 %2422
        %2424 = vrot.lane.b32.xlu0 %v2353, 16
        %v2425 = vpop.permute.xlu0 %2424
        %2426 = vrot.lane.b32.xlu0 %v2354, 16
        %v2427 = vpop.permute.xlu0 %2426
        %2428 = vrot.lane.b32.xlu0 %v2355, 16
        %v2429 = vpop.permute.xlu0 %2428
        %2430 = vrot.lane.b32.xlu0 %v2356, 16
        %v2431 = vpop.permute.xlu0 %2430
        %2432 = vrot.lane.b32.xlu0 %v2357, 16
        %v2433 = vpop.permute.xlu0 %2432
        %2434 = vrot.lane.b32.xlu0 %v2358, 16
        %v2435 = vpop.permute.xlu0 %2434
        %2436 = vrot.lane.b32.xlu0 %v2359, 16
        %v2437 = vpop.permute.xlu0 %2436
        %2438 = vrot.lane.b32.xlu0 %v2360, 16
        %v2439 = vpop.permute.xlu0 %2438
        %2440 = vrot.lane.b32.xlu0 %v2361, 16
        %v2441 = vpop.permute.xlu0 %2440
        %2442 = vrot.lane.b32.xlu0 %v2362, 16
        %v2443 = vpop.permute.xlu0 %2442
        %2444 = vrot.lane.b32.xlu0 %v2363, 16
        %v2445 = vpop.permute.xlu0 %2444
        %2446 = vrot.lane.b32.xlu0 %v2364, 16
        %v2447 = vpop.permute.xlu0 %2446
        %2448 = vrot.lane.b32.xlu0 %v2365, 16
        %v2449 = vpop.permute.xlu0 %2448
        %2450 = vrot.lane.b32.xlu0 %v2366, 16
        %v2451 = vpop.permute.xlu0 %2450
        %2452 = vrot.lane.b32.xlu0 %v2367, 16
        %v2453 = vpop.permute.xlu0 %2452
        %2454 = vrot.lane.b32.xlu0 %v2368, 16
        %v2455 = vpop.permute.xlu0 %2454
        %2456 = vrot.lane.b32.xlu0 %v2369, 16
        %v2457 = vpop.permute.xlu0 %2456
        %2458 = vrot.lane.b32.xlu0 %v2370, 16
        %v2459 = vpop.permute.xlu0 %2458
        %2460 = vrot.lane.b32.xlu0 %v2371, 16
        %v2461 = vpop.permute.xlu0 %2460
        %2462 = vrot.lane.b32.xlu0 %v2372, 16
        %v2463 = vpop.permute.xlu0 %2462
        %2464 = vrot.lane.b32.xlu0 %v2373, 16
        %v2465 = vpop.permute.xlu0 %2464
        %2466 = vrot.lane.b32.xlu0 %v2374, 16
        %v2467 = vpop.permute.xlu0 %2466
        %2468 = vrot.lane.b32.xlu0 %v2375, 16
        %v2469 = vpop.permute.xlu0 %2468
        %2470 = vrot.lane.b32.xlu0 %v2376, 16
        %v2471 = vpop.permute.xlu0 %2470
        %2472 = vrot.lane.b32.xlu0 %v2377, 16
        %v2473 = vpop.permute.xlu0 %2472
        %2506 = vst.msk [vmem:[#allocation3] sm:$0xff] %vm1084, %v2411
        %2507 = vst.msk [vmem:[#allocation3 + $0x8] sm:$0xff] %vm1084, %v2413
        %2508 = vst.msk [vmem:[#allocation3 + $0x10] sm:$0xff] %vm1084, %v2415
        %2509 = vst.msk [vmem:[#allocation3 + $0x18] sm:$0xff] %vm1084, %v2417
        %2510 = vst.msk [vmem:[#allocation3 + $0x20] sm:$0xff] %vm1084, %v2419
        %2511 = vst.msk [vmem:[#allocation3 + $0x28] sm:$0xff] %vm1084, %v2421
        %2512 = vst.msk [vmem:[#allocation3 + $0x30] sm:$0xff] %vm1084, %v2423
        %2513 = vst.msk [vmem:[#allocation3 + $0x38] sm:$0xff] %vm1084, %v2425
        %2514 = vst.msk [vmem:[#allocation3 + $0x40] sm:$0xff] %vm1084, %v2427
        %2515 = vst.msk [vmem:[#allocation3 + $0x48] sm:$0xff] %vm1084, %v2429
        %2516 = vst.msk [vmem:[#allocation3 + $0x50] sm:$0xff] %vm1084, %v2431
        %2517 = vst.msk [vmem:[#allocation3 + $0x58] sm:$0xff] %vm1084, %v2433
        %2518 = vst.msk [vmem:[#allocation3 + $0x60] sm:$0xff] %vm1084, %v2435
        %2519 = vst.msk [vmem:[#allocation3 + $0x68] sm:$0xff] %vm1084, %v2437
        %2520 = vst.msk [vmem:[#allocation3 + $0x70] sm:$0xff] %vm1084, %v2439
        %2521 = vst.msk [vmem:[#allocation3 + $0x78] sm:$0xff] %vm1084, %v2441
        %2522 = vst.msk [vmem:[#allocation3 + $0x80] sm:$0xff] %vm1084, %v2443
        %2523 = vst.msk [vmem:[#allocation3 + $0x88] sm:$0xff] %vm1084, %v2445
        %2524 = vst.msk [vmem:[#allocation3 + $0x90] sm:$0xff] %vm1084, %v2447
        %2525 = vst.msk [vmem:[#allocation3 + $0x98] sm:$0xff] %vm1084, %v2449
        %2526 = vst.msk [vmem:[#allocation3 + $0xa0] sm:$0xff] %vm1084, %v2451
        %2527 = vst.msk [vmem:[#allocation3 + $0xa8] sm:$0xff] %vm1084, %v2453
        %2528 = vst.msk [vmem:[#allocation3 + $0xb0] sm:$0xff] %vm1084, %v2455
        %2529 = vst.msk [vmem:[#allocation3 + $0xb8] sm:$0xff] %vm1084, %v2457
        %2530 = vst.msk [vmem:[#allocation3 + $0xc0] sm:$0xff] %vm1084, %v2459
        %2531 = vst.msk [vmem:[#allocation3 + $0xc8] sm:$0xff] %vm1084, %v2461
        %2532 = vst.msk [vmem:[#allocation3 + $0xd0] sm:$0xff] %vm1084, %v2463
        %2533 = vst.msk [vmem:[#allocation3 + $0xd8] sm:$0xff] %vm1084, %v2465
        %2534 = vst.msk [vmem:[#allocation3 + $0xe0] sm:$0xff] %vm1084, %v2467
        %2535 = vst.msk [vmem:[#allocation3 + $0xe8] sm:$0xff] %vm1084, %v2469
        %2536 = vst.msk [vmem:[#allocation3 + $0xf0] sm:$0xff] %vm1084, %v2471
        %2537 = vst.msk [vmem:[#allocation3 + $0xf8] sm:$0xff] %vm1084, %v2473
        %v2538 = vld [vmem:[%s2153 + $0x2] sm:$0xff]
        %v2539 = vld [vmem:[%s2153 + $0xa] sm:$0xff]
        %v2540 = vld [vmem:[%s2153 + $0x1a] sm:$0xff]
        %v2541 = vld [vmem:[%s2153 + $0x22] sm:$0xff]
        %v2542 = vld [vmem:[%s2153 + $0x32] sm:$0xff]
        %v2543 = vld [vmem:[%s2153 + $0x3a] sm:$0xff]
        %v2544 = vld [vmem:[%s2153 + $0x4a] sm:$0xff]
        %v2545 = vld [vmem:[%s2153 + $0x52] sm:$0xff]
        %v2546 = vld [vmem:[%s2153 + $0x62] sm:$0xff]
        %v2547 = vld [vmem:[%s2153 + $0x6a] sm:$0xff]
        %v2548 = vld [vmem:[%s2153 + $0x7a] sm:$0xff]
        %v2549 = vld [vmem:[%s2153 + $0x82] sm:$0xff]
        %v2550 = vld [vmem:[%s2153 + $0x92] sm:$0xff]
        %v2551 = vld [vmem:[%s2153 + $0x9a] sm:$0xff]
        %v2552 = vld [vmem:[%s2153 + $0xaa] sm:$0xff]
        %v2553 = vld [vmem:[%s2153 + $0xb2] sm:$0xff]
        %v2554 = vld [vmem:[%s2153 + $0xc2] sm:$0xff]
        %v2555 = vld [vmem:[%s2153 + $0xca] sm:$0xff]
        %v2556 = vld [vmem:[%s2153 + $0xda] sm:$0xff]
        %v2557 = vld [vmem:[%s2153 + $0xe2] sm:$0xff]
        %v2558 = vld [vmem:[%s2153 + $0xf2] sm:$0xff]
        %v2559 = vld [vmem:[%s2153 + $0xfa] sm:$0xff]
        %v2560 = vld [vmem:[%s2153 + $0x10a] sm:$0xff]
        %v2561 = vld [vmem:[%s2153 + $0x112] sm:$0xff]
        %v2562 = vld [vmem:[%s2153 + $0x122] sm:$0xff]
        %v2563 = vld [vmem:[%s2153 + $0x12a] sm:$0xff]
        %v2564 = vld [vmem:[%s2153 + $0x13a] sm:$0xff]
        %v2565 = vld [vmem:[%s2153 + $0x142] sm:$0xff]
        %v2566 = vld [vmem:[%s2153 + $0x152] sm:$0xff]
        %v2567 = vld [vmem:[%s2153 + $0x15a] sm:$0xff]
        %v2568 = vld [vmem:[%s2153 + $0x16a] sm:$0xff]
        %v2569 = vld [vmem:[%s2153 + $0x172] sm:$0xff]
        %2602 = vrot.lane.b32.xlu0 %v2538, 20
        %v2603 = vpop.permute.xlu0 %2602
        %2604 = vrot.lane.b32.xlu0 %v2539, 20
        %v2605 = vpop.permute.xlu0 %2604
        %2606 = vrot.lane.b32.xlu0 %v2540, 20
        %v2607 = vpop.permute.xlu0 %2606
        %2608 = vrot.lane.b32.xlu0 %v2541, 20
        %v2609 = vpop.permute.xlu0 %2608
        %2610 = vrot.lane.b32.xlu0 %v2542, 20
        %v2611 = vpop.permute.xlu0 %2610
        %2612 = vrot.lane.b32.xlu0 %v2543, 20
        %v2613 = vpop.permute.xlu0 %2612
        %2614 = vrot.lane.b32.xlu0 %v2544, 20
        %v2615 = vpop.permute.xlu0 %2614
        %2616 = vrot.lane.b32.xlu0 %v2545, 20
        %v2617 = vpop.permute.xlu0 %2616
        %2618 = vrot.lane.b32.xlu0 %v2546, 20
        %v2619 = vpop.permute.xlu0 %2618
        %2620 = vrot.lane.b32.xlu0 %v2547, 20
        %v2621 = vpop.permute.xlu0 %2620
        %2622 = vrot.lane.b32.xlu0 %v2548, 20
        %v2623 = vpop.permute.xlu0 %2622
        %2624 = vrot.lane.b32.xlu0 %v2549, 20
        %v2625 = vpop.permute.xlu0 %2624
        %2626 = vrot.lane.b32.xlu0 %v2550, 20
        %v2627 = vpop.permute.xlu0 %2626
        %2628 = vrot.lane.b32.xlu0 %v2551, 20
        %v2629 = vpop.permute.xlu0 %2628
        %2630 = vrot.lane.b32.xlu0 %v2552, 20
        %v2631 = vpop.permute.xlu0 %2630
        %2632 = vrot.lane.b32.xlu0 %v2553, 20
        %v2633 = vpop.permute.xlu0 %2632
        %2634 = vrot.lane.b32.xlu0 %v2554, 20
        %v2635 = vpop.permute.xlu0 %2634
        %2636 = vrot.lane.b32.xlu0 %v2555, 20
        %v2637 = vpop.permute.xlu0 %2636
        %2638 = vrot.lane.b32.xlu0 %v2556, 20
        %v2639 = vpop.permute.xlu0 %2638
        %2640 = vrot.lane.b32.xlu0 %v2557, 20
        %v2641 = vpop.permute.xlu0 %2640
        %2642 = vrot.lane.b32.xlu0 %v2558, 20
        %v2643 = vpop.permute.xlu0 %2642
        %2644 = vrot.lane.b32.xlu0 %v2559, 20
        %v2645 = vpop.permute.xlu0 %2644
        %2646 = vrot.lane.b32.xlu0 %v2560, 20
        %v2647 = vpop.permute.xlu0 %2646
        %2648 = vrot.lane.b32.xlu0 %v2561, 20
        %v2649 = vpop.permute.xlu0 %2648
        %2650 = vrot.lane.b32.xlu0 %v2562, 20
        %v2651 = vpop.permute.xlu0 %2650
        %2652 = vrot.lane.b32.xlu0 %v2563, 20
        %v2653 = vpop.permute.xlu0 %2652
        %2654 = vrot.lane.b32.xlu0 %v2564, 20
        %v2655 = vpop.permute.xlu0 %2654
        %2656 = vrot.lane.b32.xlu0 %v2565, 20
        %v2657 = vpop.permute.xlu0 %2656
        %2658 = vrot.lane.b32.xlu0 %v2566, 20
        %v2659 = vpop.permute.xlu0 %2658
        %2660 = vrot.lane.b32.xlu0 %v2567, 20
        %v2661 = vpop.permute.xlu0 %2660
        %2662 = vrot.lane.b32.xlu0 %v2568, 20
        %v2663 = vpop.permute.xlu0 %2662
        %2664 = vrot.lane.b32.xlu0 %v2569, 20
        %v2665 = vpop.permute.xlu0 %2664
        %2698 = vst.msk [vmem:[#allocation3] sm:$0xff] %vm1277, %v2603
        %2699 = vst.msk [vmem:[#allocation3 + $0x8] sm:$0xff] %vm1277, %v2605
        %2700 = vst.msk [vmem:[#allocation3 + $0x10] sm:$0xff] %vm1277, %v2607
        %2701 = vst.msk [vmem:[#allocation3 + $0x18] sm:$0xff] %vm1277, %v2609
        %2702 = vst.msk [vmem:[#allocation3 + $0x20] sm:$0xff] %vm1277, %v2611
        %2703 = vst.msk [vmem:[#allocation3 + $0x28] sm:$0xff] %vm1277, %v2613
        %2704 = vst.msk [vmem:[#allocation3 + $0x30] sm:$0xff] %vm1277, %v2615
        %2705 = vst.msk [vmem:[#allocation3 + $0x38] sm:$0xff] %vm1277, %v2617
        %2706 = vst.msk [vmem:[#allocation3 + $0x40] sm:$0xff] %vm1277, %v2619
        %2707 = vst.msk [vmem:[#allocation3 + $0x48] sm:$0xff] %vm1277, %v2621
        %2708 = vst.msk [vmem:[#allocation3 + $0x50] sm:$0xff] %vm1277, %v2623
        %2709 = vst.msk [vmem:[#allocation3 + $0x58] sm:$0xff] %vm1277, %v2625
        %2710 = vst.msk [vmem:[#allocation3 + $0x60] sm:$0xff] %vm1277, %v2627
        %2711 = vst.msk [vmem:[#allocation3 + $0x68] sm:$0xff] %vm1277, %v2629
        %2712 = vst.msk [vmem:[#allocation3 + $0x70] sm:$0xff] %vm1277, %v2631
        %2713 = vst.msk [vmem:[#allocation3 + $0x78] sm:$0xff] %vm1277, %v2633
        %2714 = vst.msk [vmem:[#allocation3 + $0x80] sm:$0xff] %vm1277, %v2635
        %2715 = vst.msk [vmem:[#allocation3 + $0x88] sm:$0xff] %vm1277, %v2637
        %2716 = vst.msk [vmem:[#allocation3 + $0x90] sm:$0xff] %vm1277, %v2639
        %2717 = vst.msk [vmem:[#allocation3 + $0x98] sm:$0xff] %vm1277, %v2641
        %2718 = vst.msk [vmem:[#allocation3 + $0xa0] sm:$0xff] %vm1277, %v2643
        %2719 = vst.msk [vmem:[#allocation3 + $0xa8] sm:$0xff] %vm1277, %v2645
        %2720 = vst.msk [vmem:[#allocation3 + $0xb0] sm:$0xff] %vm1277, %v2647
        %2721 = vst.msk [vmem:[#allocation3 + $0xb8] sm:$0xff] %vm1277, %v2649
        %2722 = vst.msk [vmem:[#allocation3 + $0xc0] sm:$0xff] %vm1277, %v2651
        %2723 = vst.msk [vmem:[#allocation3 + $0xc8] sm:$0xff] %vm1277, %v2653
        %2724 = vst.msk [vmem:[#allocation3 + $0xd0] sm:$0xff] %vm1277, %v2655
        %2725 = vst.msk [vmem:[#allocation3 + $0xd8] sm:$0xff] %vm1277, %v2657
        %2726 = vst.msk [vmem:[#allocation3 + $0xe0] sm:$0xff] %vm1277, %v2659
        %2727 = vst.msk [vmem:[#allocation3 + $0xe8] sm:$0xff] %vm1277, %v2661
        %2728 = vst.msk [vmem:[#allocation3 + $0xf0] sm:$0xff] %vm1277, %v2663
        %2729 = vst.msk [vmem:[#allocation3 + $0xf8] sm:$0xff] %vm1277, %v2665
        %v2730 = vld [vmem:[#allocation3] sm:$0xff]
        %v2731 = vld [vmem:[#allocation3 + $0x8] sm:$0xff]
        %v2732 = vld [vmem:[#allocation3 + $0x10] sm:$0xff]
        %v2733 = vld [vmem:[#allocation3 + $0x18] sm:$0xff]
        %v2734 = vld [vmem:[#allocation3 + $0x20] sm:$0xff]
        %v2735 = vld [vmem:[#allocation3 + $0x28] sm:$0xff]
        %v2736 = vld [vmem:[#allocation3 + $0x30] sm:$0xff]
        %v2737 = vld [vmem:[#allocation3 + $0x38] sm:$0xff]
        %v2738 = vld [vmem:[#allocation3 + $0x40] sm:$0xff]
        %v2739 = vld [vmem:[#allocation3 + $0x48] sm:$0xff]
        %v2740 = vld [vmem:[#allocation3 + $0x50] sm:$0xff]
        %v2741 = vld [vmem:[#allocation3 + $0x58] sm:$0xff]
        %v2742 = vld [vmem:[#allocation3 + $0x60] sm:$0xff]
        %v2743 = vld [vmem:[#allocation3 + $0x68] sm:$0xff]
        %v2744 = vld [vmem:[#allocation3 + $0x70] sm:$0xff]
        %v2745 = vld [vmem:[#allocation3 + $0x78] sm:$0xff]
        %v2746 = vld [vmem:[#allocation3 + $0x80] sm:$0xff]
        %v2747 = vld [vmem:[#allocation3 + $0x88] sm:$0xff]
        %v2748 = vld [vmem:[#allocation3 + $0x90] sm:$0xff]
        %v2749 = vld [vmem:[#allocation3 + $0x98] sm:$0xff]
        %v2750 = vld [vmem:[#allocation3 + $0xa0] sm:$0xff]
        %v2751 = vld [vmem:[#allocation3 + $0xa8] sm:$0xff]
        %v2752 = vld [vmem:[#allocation3 + $0xb0] sm:$0xff]
        %v2753 = vld [vmem:[#allocation3 + $0xb8] sm:$0xff]
        %v2754 = vld [vmem:[#allocation3 + $0xc0] sm:$0xff]
        %v2755 = vld [vmem:[#allocation3 + $0xc8] sm:$0xff]
        %v2756 = vld [vmem:[#allocation3 + $0xd0] sm:$0xff]
        %v2757 = vld [vmem:[#allocation3 + $0xd8] sm:$0xff]
        %v2758 = vld [vmem:[#allocation3 + $0xe0] sm:$0xff]
        %v2759 = vld [vmem:[#allocation3 + $0xe8] sm:$0xff]
        %v2760 = vld [vmem:[#allocation3 + $0xf0] sm:$0xff]
        %v2761 = vld [vmem:[#allocation3 + $0xf8] sm:$0xff]
        %s2762 = scalar_lea.vmem %s1, 24
        %v2763 = vld [vmem:[%s2762] sm:$0xff]
        %v2764 = vld [vmem:[%s2762 + $0x8] sm:$0xff]
        %v2765 = vld [vmem:[%s2762 + $0x10] sm:$0xff]
        %v2767 = vsel %vm1351, %v2730, 0
        %v2770 = vsel %vm1351, %v2731, 0
        %v2773 = vsel %vm1351, %v2732, 0
        %v2776 = vsel %vm1351, %v2733, 0
        %v2779 = vsel %vm1351, %v2734, 0
        %v2782 = vsel %vm1351, %v2735, 0
        %v2785 = vsel %vm1351, %v2736, 0
        %v2788 = vsel %vm1351, %v2737, 0
        %v2791 = vsel %vm1351, %v2738, 0
        %v2794 = vsel %vm1351, %v2739, 0
        %v2797 = vsel %vm1351, %v2740, 0
        %v2800 = vsel %vm1351, %v2741, 0
        %v2803 = vsel %vm1351, %v2742, 0
        %v2806 = vsel %vm1351, %v2743, 0
        %v2809 = vsel %vm1351, %v2744, 0
        %v2812 = vsel %vm1351, %v2745, 0
        %v2815 = vsel %vm1351, %v2746, 0
        %v2818 = vsel %vm1351, %v2747, 0
        %v2821 = vsel %vm1351, %v2748, 0
        %v2824 = vsel %vm1351, %v2749, 0
        %v2827 = vsel %vm1351, %v2750, 0
        %v2830 = vsel %vm1351, %v2751, 0
        %v2833 = vsel %vm1351, %v2752, 0
        %v2836 = vsel %vm1351, %v2753, 0
        %v2839 = vsel %vm1351, %v2754, 0
        %v2842 = vsel %vm1351, %v2755, 0
        %v2845 = vsel %vm1351, %v2756, 0
        %v2848 = vsel %vm1351, %v2757, 0
        %v2851 = vsel %vm1351, %v2758, 0
        %v2854 = vsel %vm1351, %v2759, 0
        %v2857 = vsel %vm1351, %v2760, 0
        %v2860 = vsel %vm1351, %v2761, 0
        %2862 = vmatprep.subr.mxu0 0.0
        %2863 = vmatpush1.msra.mxu0 %v2763
        %2864 = vmatprep.subr.mxu0 0.0
        %2865 = vmatpush1.msra.mxu0 %v2764
        %2866 = vmatprep.subr.mxu0 0.0
        %2867 = vmatpush1.msra.mxu0 %v2765
        %2868 = vmatprep.subr.mxu0 0.0
        %2869 = vmatpush1.msra.mxu0 0.0
        %2870 = vmatprep.subr.mxu0 0.0
        %2871 = vmatpush1.msra.mxu0 0.0
        %2872 = vmatprep.subr.mxu0 0.0
        %2873 = vmatpush1.msra.mxu0 0.0
        %2874 = vmatprep.subr.mxu0 0.0
        %2875 = vmatpush1.msra.mxu0 0.0
        %2876 = vmatprep.subr.mxu0 0.0
        %2877 = vmatpush1.msra.mxu0 0.0
        %2878 = vmatprep.subr.mxu0 0.0
        %2879 = vmatpush1.msra.mxu0 0.0
        %2880 = vmatprep.subr.mxu0 0.0
        %2881 = vmatpush1.msra.mxu0 0.0
        %2882 = vmatprep.subr.mxu0 0.0
        %2883 = vmatpush1.msra.mxu0 0.0
        %2884 = vmatprep.subr.mxu0 0.0
        %2885 = vmatpush1.msra.mxu0 0.0
        %2886 = vmatprep.subr.mxu0 0.0
        %2887 = vmatpush1.msra.mxu0 0.0
        %2888 = vmatprep.subr.mxu0 0.0
        %2889 = vmatpush1.msra.mxu0 0.0
        %2890 = vmatprep.subr.mxu0 0.0
        %2891 = vmatpush1.msra.mxu0 0.0
        %2892 = vmatprep.subr.mxu0 0.0
        %2893 = vmatpush1.msra.mxu0 0.0
        %2894 = vmatprep.subr.mxu0 0.0
        %2895 = vmatpush1.msra.mxu0 0.0
        %2896 = vmatprep.subr.mxu0 0.0
        %2897 = vmatpush1.msra.mxu0 0.0
        %2898 = vmatprep.subr.mxu0 0.0
        %2899 = vmatpush1.msra.mxu0 0.0
        %2900 = vmatprep.subr.mxu0 0.0
        %2901 = vmatpush1.msra.mxu0 0.0
        %2902 = vmatprep.subr.mxu0 0.0
        %2903 = vmatpush1.msra.mxu0 0.0
        %2904 = vmatprep.subr.mxu0 0.0
        %2905 = vmatpush1.msra.mxu0 0.0
        %2906 = vmatprep.subr.mxu0 0.0
        %2907 = vmatpush1.msra.mxu0 0.0
        %2908 = vmatprep.subr.mxu0 0.0
        %2909 = vmatpush1.msra.mxu0 0.0
        %2910 = vmatprep.subr.mxu0 0.0
        %2911 = vmatpush1.msra.mxu0 0.0
        %2912 = vmatprep.subr.mxu0 0.0
        %2913 = vmatpush1.msra.mxu0 0.0
        %2914 = vmatprep.subr.mxu0 0.0
        %2915 = vmatpush1.msra.mxu0 0.0
        %2916 = vmatprep.subr.mxu0 0.0
        %2917 = vmatpush1.msra.mxu0 0.0
        %2918 = vmatprep.subr.mxu0 0.0
        %2919 = vmatpush1.msra.mxu0 0.0
        %2920 = vmatprep.subr.mxu0 0.0
        %2921 = vmatpush1.msra.mxu0 0.0
        %2922 = vmatprep.subr.mxu0 0.0
        %2923 = vmatpush1.msra.mxu0 0.0
        %2924 = vmatprep.subr.mxu0 0.0
        %2925 = vmatpush1.msra.mxu0 0.0
        %2926 = vmatprep.mubr.f32.mxu0 0.0
        %2927 = vmatmul.mubr.f32.gmra.mrb[0].mxu0 %v2767
        %v2928 = vpop.f32.mrb[0].mxu0
        %v2929 = vadd.f32 %v1349, %v2928
        %v2930 = vpop.f32.mrb[0].mxu0
        %2931 = vmatprep.mubr.f32.mxu0 0.0
        %2932 = vmatmul.mubr.f32.gmra.mrb[0].mxu0 %v2770
        %v2933 = vpop.f32.mrb[0].mxu0
        %v2934 = vadd.f32 %v1349, %v2933
        %v2935 = vpop.f32.mrb[0].mxu0
        %2936 = vmatprep.mubr.f32.mxu0 0.0
        %2937 = vmatmul.mubr.f32.gmra.mrb[0].mxu0 %v2773
        %v2938 = vpop.f32.mrb[0].mxu0
        %v2939 = vadd.f32 %v1349, %v2938
        %v2940 = vpop.f32.mrb[0].mxu0
        %2941 = vmatprep.mubr.f32.mxu0 0.0
        %2942 = vmatmul.mubr.f32.gmra.mrb[0].mxu0 %v2776
        %v2943 = vpop.f32.mrb[0].mxu0
        %v2944 = vadd.f32 %v1349, %v2943
        %v2945 = vpop.f32.mrb[0].mxu0
        %2946 = vmatprep.mubr.f32.mxu0 0.0
        %2947 = vmatmul.mubr.f32.gmra.mrb[0].mxu0 %v2779
        %v2948 = vpop.f32.mrb[0].mxu0
        %v2949 = vadd.f32 %v1349, %v2948
        %v2950 = vpop.f32.mrb[0].mxu0
        %2951 = vmatprep.mubr.f32.mxu0 0.0
        %2952 = vmatmul.mubr.f32.gmra.mrb[0].mxu0 %v2782
        %v2953 = vpop.f32.mrb[0].mxu0
        %v2954 = vadd.f32 %v1349, %v2953
        %v2955 = vpop.f32.mrb[0].mxu0
        %2956 = vmatprep.mubr.f32.mxu0 0.0
        %2957 = vmatmul.mubr.f32.gmra.mrb[0].mxu0 %v2785
        %v2958 = vpop.f32.mrb[0].mxu0
        %v2959 = vadd.f32 %v1349, %v2958
        %v2960 = vpop.f32.mrb[0].mxu0
        %2961 = vmatprep.mubr.f32.mxu0 0.0
        %2962 = vmatmul.mubr.f32.gmra.mrb[0].mxu0 %v2788
        %v2963 = vpop.f32.mrb[0].mxu0
        %v2964 = vadd.f32 %v1349, %v2963
        %v2965 = vpop.f32.mrb[0].mxu0
        %2966 = vmatprep.mubr.f32.mxu0 0.0
        %2967 = vmatmul.mubr.f32.gmra.mrb[0].mxu0 %v2791
        %v2968 = vpop.f32.mrb[0].mxu0
        %v2969 = vadd.f32 %v1349, %v2968
        %v2970 = vpop.f32.mrb[0].mxu0
        %2971 = vmatprep.mubr.f32.mxu0 0.0
        %2972 = vmatmul.mubr.f32.gmra.mrb[0].mxu0 %v2794
        %v2973 = vpop.f32.mrb[0].mxu0
        %v2974 = vadd.f32 %v1349, %v2973
        %v2975 = vpop.f32.mrb[0].mxu0
        %2976 = vmatprep.mubr.f32.mxu0 0.0
        %2977 = vmatmul.mubr.f32.gmra.mrb[0].mxu0 %v2797
        %v2978 = vpop.f32.mrb[0].mxu0
        %v2979 = vadd.f32 %v1349, %v2978
        %v2980 = vpop.f32.mrb[0].mxu0
        %2981 = vmatprep.mubr.f32.mxu0 0.0
        %2982 = vmatmul.mubr.f32.gmra.mrb[0].mxu0 %v2800
        %v2983 = vpop.f32.mrb[0].mxu0
        %v2984 = vadd.f32 %v1349, %v2983
        %v2985 = vpop.f32.mrb[0].mxu0
        %2986 = vmatprep.mubr.f32.mxu0 0.0
        %2987 = vmatmul.mubr.f32.gmra.mrb[0].mxu0 %v2803
        %v2988 = vpop.f32.mrb[0].mxu0
        %v2989 = vadd.f32 %v1349, %v2988
        %v2990 = vpop.f32.mrb[0].mxu0
        %2991 = vmatprep.mubr.f32.mxu0 0.0
        %2992 = vmatmul.mubr.f32.gmra.mrb[0].mxu0 %v2806
        %v2993 = vpop.f32.mrb[0].mxu0
        %v2994 = vadd.f32 %v1349, %v2993
        %v2995 = vpop.f32.mrb[0].mxu0
        %2996 = vmatprep.mubr.f32.mxu0 0.0
        %2997 = vmatmul.mubr.f32.gmra.mrb[0].mxu0 %v2809
        %v2998 = vpop.f32.mrb[0].mxu0
        %v2999 = vadd.f32 %v1349, %v2998
        %v3000 = vpop.f32.mrb[0].mxu0
        %3001 = vmatprep.mubr.f32.mxu0 0.0
        %3002 = vmatmul.mubr.f32.gmra.mrb[0].mxu0 %v2812
        %v3003 = vpop.f32.mrb[0].mxu0
        %v3004 = vadd.f32 %v1349, %v3003
        %v3005 = vpop.f32.mrb[0].mxu0
        %3006 = vmatprep.mubr.f32.mxu0 0.0
        %3007 = vmatmul.mubr.f32.gmra.mrb[0].mxu0 %v2815
        %v3008 = vpop.f32.mrb[0].mxu0
        %v3009 = vadd.f32 %v1349, %v3008
        %v3010 = vpop.f32.mrb[0].mxu0
        %3011 = vmatprep.mubr.f32.mxu0 0.0
        %3012 = vmatmul.mubr.f32.gmra.mrb[0].mxu0 %v2818
        %v3013 = vpop.f32.mrb[0].mxu0
        %v3014 = vadd.f32 %v1349, %v3013
        %v3015 = vpop.f32.mrb[0].mxu0
        %3016 = vmatprep.mubr.f32.mxu0 0.0
        %3017 = vmatmul.mubr.f32.gmra.mrb[0].mxu0 %v2821
        %v3018 = vpop.f32.mrb[0].mxu0
        %v3019 = vadd.f32 %v1349, %v3018
        %v3020 = vpop.f32.mrb[0].mxu0
        %3021 = vmatprep.mubr.f32.mxu0 0.0
        %3022 = vmatmul.mubr.f32.gmra.mrb[0].mxu0 %v2824
        %v3023 = vpop.f32.mrb[0].mxu0
        %v3024 = vadd.f32 %v1349, %v3023
        %v3025 = vpop.f32.mrb[0].mxu0
        %3026 = vmatprep.mubr.f32.mxu0 0.0
        %3027 = vmatmul.mubr.f32.gmra.mrb[0].mxu0 %v2827
        %v3028 = vpop.f32.mrb[0].mxu0
        %v3029 = vadd.f32 %v1349, %v3028
        %v3030 = vpop.f32.mrb[0].mxu0
        %3031 = vmatprep.mubr.f32.mxu0 0.0
        %3032 = vmatmul.mubr.f32.gmra.mrb[0].mxu0 %v2830
        %v3033 = vpop.f32.mrb[0].mxu0
        %v3034 = vadd.f32 %v1349, %v3033
        %v3035 = vpop.f32.mrb[0].mxu0
        %3036 = vmatprep.mubr.f32.mxu0 0.0
        %3037 = vmatmul.mubr.f32.gmra.mrb[0].mxu0 %v2833
        %v3038 = vpop.f32.mrb[0].mxu0
        %v3039 = vadd.f32 %v1349, %v3038
        %v3040 = vpop.f32.mrb[0].mxu0
        %3041 = vmatprep.mubr.f32.mxu0 0.0
        %3042 = vmatmul.mubr.f32.gmra.mrb[0].mxu0 %v2836
        %v3043 = vpop.f32.mrb[0].mxu0
        %v3044 = vadd.f32 %v1349, %v3043
        %v3045 = vpop.f32.mrb[0].mxu0
        %3046 = vmatprep.mubr.f32.mxu0 0.0
        %3047 = vmatmul.mubr.f32.gmra.mrb[0].mxu0 %v2839
        %v3048 = vpop.f32.mrb[0].mxu0
        %v3049 = vadd.f32 %v1349, %v3048
        %v3050 = vpop.f32.mrb[0].mxu0
        %3051 = vmatprep.mubr.f32.mxu0 0.0
        %3052 = vmatmul.mubr.f32.gmra.mrb[0].mxu0 %v2842
        %v3053 = vpop.f32.mrb[0].mxu0
        %v3054 = vadd.f32 %v1349, %v3053
        %v3055 = vpop.f32.mrb[0].mxu0
        %3056 = vmatprep.mubr.f32.mxu0 0.0
        %3057 = vmatmul.mubr.f32.gmra.mrb[0].mxu0 %v2845
        %v3058 = vpop.f32.mrb[0].mxu0
        %v3059 = vadd.f32 %v1349, %v3058
        %v3060 = vpop.f32.mrb[0].mxu0
        %3061 = vmatprep.mubr.f32.mxu0 0.0
        %3062 = vmatmul.mubr.f32.gmra.mrb[0].mxu0 %v2848
        %v3063 = vpop.f32.mrb[0].mxu0
        %v3064 = vadd.f32 %v1349, %v3063
        %v3065 = vpop.f32.mrb[0].mxu0
        %3066 = vmatprep.mubr.f32.mxu0 0.0
        %3067 = vmatmul.mubr.f32.gmra.mrb[0].mxu0 %v2851
        %v3068 = vpop.f32.mrb[0].mxu0
        %v3069 = vadd.f32 %v1349, %v3068
        %v3070 = vpop.f32.mrb[0].mxu0
        %3071 = vmatprep.mubr.f32.mxu0 0.0
        %3072 = vmatmul.mubr.f32.gmra.mrb[0].mxu0 %v2854
        %v3073 = vpop.f32.mrb[0].mxu0
        %v3074 = vadd.f32 %v1349, %v3073
        %v3075 = vpop.f32.mrb[0].mxu0
        %3076 = vmatprep.mubr.f32.mxu0 0.0
        %3077 = vmatmul.mubr.f32.gmra.mrb[0].mxu0 %v2857
        %v3078 = vpop.f32.mrb[0].mxu0
        %v3079 = vadd.f32 %v1349, %v3078
        %v3080 = vpop.f32.mrb[0].mxu0
        %3081 = vmatprep.mubr.f32.mxu0 0.0
        %3082 = vmatmul.mubr.f32.gmra.mrb[0].mxu0 %v2860
        %v3083 = vpop.f32.mrb[0].mxu0
        %v3084 = vadd.f32 %v1349, %v3083
        %v3085 = vpop.f32.mrb[0].mxu0
        %3086 = vdwg.mxu0
        %s3087 = scalar_lea.vmem %s163, 16 [#allocation4]
        %3088 = vst [vmem:[%s3087] sm:$0xff] %v2929
        %3089 = vst [vmem:[%s3087 + $0x8] sm:$0xff] %v2934
        %3090 = vst [vmem:[%s3087 + $0x20] sm:$0xff] %v2939
        %3091 = vst [vmem:[%s3087 + $0x28] sm:$0xff] %v2944
        %3092 = vst [vmem:[%s3087 + $0x40] sm:$0xff] %v2949
        %3093 = vst [vmem:[%s3087 + $0x48] sm:$0xff] %v2954
        %3094 = vst [vmem:[%s3087 + $0x60] sm:$0xff] %v2959
        %3095 = vst [vmem:[%s3087 + $0x68] sm:$0xff] %v2964
        %3096 = vst [vmem:[%s3087 + $0x80] sm:$0xff] %v2969
        %3097 = vst [vmem:[%s3087 + $0x88] sm:$0xff] %v2974
        %3098 = vst [vmem:[%s3087 + $0xa0] sm:$0xff] %v2979
        %3099 = vst [vmem:[%s3087 + $0xa8] sm:$0xff] %v2984
        %3100 = vst [vmem:[%s3087 + $0xc0] sm:$0xff] %v2989
        %3101 = vst [vmem:[%s3087 + $0xc8] sm:$0xff] %v2994
        %3102 = vst [vmem:[%s3087 + $0xe0] sm:$0xff] %v2999
        %3103 = vst [vmem:[%s3087 + $0xe8] sm:$0xff] %v3004
        %3104 = vst [vmem:[%s3087 + $0x100] sm:$0xff] %v3009
        %3105 = vst [vmem:[%s3087 + $0x108] sm:$0xff] %v3014
        %3106 = vst [vmem:[%s3087 + $0x120] sm:$0xff] %v3019
        %3107 = vst [vmem:[%s3087 + $0x128] sm:$0xff] %v3024
        %3108 = vst [vmem:[%s3087 + $0x140] sm:$0xff] %v3029
        %3109 = vst [vmem:[%s3087 + $0x148] sm:$0xff] %v3034
        %3110 = vst [vmem:[%s3087 + $0x160] sm:$0xff] %v3039
        %3111 = vst [vmem:[%s3087 + $0x168] sm:$0xff] %v3044
        %3112 = vst [vmem:[%s3087 + $0x180] sm:$0xff] %v3049
        %3113 = vst [vmem:[%s3087 + $0x188] sm:$0xff] %v3054
        %3114 = vst [vmem:[%s3087 + $0x1a0] sm:$0xff] %v3059
        %3115 = vst [vmem:[%s3087 + $0x1a8] sm:$0xff] %v3064
        %3116 = vst [vmem:[%s3087 + $0x1c0] sm:$0xff] %v3069
        %3117 = vst [vmem:[%s3087 + $0x1c8] sm:$0xff] %v3074
        %3118 = vst [vmem:[%s3087 + $0x1e0] sm:$0xff] %v3079
        %3119 = vst [vmem:[%s3087 + $0x1e8] sm:$0xff] %v3084
        %s3120 = sand.u32 %s93, 1
        %s3121 = scalar_lea.sflag [#allocation5], %s3120
        %s3122 = sand.u32 %s93, 1
        %s3123 = smul.addr %s3122, 512
        %s3124 = scalar_lea.vmem [#allocation4], %s3123
        // Predicated region
        $region33: #{tpu_custom_call.1} parent=31 // pred_check
          %p3125 = pneg %p103
        $region34: #{tpu_custom_call.1} parent=31 // pred_check_branch
          %3127 = sbr.rel (%p3125) target = $region36
        $region35: #{tpu_custom_call.1} parent=31 // pred_region
          %s3129 = ssub.s32 8192, 8192
          %3130 = vsyncadd %s3121, %s3129
          %s3131 = smul.addr %s17, 64
          %s3132 = smul.addr %s3131, 128
          %s3133 = scalar_lea.hbm %s3, %s3132
          %s3134 = sshll.u32 %s3124, 4
          %s3135 = int_to_ptr.vmem [resolvable:$true] %s3134
          %3140 = dma.vmem_to_hbm [thread:$0]  %s3135, 8192, %s3133, %s3121, 128, 128, 8
        $region36: #{tpu_custom_call.1} parent=31 // pred_fallthru
          _
      $region32: #{tpu_custom_call.1} parent=5 // pred_fallthru
        _
      %p3141 = scmp.le.s32.totalorder 2, %s12
      // Predicated region
      $region37: #{tpu_custom_call.1} parent=5 // pred_check
        %p3142 = pneg %p3141
      $region38: #{tpu_custom_call.1} parent=5 // pred_check_branch
        %3144 = sbr.rel (%p3142) target = $region40
      $region39: #{tpu_custom_call.1} parent=5 // pred_region
        %s3145 = ssub.s32 %s12, 2
        // Predicated region
        $region41: #{tpu_custom_call.1} parent=39 // pred_check
          %p3146 = pneg %p109
        $region42: #{tpu_custom_call.1} parent=39 // pred_check_branch
          %3148 = sbr.rel (%p3146) target = $region44
        $region43: #{tpu_custom_call.1} parent=39 // pred_region
          %s3149 = sand.u32 %s94, 1
          %s3150 = scalar_lea.sflag [#allocation5], %s3149
          %s3151 = sand.u32 %s94, 1
          %s3152 = smul.addr %s3151, 512
          %s3153 = scalar_lea.vmem [#allocation4], %s3152
          %3154 = dma.done %s3150, 8192
        $region44: #{tpu_custom_call.1} parent=39 // pred_fallthru
          _
      $region40: #{tpu_custom_call.1} parent=5 // pred_fallthru
        _
    $region6: #{tpu_custom_call.1} parent=1 // loop_footer
      %s16 = sadd.s32 1, %s12
    $region7: #{tpu_custom_call.1} parent=1 // loop_footer_branch
      %11 = sbr.rel target = $region3
    $region8: #{tpu_custom_call.1} parent=1 // loop_exit
      _
    %3155 = vsyncpa [#allocation5], 1
    %s3156 = scalar_lea.sflag [#allocation5], 1
    %3157 = vsyncpa %s3156, 1

</llo_original>
